<compile_context>
chip_gen: v7x
topology: tpu7x:2x2x1
jax: 0.10.0
libtpu: 0.0.40
codegen_flags: <defaults>
</compile_context>

<pallas_src>
import jax
import jax.numpy as jnp
from jax.experimental import pallas as pl
from jax.experimental.pallas import tpu as pltpu  # noqa: F401  (TPU backend)

# ----------------------------- config -----------------------------
B = 2          # batch
L = 8          # sequence length (len_q == len_k == len_v)
D_MODEL = 32   # d_model
N_HEAD = 4     # n_head
D_K = 8        # d_k
D_V = 8        # d_v
D_INNER = 64   # d_inner
EPS = 1e-6
G = B * N_HEAD  # fused (batch, head) batch axis for the attention dot_generals


def _layernorm(x, w, b):
    mu = jnp.mean(x, axis=-1, keepdims=True)
    var = jnp.mean((x - mu) ** 2, axis=-1, keepdims=True)
    return (x - mu) * jax.lax.rsqrt(var + EPS) * w + b


def encoder_layer_kernel(
    x_ref,                                  # (B, L, D_MODEL)
    ln1_w_ref, ln1_b_ref,                   # (1, D_MODEL)        MHA layer_norm
    a_ref,                                  # (G, D_MODEL, D_MODEL)  Wq·Wkᵀ/√dk  (head-major, repl. over B)
    p_ref,                                  # (G, D_MODEL, D_MODEL)  Wv·fc       (head-major, repl. over B)
    ln2_w_ref, ln2_b_ref,                   # (1, D_MODEL)        FFN layer_norm
    w1_ref, b1_ref,                         # (D_MODEL, D_INNER), (1, D_INNER)
    w2_ref, b2_ref,                         # (D_INNER, D_MODEL), (1, D_MODEL)
    ln3_w_ref, ln3_b_ref,                   # (1, D_MODEL)        final layer_norm
    out_ref,                                # (B, L, D_MODEL)
    attn_ref,                               # (B, N_HEAD, L, L)
):
    x = x_ref[...]                                   # (B, L, D)
    residual = x                                     # squeeze(q,1) is a no-op for L > 1

    # ---- MultiHeadAttention (pre-LN) ----
    xn = _layernorm(x, ln1_w_ref[...], ln1_b_ref[...])            # (B, L, D)
    # Replicate rows across heads so every (batch, head) pair is one batch entry of a
    # single batched dot_general.  Only leading dims are touched (minor pair unchanged).
    xng = jnp.broadcast_to(xn[:, None], (B, N_HEAD, L, D_MODEL)).reshape(G, L, D_MODEL)

    # scores_g = (xn @ A_g) @ xnᵀ  with  A_g = Wq_h Wk_hᵀ / sqrt(d_k)   (2 stages, not 3)
    qa = jnp.einsum("gld,gde->gle", xng, a_ref[...], preferred_element_type=jnp.float32)   # (G,L,D)
    scores = jnp.einsum("gqe,gke->gqk", qa, xng, preferred_element_type=jnp.float32)       # (G,L,L)
    m = jnp.max(scores, axis=-1, keepdims=True)
    e = jnp.exp(scores - m)
    # exact reciprocal (approx=True would flirt with the 1e-4 tolerance)
    attn = e * pl.reciprocal(jnp.sum(e, axis=-1, keepdims=True))                           # softmax
    attn_ref[...] = attn.reshape(B, N_HEAD, L, L)                                          # single store

    # value path: y_g = attn_g @ (xn @ P_g)  with  P_g = Wv_h fc_h     (2 stages, not 3)
    vp = jnp.einsum("gld,gdm->glm", xng, p_ref[...], preferred_element_type=jnp.float32)   # (G,L,D)
    y = jnp.einsum("gqk,gkm->gqm", attn, vp, preferred_element_type=jnp.float32)           # (G,L,D)
    # sum over heads == concat(heads) @ fc
    attn_out = jnp.sum(y.reshape(B, N_HEAD, L, D_MODEL), axis=1) + residual                # (B,L,D)

    # ---- PositionwiseFeedForward (pre-LN), flattened to (B*L, D) 2-D matmuls ----
    # L == 8 == sublane tile, so this flatten/unflatten is tile-aligned (no relayout).
    res2 = attn_out.reshape(B * L, D_MODEL)
    xn2 = _layernorm(res2, ln2_w_ref[...], ln2_b_ref[...])
    h1 = jnp.maximum(
        jnp.dot(xn2, w1_ref[...], preferred_element_type=jnp.float32) + b1_ref[...], 0.0)  # (B*L, D_INNER)
    h2 = jnp.dot(h1, w2_ref[...], preferred_element_type=jnp.float32) + b2_ref[...]        # (B*L, D)
    ffn_out = h2 + res2

    # ---- final LayerNorm ----
    out_ref[...] = _layernorm(ffn_out, ln3_w_ref[...], ln3_b_ref[...]).reshape(B, L, D_MODEL)


def encoder_layer_pallas(x, p):
    """x: (B, L, D_MODEL) float32. p: dict of packed weights (see init_params)."""
    # Host-side (one-time) weight folding/re-layout — plain XLA ops outside the kernel:
    #   A_h = (Wq_h / sqrt(d_k)) @ Wk_hᵀ   and   P_h = Wv_h @ fc_h, head-major, repl. over B.
    wq_r = p["wq_t"].reshape(D_MODEL, N_HEAD, D_K)
    wk_r = p["wk_t"].reshape(D_MODEL, N_HEAD, D_K)
    wv_r = p["wv_t"].reshape(D_MODEL, N_HEAD, D_V)
    fc_r = p["fc_t"].reshape(N_HEAD, D_V, D_MODEL)

    a_h = jnp.einsum("dhk,ehk->hde", wq_r, wk_r) * (D_K ** -0.5)        # (H, D, D)
    p_h = jnp.einsum("dhv,hvm->hdm", wv_r, fc_r)                        # (H, D, D)
    a_g = jnp.broadcast_to(a_h[None], (B, N_HEAD, D_MODEL, D_MODEL)).reshape(G, D_MODEL, D_MODEL)
    p_g = jnp.broadcast_to(p_h[None], (B, N_HEAD, D_MODEL, D_MODEL)).reshape(G, D_MODEL, D_MODEL)

    out_shapes = [
        jax.ShapeDtypeStruct((B, L, D_MODEL), jnp.float32),
        jax.ShapeDtypeStruct((B, N_HEAD, L, L), jnp.float32),
    ]
    # Advisory hint so XLA schedules surrounding ops around this tiny custom call.
    cost = pl.CostEstimate(flops=470_000, transcendentals=700, bytes_accessed=110_000)

    # No grid: single invocation, every operand is a whole-array VMEM block
    # (total resident data is <100 KiB, far under any VMEM limit).
    fn = pl.pallas_call(
        encoder_layer_kernel,
        out_shape=out_shapes,
        cost_estimate=cost,
    )
    return fn(
        x,
        p["ln1_w"], p["ln1_b"],
        a_g, p_g,
        p["ln2_w"], p["ln2_b"],
        p["w1_t"], p["b1"], p["w2_t"], p["b2"],
        p["ln3_w"], p["ln3_b"],
    )


# ----------------------------- reference (pure JAX, unfused math) -----------------------------
def encoder_layer_ref(x, p):
    def ln(v, w, b):
        mu = jnp.mean(v, axis=-1, keepdims=True)
        var = jnp.mean((v - mu) ** 2, axis=-1, keepdims=True)
        return (v - mu) / jnp.sqrt(var + EPS) * w + b

    residual = x
    xn = ln(x, p["ln1_w"], p["ln1_b"])
    q = (xn @ p["wq_t"]).reshape(B, L, N_HEAD, D_K).transpose(0, 2, 1, 3)
    k = (xn @ p["wk_t"]).reshape(B, L, N_HEAD, D_K).transpose(0, 2, 1, 3)
    v = (xn @ p["wv_t"]).reshape(B, L, N_HEAD, D_V).transpose(0, 2, 1, 3)
    scores = jnp.einsum("bhqd,bhkd->bhqk", q / (D_K ** 0.5), k)
    attn = jax.nn.softmax(scores, axis=-1)
    o = jnp.einsum("bhqk,bhkd->bhqd", attn, v).transpose(0, 2, 1, 3).reshape(B, L, N_HEAD * D_V)
    q_out = o @ p["fc_t"] + residual

    residual2 = q_out
    xn2 = ln(q_out, p["ln2_w"], p["ln2_b"])
    ffn = jnp.maximum(xn2 @ p["w1_t"] + p["b1"], 0.0) @ p["w2_t"] + p["b2"] + residual2
    return ln(ffn, p["ln3_w"], p["ln3_b"]), attn


def init_params(key):
    ks = jax.random.split(key, 8)
    scale = 0.1
    return {
        "ln1_w": jnp.ones((1, D_MODEL), jnp.float32),
        "ln1_b": jnp.zeros((1, D_MODEL), jnp.float32),
        "wq_t": scale * jax.random.normal(ks[0], (D_MODEL, N_HEAD * D_K), jnp.float32),
        "wk_t": scale * jax.random.normal(ks[1], (D_MODEL, N_HEAD * D_K), jnp.float32),
        "wv_t": scale * jax.random.normal(ks[2], (D_MODEL, N_HEAD * D_V), jnp.float32),
        "fc_t": scale * jax.random.normal(ks[3], (N_HEAD * D_V, D_MODEL), jnp.float32),
        "ln2_w": jnp.ones((1, D_MODEL), jnp.float32),
        "ln2_b": jnp.zeros((1, D_MODEL), jnp.float32),
        "w1_t": scale * jax.random.normal(ks[4], (D_MODEL, D_INNER), jnp.float32),
        "b1": scale * jax.random.normal(ks[5], (1, D_INNER), jnp.float32),
        "w2_t": scale * jax.random.normal(ks[6], (D_INNER, D_MODEL), jnp.float32),
        "b2": scale * jax.random.normal(ks[7], (1, D_MODEL), jnp.float32),
        "ln3_w": jnp.ones((1, D_MODEL), jnp.float32),
        "ln3_b": jnp.zeros((1, D_MODEL), jnp.float32),
    }


if __name__ == "__main__":
    key = jax.random.PRNGKey(0)
    k_x, k_p = jax.random.split(key)
    x = jax.random.normal(k_x, (B, L, D_MODEL), jnp.float32)
    params = init_params(k_p)

    # TODO(synk): nn.Dropout layers are identity (eval mode); PositionalEncoding is not
    # used by EncoderLayer.forward, so neither appears in the kernel.
    out, attn = encoder_layer_pallas(x, params)
    out = jax.block_until_ready(out)
    attn = jax.block_until_ready(attn)

    ref_out, ref_attn = encoder_layer_ref(x, params)
    assert jnp.allclose(out, ref_out, atol=1e-4, rtol=1e-4), "output mismatch"
    assert jnp.allclose(attn, ref_attn, atol=1e-4, rtol=1e-4), "attention mismatch"

    print("KERNEL_OK")
</pallas_src>

<mosaic_0001>
module attributes {stable_mosaic.version = 11 : i64} {
  func.func @encoder_layer_kernel(%arg0: memref<2x8x32xf32, #tpu.memory_space<vmem>>, %arg1: memref<1x32xf32, #tpu.memory_space<vmem>>, %arg2: memref<1x32xf32, #tpu.memory_space<vmem>>, %arg3: memref<8x32x32xf32, #tpu.memory_space<vmem>>, %arg4: memref<8x32x32xf32, #tpu.memory_space<vmem>>, %arg5: memref<1x32xf32, #tpu.memory_space<vmem>>, %arg6: memref<1x32xf32, #tpu.memory_space<vmem>>, %arg7: memref<32x64xf32, #tpu.memory_space<vmem>>, %arg8: memref<1x64xf32, #tpu.memory_space<vmem>>, %arg9: memref<64x32xf32, #tpu.memory_space<vmem>>, %arg10: memref<1x32xf32, #tpu.memory_space<vmem>>, %arg11: memref<1x32xf32, #tpu.memory_space<vmem>>, %arg12: memref<1x32xf32, #tpu.memory_space<vmem>>, %arg13: memref<2x8x32xf32, #tpu.memory_space<vmem>>, %arg14: memref<2x4x8x8xf32, #tpu.memory_space<vmem>>) attributes {dimension_semantics = [], scalar_prefetch = 0 : i64, scratch_operands = 0 : i64, tpu.core_type = #tpu.core_type<tc>} {
    %c0 = arith.constant 0 : index
    %c0_0 = arith.constant 0 : index
    %c0_1 = arith.constant 0 : index
    %0 = vector.load %arg0[%c0, %c0_0, %c0_1] : memref<2x8x32xf32, #tpu.memory_space<vmem>>, vector<2x8x32xf32>
    %c0_2 = arith.constant 0 : index
    %c0_3 = arith.constant 0 : index
    %1 = vector.load %arg1[%c0_2, %c0_3] : memref<1x32xf32, #tpu.memory_space<vmem>>, vector<1x32xf32>
    %c0_4 = arith.constant 0 : index
    %c0_5 = arith.constant 0 : index
    %2 = vector.load %arg2[%c0_4, %c0_5] : memref<1x32xf32, #tpu.memory_space<vmem>>, vector<1x32xf32>
    %cst = arith.constant dense<0.000000e+00> : vector<2x8xf32>
    %3 = vector.multi_reduction <add>, %0, %cst [2] : vector<2x8x32xf32> to vector<2x8xf32>
    %4 = vector.shape_cast %3 : vector<2x8xf32> to vector<2x8x1xf32>
    %cst_6 = arith.constant 3.200000e+01 : f32
    %5 = vector.broadcast %cst_6 : f32 to vector<2x8x1xf32>
    %6 = arith.divf %4, %5 : vector<2x8x1xf32>
    %7 = vector.broadcast %6 : vector<2x8x1xf32> to vector<2x8x32xf32>
    %8 = arith.subf %0, %7 : vector<2x8x32xf32>
    %9 = arith.mulf %8, %8 : vector<2x8x32xf32>
    %cst_7 = arith.constant dense<0.000000e+00> : vector<2x8xf32>
    %10 = vector.multi_reduction <add>, %9, %cst_7 [2] : vector<2x8x32xf32> to vector<2x8xf32>
    %11 = vector.shape_cast %10 : vector<2x8xf32> to vector<2x8x1xf32>
    %cst_8 = arith.constant 3.200000e+01 : f32
    %12 = vector.broadcast %cst_8 : f32 to vector<2x8x1xf32>
    %13 = arith.divf %11, %12 : vector<2x8x1xf32>
    %14 = vector.broadcast %6 : vector<2x8x1xf32> to vector<2x8x32xf32>
    %15 = arith.subf %0, %14 : vector<2x8x32xf32>
    %cst_9 = arith.constant 9.99999997E-7 : f32
    %16 = vector.broadcast %cst_9 : f32 to vector<2x8x1xf32>
    %17 = arith.addf %13, %16 : vector<2x8x1xf32>
    %18 = math.rsqrt %17 : vector<2x8x1xf32>
    %19 = vector.broadcast %18 : vector<2x8x1xf32> to vector<2x8x32xf32>
    %20 = arith.mulf %15, %19 : vector<2x8x32xf32>
    %21 = vector.shape_cast %1 : vector<1x32xf32> to vector<1x1x32xf32>
    %22 = vector.broadcast %21 : vector<1x1x32xf32> to vector<2x8x32xf32>
    %23 = arith.mulf %20, %22 : vector<2x8x32xf32>
    %24 = vector.shape_cast %2 : vector<1x32xf32> to vector<1x1x32xf32>
    %25 = vector.broadcast %24 : vector<1x1x32xf32> to vector<2x8x32xf32>
    %26 = arith.addf %23, %25 : vector<2x8x32xf32>
    %27 = vector.shape_cast %26 : vector<2x8x32xf32> to vector<2x1x8x32xf32>
    %28 = vector.shape_cast %27 : vector<2x1x8x32xf32> to vector<2x1x8x32xf32>
    %29 = vector.broadcast %28 : vector<2x1x8x32xf32> to vector<2x4x8x32xf32>
    %30 = vector.shape_cast %29 : vector<2x4x8x32xf32> to vector<8x8x32xf32>
    %c0_10 = arith.constant 0 : index
    %c0_11 = arith.constant 0 : index
    %c0_12 = arith.constant 0 : index
    %31 = vector.load %arg3[%c0_10, %c0_11, %c0_12] : memref<8x32x32xf32, #tpu.memory_space<vmem>>, vector<8x32x32xf32>
    "tpu.trace_start"() <{level = 10 : i32, message = "gld,gde->gle"}> : () -> ()
    %cst_13 = arith.constant dense<0.000000e+00> : vector<8x8x32xf32>
    %32 = tpu.matmul %30, %31, %cst_13 {dimension_numbers = #tpu.dot_dimension_numbers<[2], [1], [1], [2], [0, 0, 0, 1, 1, 2], [0], [0]>} : vector<8x8x32xf32>, vector<8x32x32xf32>, vector<8x8x32xf32> -> vector<8x8x32xf32>
    "tpu.trace_stop"() : () -> ()
    "tpu.trace_start"() <{level = 10 : i32, message = "gqe,gke->gqk"}> : () -> ()
    %cst_14 = arith.constant dense<0.000000e+00> : vector<8x8x8xf32>
    %33 = tpu.matmul %32, %30, %cst_14 {dimension_numbers = #tpu.dot_dimension_numbers<[2], [2], [1], [1], [0, 0, 0, 1, 1, 1], [0], [0]>} : vector<8x8x32xf32>, vector<8x8x32xf32>, vector<8x8x8xf32> -> vector<8x8x8xf32>
    "tpu.trace_stop"() : () -> ()
    %cst_15 = arith.constant dense<0xFF800000> : vector<8x8xf32>
    %34 = vector.multi_reduction <maximumf>, %33, %cst_15 [2] : vector<8x8x8xf32> to vector<8x8xf32>
    %35 = vector.shape_cast %34 : vector<8x8xf32> to vector<8x8x1xf32>
    %36 = vector.broadcast %35 : vector<8x8x1xf32> to vector<8x8x8xf32>
    %37 = arith.subf %33, %36 : vector<8x8x8xf32>
    %38 = math.exp %37 : vector<8x8x8xf32>
    %cst_16 = arith.constant dense<0.000000e+00> : vector<8x8xf32>
    %39 = vector.multi_reduction <add>, %38, %cst_16 [2] : vector<8x8x8xf32> to vector<8x8xf32>
    %40 = vector.shape_cast %39 : vector<8x8xf32> to vector<8x8x1xf32>
    %41 = tpu.reciprocal %40 : vector<8x8x1xf32> -> vector<8x8x1xf32>
    %42 = vector.broadcast %41 : vector<8x8x1xf32> to vector<8x8x8xf32>
    %43 = arith.mulf %38, %42 : vector<8x8x8xf32>
    %44 = vector.shape_cast %43 : vector<8x8x8xf32> to vector<2x4x8x8xf32>
    %c0_17 = arith.constant 0 : index
    %c0_18 = arith.constant 0 : index
    %c0_19 = arith.constant 0 : index
    %c0_20 = arith.constant 0 : index
    %45 = vector.load %arg14[%c0_17, %c0_18, %c0_19, %c0_20] : memref<2x4x8x8xf32, #tpu.memory_space<vmem>>, vector<2x4x8x8xf32>
    tpu.vector_store %arg14[%c0_17, %c0_18, %c0_19, %c0_20], %44 {strides = array<i32>} : memref<2x4x8x8xf32, #tpu.memory_space<vmem>>, vector<2x4x8x8xf32>,
    %c0_21 = arith.constant 0 : index
    %c0_22 = arith.constant 0 : index
    %c0_23 = arith.constant 0 : index
    %46 = vector.load %arg4[%c0_21, %c0_22, %c0_23] : memref<8x32x32xf32, #tpu.memory_space<vmem>>, vector<8x32x32xf32>
    "tpu.trace_start"() <{level = 10 : i32, message = "gld,gdm->glm"}> : () -> ()
    %cst_24 = arith.constant dense<0.000000e+00> : vector<8x8x32xf32>
    %47 = tpu.matmul %30, %46, %cst_24 {dimension_numbers = #tpu.dot_dimension_numbers<[2], [1], [1], [2], [0, 0, 0, 1, 1, 2], [0], [0]>} : vector<8x8x32xf32>, vector<8x32x32xf32>, vector<8x8x32xf32> -> vector<8x8x32xf32>
    "tpu.trace_stop"() : () -> ()
    "tpu.trace_start"() <{level = 10 : i32, message = "gqk,gkm->gqm"}> : () -> ()
    %cst_25 = arith.constant dense<0.000000e+00> : vector<8x8x32xf32>
    %48 = tpu.matmul %43, %47, %cst_25 {dimension_numbers = #tpu.dot_dimension_numbers<[2], [1], [1], [2], [0, 0, 0, 1, 1, 2], [0], [0]>} : vector<8x8x8xf32>, vector<8x8x32xf32>, vector<8x8x32xf32> -> vector<8x8x32xf32>
    "tpu.trace_stop"() : () -> ()
    %49 = vector.shape_cast %48 : vector<8x8x32xf32> to vector<2x4x8x32xf32>
    %cst_26 = arith.constant dense<0.000000e+00> : vector<2x8x32xf32>
    %50 = vector.multi_reduction <add>, %49, %cst_26 [1] : vector<2x4x8x32xf32> to vector<2x8x32xf32>
    %51 = arith.addf %50, %0 : vector<2x8x32xf32>
    %52 = vector.shape_cast %51 : vector<2x8x32xf32> to vector<16x32xf32>
    %c0_27 = arith.constant 0 : index
    %c0_28 = arith.constant 0 : index
    %53 = vector.load %arg5[%c0_27, %c0_28] : memref<1x32xf32, #tpu.memory_space<vmem>>, vector<1x32xf32>
    %c0_29 = arith.constant 0 : index
    %c0_30 = arith.constant 0 : index
    %54 = vector.load %arg6[%c0_29, %c0_30] : memref<1x32xf32, #tpu.memory_space<vmem>>, vector<1x32xf32>
    %cst_31 = arith.constant dense<0.000000e+00> : vector<16xf32>
    %55 = vector.multi_reduction <add>, %52, %cst_31 [1] : vector<16x32xf32> to vector<16xf32>
    %56 = vector.shape_cast %55 : vector<16xf32> to vector<16x1xf32>
    %cst_32 = arith.constant 3.200000e+01 : f32
    %57 = vector.broadcast %cst_32 : f32 to vector<16x1xf32>
    %58 = arith.divf %56, %57 : vector<16x1xf32>
    %59 = vector.broadcast %58 : vector<16x1xf32> to vector<16x32xf32>
    %60 = arith.subf %52, %59 : vector<16x32xf32>
    %61 = arith.mulf %60, %60 : vector<16x32xf32>
    %cst_33 = arith.constant dense<0.000000e+00> : vector<16xf32>
    %62 = vector.multi_reduction <add>, %61, %cst_33 [1] : vector<16x32xf32> to vector<16xf32>
    %63 = vector.shape_cast %62 : vector<16xf32> to vector<16x1xf32>
    %cst_34 = arith.constant 3.200000e+01 : f32
    %64 = vector.broadcast %cst_34 : f32 to vector<16x1xf32>
    %65 = arith.divf %63, %64 : vector<16x1xf32>
    %66 = vector.broadcast %58 : vector<16x1xf32> to vector<16x32xf32>
    %67 = arith.subf %52, %66 : vector<16x32xf32>
    %cst_35 = arith.constant 9.99999997E-7 : f32
    %68 = vector.broadcast %cst_35 : f32 to vector<16x1xf32>
    %69 = arith.addf %65, %68 : vector<16x1xf32>
    %70 = math.rsqrt %69 : vector<16x1xf32>
    %71 = vector.broadcast %70 : vector<16x1xf32> to vector<16x32xf32>
    %72 = arith.mulf %67, %71 : vector<16x32xf32>
    %73 = vector.broadcast %53 : vector<1x32xf32> to vector<16x32xf32>
    %74 = arith.mulf %72, %73 : vector<16x32xf32>
    %75 = vector.broadcast %54 : vector<1x32xf32> to vector<16x32xf32>
    %76 = arith.addf %74, %75 : vector<16x32xf32>
    %c0_36 = arith.constant 0 : index
    %c0_37 = arith.constant 0 : index
    %77 = vector.load %arg7[%c0_36, %c0_37] : memref<32x64xf32, #tpu.memory_space<vmem>>, vector<32x64xf32>
    %cst_38 = arith.constant dense<0.000000e+00> : vector<16x64xf32>
    %78 = tpu.matmul %76, %77, %cst_38 {dimension_numbers = #tpu.dot_dimension_numbers<[1], [0], [0], [1], [0, 0, 1, 1], [], []>} : vector<16x32xf32>, vector<32x64xf32>, vector<16x64xf32> -> vector<16x64xf32>
    %c0_39 = arith.constant 0 : index
    %c0_40 = arith.constant 0 : index
    %79 = vector.load %arg8[%c0_39, %c0_40] : memref<1x64xf32, #tpu.memory_space<vmem>>, vector<1x64xf32>
    %80 = vector.broadcast %79 : vector<1x64xf32> to vector<16x64xf32>
    %81 = arith.addf %78, %80 : vector<16x64xf32>
    %cst_41 = arith.constant 0.000000e+00 : f32
    %82 = vector.broadcast %cst_41 : f32 to vector<16x64xf32>
    %83 = arith.maximumf %81, %82 : vector<16x64xf32>
    %c0_42 = arith.constant 0 : index
    %c0_43 = arith.constant 0 : index
    %84 = vector.load %arg9[%c0_42, %c0_43] : memref<64x32xf32, #tpu.memory_space<vmem>>, vector<64x32xf32>
    %cst_44 = arith.constant dense<0.000000e+00> : vector<16x32xf32>
    %85 = tpu.matmul %83, %84, %cst_44 {dimension_numbers = #tpu.dot_dimension_numbers<[1], [0], [0], [1], [0, 0, 1, 1], [], []>} : vector<16x64xf32>, vector<64x32xf32>, vector<16x32xf32> -> vector<16x32xf32>
    %c0_45 = arith.constant 0 : index
    %c0_46 = arith.constant 0 : index
    %86 = vector.load %arg10[%c0_45, %c0_46] : memref<1x32xf32, #tpu.memory_space<vmem>>, vector<1x32xf32>
    %87 = vector.broadcast %86 : vector<1x32xf32> to vector<16x32xf32>
    %88 = arith.addf %85, %87 : vector<16x32xf32>
    %89 = arith.addf %88, %52 : vector<16x32xf32>
    %c0_47 = arith.constant 0 : index
    %c0_48 = arith.constant 0 : index
    %90 = vector.load %arg11[%c0_47, %c0_48] : memref<1x32xf32, #tpu.memory_space<vmem>>, vector<1x32xf32>
    %c0_49 = arith.constant 0 : index
    %c0_50 = arith.constant 0 : index
    %91 = vector.load %arg12[%c0_49, %c0_50] : memref<1x32xf32, #tpu.memory_space<vmem>>, vector<1x32xf32>
    %cst_51 = arith.constant dense<0.000000e+00> : vector<16xf32>
    %92 = vector.multi_reduction <add>, %89, %cst_51 [1] : vector<16x32xf32> to vector<16xf32>
    %93 = vector.shape_cast %92 : vector<16xf32> to vector<16x1xf32>
    %cst_52 = arith.constant 3.200000e+01 : f32
    %94 = vector.broadcast %cst_52 : f32 to vector<16x1xf32>
    %95 = arith.divf %93, %94 : vector<16x1xf32>
    %96 = vector.broadcast %95 : vector<16x1xf32> to vector<16x32xf32>
    %97 = arith.subf %89, %96 : vector<16x32xf32>
    %98 = arith.mulf %97, %97 : vector<16x32xf32>
    %cst_53 = arith.constant dense<0.000000e+00> : vector<16xf32>
    %99 = vector.multi_reduction <add>, %98, %cst_53 [1] : vector<16x32xf32> to vector<16xf32>
    %100 = vector.shape_cast %99 : vector<16xf32> to vector<16x1xf32>
    %cst_54 = arith.constant 3.200000e+01 : f32
    %101 = vector.broadcast %cst_54 : f32 to vector<16x1xf32>
    %102 = arith.divf %100, %101 : vector<16x1xf32>
    %103 = vector.broadcast %95 : vector<16x1xf32> to vector<16x32xf32>
    %104 = arith.subf %89, %103 : vector<16x32xf32>
    %cst_55 = arith.constant 9.99999997E-7 : f32
    %105 = vector.broadcast %cst_55 : f32 to vector<16x1xf32>
    %106 = arith.addf %102, %105 : vector<16x1xf32>
    %107 = math.rsqrt %106 : vector<16x1xf32>
    %108 = vector.broadcast %107 : vector<16x1xf32> to vector<16x32xf32>
    %109 = arith.mulf %104, %108 : vector<16x32xf32>
    %110 = vector.broadcast %90 : vector<1x32xf32> to vector<16x32xf32>
    %111 = arith.mulf %109, %110 : vector<16x32xf32>
    %112 = vector.broadcast %91 : vector<1x32xf32> to vector<16x32xf32>
    %113 = arith.addf %111, %112 : vector<16x32xf32>
    %114 = vector.shape_cast %113 : vector<16x32xf32> to vector<2x8x32xf32>
    %c0_56 = arith.constant 0 : index
    %c0_57 = arith.constant 0 : index
    %c0_58 = arith.constant 0 : index
    %115 = vector.load %arg13[%c0_56, %c0_57, %c0_58] : memref<2x8x32xf32, #tpu.memory_space<vmem>>, vector<2x8x32xf32>
    tpu.vector_store %arg13[%c0_56, %c0_57, %c0_58], %114 {strides = array<i32>} : memref<2x8x32xf32, #tpu.memory_space<vmem>>, vector<2x8x32xf32>,
    return
  }
}

</mosaic_0001>

<llo_original>
// kernel: tpu_custom_call.1
$region0: #{tpu_custom_call.1}
  #allocation0 [shape = 'u32[]', space=smem, size = 0x4, offset = 0x4, fixed_abs, tag = 'smem constant byte address 0x4 - core index']
  #allocation1 [shape = 'u32[144,128]{1,0:T(1,128)}', space=vmem, size = 0x12000, scoped, tag = 'internal scratch']
  %s0 = inlined_call_operand.vmem [shape: f32[2,8,32], index: 0, kind: input, shape index: {}]
  %s1 = inlined_call_operand.vmem [shape: f32[1,32], index: 1, kind: input, shape index: {}]
  %s2 = inlined_call_operand.vmem [shape: f32[1,32], index: 2, kind: input, shape index: {}]
  %s3 = inlined_call_operand.hbm [shape: f32[8,32,32], index: 3, kind: input, shape index: {}]
  %s4 = inlined_call_operand.hbm [shape: f32[8,32,32], index: 4, kind: input, shape index: {}]
  %s5 = inlined_call_operand.vmem [shape: f32[1,32], index: 5, kind: input, shape index: {}]
  %s6 = inlined_call_operand.vmem [shape: f32[1,32], index: 6, kind: input, shape index: {}]
  %s7 = inlined_call_operand.vmem [shape: f32[32,64], index: 7, kind: input, shape index: {}]
  %s8 = inlined_call_operand.vmem [shape: f32[1,64], index: 8, kind: input, shape index: {}]
  %s9 = inlined_call_operand.vmem [shape: f32[64,32], index: 9, kind: input, shape index: {}]
  %s10 = inlined_call_operand.vmem [shape: f32[1,32], index: 10, kind: input, shape index: {}]
  %s11 = inlined_call_operand.vmem [shape: f32[1,32], index: 11, kind: input, shape index: {}]
  %s12 = inlined_call_operand.vmem [shape: f32[1,32], index: 12, kind: input, shape index: {}]
  %s13 = inlined_call_operand.hbm [shape: f32[2,8,32], index: 13, kind: output, shape index: {0}]
  %s14 = inlined_call_operand.hbm [shape: f32[2,4,8,8], index: 14, kind: output, shape index: {1}]
  %15 = xla_tuple %s13, %s14
  %s16 = sld [smem:[#allocation0]]
  $region78: #{tpu_custom_call.1} parent=0
    _
  %s18 = ssub.s32 1, %s16
  %s19 = scalar_select 0, %s18, %s16
  $region1: #{tpu_custom_call.1} parent=0
    #allocation2 [shape = 'u8[131072]{0}', space=vmem, size = 0x20000, scoped, tag = 'input window, operand 3, single buffered']
    #allocation3 [shape = 's32[1]{0}', space=sflag, size = 0x4, scoped, tag = 'scoped memory for tpu_custom_call.1']
    #allocation4 [shape = 's32[1]{0}', space=sflag, size = 0x4, scoped, tag = 'scoped memory for tpu_custom_call.1']
    #allocation5 [shape = 'u8[131072]{0}', space=vmem, size = 0x20000, scoped, tag = 'input window, operand 4, single buffered']
    #allocation6 [shape = 's32[1]{0}', space=sflag, size = 0x4, scoped, tag = 'scoped memory for tpu_custom_call.1']
    #allocation7 [shape = 'u8[8192]{0}', space=vmem, size = 0x2000, scoped, tag = 'output window, operand 0, single buffered']
    #allocation8 [shape = 'u8[32768]{0}', space=vmem, size = 0x8000, scoped, tag = 'output window, operand 1, single buffered']
    #allocation9 [shape = 's32[1]{0}', space=sflag, size = 0x4, scoped, tag = 'scoped memory for tpu_custom_call.1']
    %20 = vsyncpa [#allocation3], 0
    %21 = vsyncpa [#allocation6], 0
    %22 = vsyncpa [#allocation4], 0
    %23 = vsyncpa [#allocation9], 0
    // Predicated region
    $region2: #{tpu_custom_call.1} parent=1 // pred_check
      _
    $region3: #{tpu_custom_call.1} parent=1 // pred_check_branch
      %25 = sbr.rel (0) target = $region5
    $region4: #{tpu_custom_call.1} parent=1 // pred_region
      _
    $region5: #{tpu_custom_call.1} parent=1 // pred_fallthru
      _
    // Predicated region
    $region6: #{tpu_custom_call.1} parent=1 // pred_check
      _
    $region7: #{tpu_custom_call.1} parent=1 // pred_check_branch
      %27 = sbr.rel (0) target = $region9
    $region8: #{tpu_custom_call.1} parent=1 // pred_region
      _
    $region9: #{tpu_custom_call.1} parent=1 // pred_fallthru
      _
    // Predicated region
    $region10: #{tpu_custom_call.1} parent=1 // pred_check
      _
    $region11: #{tpu_custom_call.1} parent=1 // pred_check_branch
      %29 = sbr.rel (0) target = $region13
    $region12: #{tpu_custom_call.1} parent=1 // pred_region
      _
    $region13: #{tpu_custom_call.1} parent=1 // pred_fallthru
      _
    // Predicated region
    $region14: #{tpu_custom_call.1} parent=1 // pred_check
      _
    $region15: #{tpu_custom_call.1} parent=1 // pred_check_branch
      %31 = sbr.rel (0) target = $region17
    $region16: #{tpu_custom_call.1} parent=1 // pred_region
      %s33 = ssub.s32 4096, 4096
      %34 = vsyncadd [#allocation3], %s33
      %s35 = sshll.u32 [#allocation2], 4
      %s36 = int_to_ptr.vmem [resolvable:$true] %s35
      %41 = dma.hbm_to_vmem [thread:$0]  %s3, 4096, %s36, [#allocation3], 128, 128, 8
    $region17: #{tpu_custom_call.1} parent=1 // pred_fallthru
      _
    // Predicated region
    $region18: #{tpu_custom_call.1} parent=1 // pred_check
      _
    $region19: #{tpu_custom_call.1} parent=1 // pred_check_branch
      %43 = sbr.rel (0) target = $region21
    $region20: #{tpu_custom_call.1} parent=1 // pred_region
      %s45 = ssub.s32 4096, 4096
      %46 = vsyncadd [#allocation6], %s45
      %s47 = sshll.u32 [#allocation5], 4
      %s48 = int_to_ptr.vmem [resolvable:$true] %s47
      %53 = dma.hbm_to_vmem [thread:$0]  %s4, 4096, %s48, [#allocation6], 128, 128, 8
    $region21: #{tpu_custom_call.1} parent=1 // pred_fallthru
      _
    // Predicated region
    $region22: #{tpu_custom_call.1} parent=1 // pred_check
      _
    $region23: #{tpu_custom_call.1} parent=1 // pred_check_branch
      %55 = sbr.rel (0) target = $region25
    $region24: #{tpu_custom_call.1} parent=1 // pred_region
      _
    $region25: #{tpu_custom_call.1} parent=1 // pred_fallthru
      _
    // Predicated region
    $region26: #{tpu_custom_call.1} parent=1 // pred_check
      _
    $region27: #{tpu_custom_call.1} parent=1 // pred_check_branch
      %57 = sbr.rel (0) target = $region29
    $region28: #{tpu_custom_call.1} parent=1 // pred_region
      _
    $region29: #{tpu_custom_call.1} parent=1 // pred_fallthru
      _
    // Predicated region
    $region30: #{tpu_custom_call.1} parent=1 // pred_check
      _
    $region31: #{tpu_custom_call.1} parent=1 // pred_check_branch
      %59 = sbr.rel (0) target = $region33
    $region32: #{tpu_custom_call.1} parent=1 // pred_region
      _
    $region33: #{tpu_custom_call.1} parent=1 // pred_fallthru
      _
    // Predicated region
    $region34: #{tpu_custom_call.1} parent=1 // pred_check
      _
    $region35: #{tpu_custom_call.1} parent=1 // pred_check_branch
      %61 = sbr.rel (0) target = $region37
    $region36: #{tpu_custom_call.1} parent=1 // pred_region
      _
    $region37: #{tpu_custom_call.1} parent=1 // pred_fallthru
      _
    // Predicated region
    $region38: #{tpu_custom_call.1} parent=1 // pred_check
      _
    $region39: #{tpu_custom_call.1} parent=1 // pred_check_branch
      %63 = sbr.rel (0) target = $region41
    $region40: #{tpu_custom_call.1} parent=1 // pred_region
      _
    $region41: #{tpu_custom_call.1} parent=1 // pred_fallthru
      _
    // Predicated region
    $region42: #{tpu_custom_call.1} parent=1 // pred_check
      _
    $region43: #{tpu_custom_call.1} parent=1 // pred_check_branch
      %65 = sbr.rel (0) target = $region45
    $region44: #{tpu_custom_call.1} parent=1 // pred_region
      _
    $region45: #{tpu_custom_call.1} parent=1 // pred_fallthru
      _
    // Predicated region
    $region46: #{tpu_custom_call.1} parent=1 // pred_check
      _
    $region47: #{tpu_custom_call.1} parent=1 // pred_check_branch
      %67 = sbr.rel (0) target = $region49
    $region48: #{tpu_custom_call.1} parent=1 // pred_region
      _
    $region49: #{tpu_custom_call.1} parent=1 // pred_fallthru
      _
    // Predicated region
    $region50: #{tpu_custom_call.1} parent=1 // pred_check
      _
    $region51: #{tpu_custom_call.1} parent=1 // pred_check_branch
      %69 = sbr.rel (0) target = $region53
    $region52: #{tpu_custom_call.1} parent=1 // pred_region
      _
    $region53: #{tpu_custom_call.1} parent=1 // pred_fallthru
      _
    // Predicated region
    $region54: #{tpu_custom_call.1} parent=1 // pred_check
      _
    $region55: #{tpu_custom_call.1} parent=1 // pred_check_branch
      %71 = sbr.rel (0) target = $region57
    $region56: #{tpu_custom_call.1} parent=1 // pred_region
      %72 = dma.done [#allocation3], 4096
    $region57: #{tpu_custom_call.1} parent=1 // pred_fallthru
      _
    // Predicated region
    $region58: #{tpu_custom_call.1} parent=1 // pred_check
      _
    $region59: #{tpu_custom_call.1} parent=1 // pred_check_branch
      %74 = sbr.rel (0) target = $region61
    $region60: #{tpu_custom_call.1} parent=1 // pred_region
      %75 = dma.done [#allocation6], 4096
    $region61: #{tpu_custom_call.1} parent=1 // pred_fallthru
      _
    %v76 = vld [vmem:[%s0] sm:$0xff]
    %v77 = vld [vmem:[%s0 + $0x8] sm:$0xff]
    %v78 = vld [vmem:[%s1] sm:$0x1]
    %v79 = vld [vmem:[%s2] sm:$0x1]
    %vm80 = vcmask 261120
    %v81 = vsel %vm80, %v76, 0.0
    %82 = vadd.xlane.f32.xlu0 %v81
    %v83 = vpop.xlane.xlu0 %82
    %v84 = vsel %vm80, %v77, 0.0
    %85 = vadd.xlane.f32.xlu0 %v84
    %v86 = vpop.xlane.xlu0 %85
    %v87 = vrcp.pop 32.0
    %v88 = vmul.f32 %v83, %v87
    %v89 = vmul.f32 %v86, %v87
    %v90 = vsub.f32 %v76, %v88
    %v91 = vsub.f32 %v77, %v89
    %v92 = vmul.f32 %v90, %v90
    %v93 = vmul.f32 %v91, %v91
    %v94 = vsel %vm80, %v92, 0.0
    %95 = vadd.xlane.f32.xlu0 %v94
    %v96 = vpop.xlane.xlu0 %95
    %v97 = vsel %vm80, %v93, 0.0
    %98 = vadd.xlane.f32.xlu0 %v97
    %v99 = vpop.xlane.xlu0 %98
    %v100 = vmul.f32 %v96, %v87
    %v101 = vmul.f32 %v99, %v87
    %v102 = vadd.f32 %v100, 1e-06
    %v103 = vadd.f32 %v101, 1e-06
    %v104 = vrsqrt.pop %v102
    %v105 = vrsqrt.pop %v103
    %v106 = vmul.f32 %v90, %v104
    %v107 = vmul.f32 %v91, %v105
    %v109 = vlaneseq
    %v110 = vshrl.u32 %v109, 7
    %v111 = vsub.s32 0, %v110
    %v112 = vrot.slane %v78, %v111
    %v114 = vmul.f32 %v106, %v112
    %v115 = vmul.f32 %v107, %v112
    %v117 = vlaneseq
    %v118 = vshrl.u32 %v117, 7
    %v119 = vsub.s32 0, %v118
    %v120 = vrot.slane %v79, %v119
    %v122 = vadd.f32 %v114, %v120
    %v123 = vadd.f32 %v115, %v120
    %v124 = vld [vmem:[#allocation2] sm:$0xff]
    %v125 = vld [vmem:[#allocation2 + $0x8] sm:$0xff]
    %v126 = vld [vmem:[#allocation2 + $0x10] sm:$0xff]
    %v127 = vld [vmem:[#allocation2 + $0x18] sm:$0xff]
    %v128 = vld [vmem:[#allocation2 + $0x20] sm:$0xff]
    %v129 = vld [vmem:[#allocation2 + $0x28] sm:$0xff]
    %v130 = vld [vmem:[#allocation2 + $0x30] sm:$0xff]
    %v131 = vld [vmem:[#allocation2 + $0x38] sm:$0xff]
    %v132 = vld [vmem:[#allocation2 + $0x40] sm:$0xff]
    %v133 = vld [vmem:[#allocation2 + $0x48] sm:$0xff]
    %v134 = vld [vmem:[#allocation2 + $0x50] sm:$0xff]
    %v135 = vld [vmem:[#allocation2 + $0x58] sm:$0xff]
    %v136 = vld [vmem:[#allocation2 + $0x60] sm:$0xff]
    %v137 = vld [vmem:[#allocation2 + $0x68] sm:$0xff]
    %v138 = vld [vmem:[#allocation2 + $0x70] sm:$0xff]
    %v139 = vld [vmem:[#allocation2 + $0x78] sm:$0xff]
    %v140 = vld [vmem:[#allocation2 + $0x80] sm:$0xff]
    %v141 = vld [vmem:[#allocation2 + $0x88] sm:$0xff]
    %v142 = vld [vmem:[#allocation2 + $0x90] sm:$0xff]
    %v143 = vld [vmem:[#allocation2 + $0x98] sm:$0xff]
    %v144 = vld [vmem:[#allocation2 + $0xa0] sm:$0xff]
    %v145 = vld [vmem:[#allocation2 + $0xa8] sm:$0xff]
    %v146 = vld [vmem:[#allocation2 + $0xb0] sm:$0xff]
    %v147 = vld [vmem:[#allocation2 + $0xb8] sm:$0xff]
    %v148 = vld [vmem:[#allocation2 + $0xc0] sm:$0xff]
    %v149 = vld [vmem:[#allocation2 + $0xc8] sm:$0xff]
    %v150 = vld [vmem:[#allocation2 + $0xd0] sm:$0xff]
    %v151 = vld [vmem:[#allocation2 + $0xd8] sm:$0xff]
    %v152 = vld [vmem:[#allocation2 + $0xe0] sm:$0xff]
    %v153 = vld [vmem:[#allocation2 + $0xe8] sm:$0xff]
    %v154 = vld [vmem:[#allocation2 + $0xf0] sm:$0xff]
    %v155 = vld [vmem:[#allocation2 + $0xf8] sm:$0xff]
    %v157 = vsel %vm80, %v122, 0
    %159 = vmatprep.subr.mxu0 0.0
    %160 = vmatpush1.msra.mxu0 %v124
    %161 = vmatprep.subr.mxu0 0.0
    %162 = vmatpush1.msra.mxu0 %v125
    %163 = vmatprep.subr.mxu0 0.0
    %164 = vmatpush1.msra.mxu0 %v126
    %165 = vmatprep.subr.mxu0 0.0
    %166 = vmatpush1.msra.mxu0 %v127
    %167 = vmatprep.subr.mxu0 0.0
    %168 = vmatpush1.msra.mxu0 0.0
    %169 = vmatprep.subr.mxu0 0.0
    %170 = vmatpush1.msra.mxu0 0.0
    %171 = vmatprep.subr.mxu0 0.0
    %172 = vmatpush1.msra.mxu0 0.0
    %173 = vmatprep.subr.mxu0 0.0
    %174 = vmatpush1.msra.mxu0 0.0
    %175 = vmatprep.subr.mxu0 0.0
    %176 = vmatpush1.msra.mxu0 0.0
    %177 = vmatprep.subr.mxu0 0.0
    %178 = vmatpush1.msra.mxu0 0.0
    %179 = vmatprep.subr.mxu0 0.0
    %180 = vmatpush1.msra.mxu0 0.0
    %181 = vmatprep.subr.mxu0 0.0
    %182 = vmatpush1.msra.mxu0 0.0
    %183 = vmatprep.subr.mxu0 0.0
    %184 = vmatpush1.msra.mxu0 0.0
    %185 = vmatprep.subr.mxu0 0.0
    %186 = vmatpush1.msra.mxu0 0.0
    %187 = vmatprep.subr.mxu0 0.0
    %188 = vmatpush1.msra.mxu0 0.0
    %189 = vmatprep.subr.mxu0 0.0
    %190 = vmatpush1.msra.mxu0 0.0
    %191 = vmatprep.subr.mxu0 0.0
    %192 = vmatpush1.msra.mxu0 0.0
    %193 = vmatprep.subr.mxu0 0.0
    %194 = vmatpush1.msra.mxu0 0.0
    %195 = vmatprep.subr.mxu0 0.0
    %196 = vmatpush1.msra.mxu0 0.0
    %197 = vmatprep.subr.mxu0 0.0
    %198 = vmatpush1.msra.mxu0 0.0
    %199 = vmatprep.subr.mxu0 0.0
    %200 = vmatpush1.msra.mxu0 0.0
    %201 = vmatprep.subr.mxu0 0.0
    %202 = vmatpush1.msra.mxu0 0.0
    %203 = vmatprep.subr.mxu0 0.0
    %204 = vmatpush1.msra.mxu0 0.0
    %205 = vmatprep.subr.mxu0 0.0
    %206 = vmatpush1.msra.mxu0 0.0
    %207 = vmatprep.subr.mxu0 0.0
    %208 = vmatpush1.msra.mxu0 0.0
    %209 = vmatprep.subr.mxu0 0.0
    %210 = vmatpush1.msra.mxu0 0.0
    %211 = vmatprep.subr.mxu0 0.0
    %212 = vmatpush1.msra.mxu0 0.0
    %213 = vmatprep.subr.mxu0 0.0
    %214 = vmatpush1.msra.mxu0 0.0
    %215 = vmatprep.subr.mxu0 0.0
    %216 = vmatpush1.msra.mxu0 0.0
    %217 = vmatprep.subr.mxu0 0.0
    %218 = vmatpush1.msra.mxu0 0.0
    %219 = vmatprep.subr.mxu0 0.0
    %220 = vmatpush1.msra.mxu0 0.0
    %221 = vmatprep.subr.mxu0 0.0
    %222 = vmatpush1.msra.mxu0 0.0
    %223 = vmatprep.mubr.f32.mxu0 0.0
    %224 = vmatmul.mubr.f32.gmra.mrb[0].mxu0 %v157
    %v225 = vpop.f32.mrb[0].mxu0
    %v226 = vadd.f32 0.0, %v225
    %v227 = vpop.f32.mrb[0].mxu0
    %228 = vdwg.mxu0
    %229 = vmatprep.subr.mxu0 0.0
    %230 = vmatpush1.msra.mxu0 %v128
    %231 = vmatprep.subr.mxu0 0.0
    %232 = vmatpush1.msra.mxu0 %v129
    %233 = vmatprep.subr.mxu0 0.0
    %234 = vmatpush1.msra.mxu0 %v130
    %235 = vmatprep.subr.mxu0 0.0
    %236 = vmatpush1.msra.mxu0 %v131
    %237 = vmatprep.subr.mxu0 0.0
    %238 = vmatpush1.msra.mxu0 0.0
    %239 = vmatprep.subr.mxu0 0.0
    %240 = vmatpush1.msra.mxu0 0.0
    %241 = vmatprep.subr.mxu0 0.0
    %242 = vmatpush1.msra.mxu0 0.0
    %243 = vmatprep.subr.mxu0 0.0
    %244 = vmatpush1.msra.mxu0 0.0
    %245 = vmatprep.subr.mxu0 0.0
    %246 = vmatpush1.msra.mxu0 0.0
    %247 = vmatprep.subr.mxu0 0.0
    %248 = vmatpush1.msra.mxu0 0.0
    %249 = vmatprep.subr.mxu0 0.0
    %250 = vmatpush1.msra.mxu0 0.0
    %251 = vmatprep.subr.mxu0 0.0
    %252 = vmatpush1.msra.mxu0 0.0
    %253 = vmatprep.subr.mxu0 0.0
    %254 = vmatpush1.msra.mxu0 0.0
    %255 = vmatprep.subr.mxu0 0.0
    %256 = vmatpush1.msra.mxu0 0.0
    %257 = vmatprep.subr.mxu0 0.0
    %258 = vmatpush1.msra.mxu0 0.0
    %259 = vmatprep.subr.mxu0 0.0
    %260 = vmatpush1.msra.mxu0 0.0
    %261 = vmatprep.subr.mxu0 0.0
    %262 = vmatpush1.msra.mxu0 0.0
    %263 = vmatprep.subr.mxu0 0.0
    %264 = vmatpush1.msra.mxu0 0.0
    %265 = vmatprep.subr.mxu0 0.0
    %266 = vmatpush1.msra.mxu0 0.0
    %267 = vmatprep.subr.mxu0 0.0
    %268 = vmatpush1.msra.mxu0 0.0
    %269 = vmatprep.subr.mxu0 0.0
    %270 = vmatpush1.msra.mxu0 0.0
    %271 = vmatprep.subr.mxu0 0.0
    %272 = vmatpush1.msra.mxu0 0.0
    %273 = vmatprep.subr.mxu0 0.0
    %274 = vmatpush1.msra.mxu0 0.0
    %275 = vmatprep.subr.mxu0 0.0
    %276 = vmatpush1.msra.mxu0 0.0
    %277 = vmatprep.subr.mxu0 0.0
    %278 = vmatpush1.msra.mxu0 0.0
    %279 = vmatprep.subr.mxu0 0.0
    %280 = vmatpush1.msra.mxu0 0.0
    %281 = vmatprep.subr.mxu0 0.0
    %282 = vmatpush1.msra.mxu0 0.0
    %283 = vmatprep.subr.mxu0 0.0
    %284 = vmatpush1.msra.mxu0 0.0
    %285 = vmatprep.subr.mxu0 0.0
    %286 = vmatpush1.msra.mxu0 0.0
    %287 = vmatprep.subr.mxu0 0.0
    %288 = vmatpush1.msra.mxu0 0.0
    %289 = vmatprep.subr.mxu0 0.0
    %290 = vmatpush1.msra.mxu0 0.0
    %291 = vmatprep.subr.mxu0 0.0
    %292 = vmatpush1.msra.mxu0 0.0
    %293 = vmatprep.mubr.f32.mxu0 0.0
    %294 = vmatmul.mubr.f32.gmra.mrb[0].mxu0 %v157
    %v295 = vpop.f32.mrb[0].mxu0
    %v296 = vadd.f32 0.0, %v295
    %v297 = vpop.f32.mrb[0].mxu0
    %298 = vdwg.mxu0
    %299 = vmatprep.subr.mxu0 0.0
    %300 = vmatpush1.msra.mxu0 %v132
    %301 = vmatprep.subr.mxu0 0.0
    %302 = vmatpush1.msra.mxu0 %v133
    %303 = vmatprep.subr.mxu0 0.0
    %304 = vmatpush1.msra.mxu0 %v134
    %305 = vmatprep.subr.mxu0 0.0
    %306 = vmatpush1.msra.mxu0 %v135
    %307 = vmatprep.subr.mxu0 0.0
    %308 = vmatpush1.msra.mxu0 0.0
    %309 = vmatprep.subr.mxu0 0.0
    %310 = vmatpush1.msra.mxu0 0.0
    %311 = vmatprep.subr.mxu0 0.0
    %312 = vmatpush1.msra.mxu0 0.0
    %313 = vmatprep.subr.mxu0 0.0
    %314 = vmatpush1.msra.mxu0 0.0
    %315 = vmatprep.subr.mxu0 0.0
    %316 = vmatpush1.msra.mxu0 0.0
    %317 = vmatprep.subr.mxu0 0.0
    %318 = vmatpush1.msra.mxu0 0.0
    %319 = vmatprep.subr.mxu0 0.0
    %320 = vmatpush1.msra.mxu0 0.0
    %321 = vmatprep.subr.mxu0 0.0
    %322 = vmatpush1.msra.mxu0 0.0
    %323 = vmatprep.subr.mxu0 0.0
    %324 = vmatpush1.msra.mxu0 0.0
    %325 = vmatprep.subr.mxu0 0.0
    %326 = vmatpush1.msra.mxu0 0.0
    %327 = vmatprep.subr.mxu0 0.0
    %328 = vmatpush1.msra.mxu0 0.0
    %329 = vmatprep.subr.mxu0 0.0
    %330 = vmatpush1.msra.mxu0 0.0
    %331 = vmatprep.subr.mxu0 0.0
    %332 = vmatpush1.msra.mxu0 0.0
    %333 = vmatprep.subr.mxu0 0.0
    %334 = vmatpush1.msra.mxu0 0.0
    %335 = vmatprep.subr.mxu0 0.0
    %336 = vmatpush1.msra.mxu0 0.0
    %337 = vmatprep.subr.mxu0 0.0
    %338 = vmatpush1.msra.mxu0 0.0
    %339 = vmatprep.subr.mxu0 0.0
    %340 = vmatpush1.msra.mxu0 0.0
    %341 = vmatprep.subr.mxu0 0.0
    %342 = vmatpush1.msra.mxu0 0.0
    %343 = vmatprep.subr.mxu0 0.0
    %344 = vmatpush1.msra.mxu0 0.0
    %345 = vmatprep.subr.mxu0 0.0
    %346 = vmatpush1.msra.mxu0 0.0
    %347 = vmatprep.subr.mxu0 0.0
    %348 = vmatpush1.msra.mxu0 0.0
    %349 = vmatprep.subr.mxu0 0.0
    %350 = vmatpush1.msra.mxu0 0.0
    %351 = vmatprep.subr.mxu0 0.0
    %352 = vmatpush1.msra.mxu0 0.0
    %353 = vmatprep.subr.mxu0 0.0
    %354 = vmatpush1.msra.mxu0 0.0
    %355 = vmatprep.subr.mxu0 0.0
    %356 = vmatpush1.msra.mxu0 0.0
    %357 = vmatprep.subr.mxu0 0.0
    %358 = vmatpush1.msra.mxu0 0.0
    %359 = vmatprep.subr.mxu0 0.0
    %360 = vmatpush1.msra.mxu0 0.0
    %361 = vmatprep.subr.mxu0 0.0
    %362 = vmatpush1.msra.mxu0 0.0
    %363 = vmatprep.mubr.f32.mxu0 0.0
    %364 = vmatmul.mubr.f32.gmra.mrb[0].mxu0 %v157
    %v365 = vpop.f32.mrb[0].mxu0
    %v366 = vadd.f32 0.0, %v365
    %v367 = vpop.f32.mrb[0].mxu0
    %368 = vdwg.mxu0
    %369 = vmatprep.subr.mxu0 0.0
    %370 = vmatpush1.msra.mxu0 %v136
    %371 = vmatprep.subr.mxu0 0.0
    %372 = vmatpush1.msra.mxu0 %v137
    %373 = vmatprep.subr.mxu0 0.0
    %374 = vmatpush1.msra.mxu0 %v138
    %375 = vmatprep.subr.mxu0 0.0
    %376 = vmatpush1.msra.mxu0 %v139
    %377 = vmatprep.subr.mxu0 0.0
    %378 = vmatpush1.msra.mxu0 0.0
    %379 = vmatprep.subr.mxu0 0.0
    %380 = vmatpush1.msra.mxu0 0.0
    %381 = vmatprep.subr.mxu0 0.0
    %382 = vmatpush1.msra.mxu0 0.0
    %383 = vmatprep.subr.mxu0 0.0
    %384 = vmatpush1.msra.mxu0 0.0
    %385 = vmatprep.subr.mxu0 0.0
    %386 = vmatpush1.msra.mxu0 0.0
    %387 = vmatprep.subr.mxu0 0.0
    %388 = vmatpush1.msra.mxu0 0.0
    %389 = vmatprep.subr.mxu0 0.0
    %390 = vmatpush1.msra.mxu0 0.0
    %391 = vmatprep.subr.mxu0 0.0
    %392 = vmatpush1.msra.mxu0 0.0
    %393 = vmatprep.subr.mxu0 0.0
    %394 = vmatpush1.msra.mxu0 0.0
    %395 = vmatprep.subr.mxu0 0.0
    %396 = vmatpush1.msra.mxu0 0.0
    %397 = vmatprep.subr.mxu0 0.0
    %398 = vmatpush1.msra.mxu0 0.0
    %399 = vmatprep.subr.mxu0 0.0
    %400 = vmatpush1.msra.mxu0 0.0
    %401 = vmatprep.subr.mxu0 0.0
    %402 = vmatpush1.msra.mxu0 0.0
    %403 = vmatprep.subr.mxu0 0.0
    %404 = vmatpush1.msra.mxu0 0.0
    %405 = vmatprep.subr.mxu0 0.0
    %406 = vmatpush1.msra.mxu0 0.0
    %407 = vmatprep.subr.mxu0 0.0
    %408 = vmatpush1.msra.mxu0 0.0
    %409 = vmatprep.subr.mxu0 0.0
    %410 = vmatpush1.msra.mxu0 0.0
    %411 = vmatprep.subr.mxu0 0.0
    %412 = vmatpush1.msra.mxu0 0.0
    %413 = vmatprep.subr.mxu0 0.0
    %414 = vmatpush1.msra.mxu0 0.0
    %415 = vmatprep.subr.mxu0 0.0
    %416 = vmatpush1.msra.mxu0 0.0
    %417 = vmatprep.subr.mxu0 0.0
    %418 = vmatpush1.msra.mxu0 0.0
    %419 = vmatprep.subr.mxu0 0.0
    %420 = vmatpush1.msra.mxu0 0.0
    %421 = vmatprep.subr.mxu0 0.0
    %422 = vmatpush1.msra.mxu0 0.0
    %423 = vmatprep.subr.mxu0 0.0
    %424 = vmatpush1.msra.mxu0 0.0
    %425 = vmatprep.subr.mxu0 0.0
    %426 = vmatpush1.msra.mxu0 0.0
    %427 = vmatprep.subr.mxu0 0.0
    %428 = vmatpush1.msra.mxu0 0.0
    %429 = vmatprep.subr.mxu0 0.0
    %430 = vmatpush1.msra.mxu0 0.0
    %431 = vmatprep.subr.mxu0 0.0
    %432 = vmatpush1.msra.mxu0 0.0
    %433 = vmatprep.mubr.f32.mxu0 0.0
    %434 = vmatmul.mubr.f32.gmra.mrb[0].mxu0 %v157
    %v435 = vpop.f32.mrb[0].mxu0
    %v436 = vadd.f32 0.0, %v435
    %v437 = vpop.f32.mrb[0].mxu0
    %438 = vdwg.mxu0
    %v440 = vsel %vm80, %v123, 0
    %442 = vmatprep.subr.mxu0 0.0
    %443 = vmatpush1.msra.mxu0 %v140
    %444 = vmatprep.subr.mxu0 0.0
    %445 = vmatpush1.msra.mxu0 %v141
    %446 = vmatprep.subr.mxu0 0.0
    %447 = vmatpush1.msra.mxu0 %v142
    %448 = vmatprep.subr.mxu0 0.0
    %449 = vmatpush1.msra.mxu0 %v143
    %450 = vmatprep.subr.mxu0 0.0
    %451 = vmatpush1.msra.mxu0 0.0
    %452 = vmatprep.subr.mxu0 0.0
    %453 = vmatpush1.msra.mxu0 0.0
    %454 = vmatprep.subr.mxu0 0.0
    %455 = vmatpush1.msra.mxu0 0.0
    %456 = vmatprep.subr.mxu0 0.0
    %457 = vmatpush1.msra.mxu0 0.0
    %458 = vmatprep.subr.mxu0 0.0
    %459 = vmatpush1.msra.mxu0 0.0
    %460 = vmatprep.subr.mxu0 0.0
    %461 = vmatpush1.msra.mxu0 0.0
    %462 = vmatprep.subr.mxu0 0.0
    %463 = vmatpush1.msra.mxu0 0.0
    %464 = vmatprep.subr.mxu0 0.0
    %465 = vmatpush1.msra.mxu0 0.0
    %466 = vmatprep.subr.mxu0 0.0
    %467 = vmatpush1.msra.mxu0 0.0
    %468 = vmatprep.subr.mxu0 0.0
    %469 = vmatpush1.msra.mxu0 0.0
    %470 = vmatprep.subr.mxu0 0.0
    %471 = vmatpush1.msra.mxu0 0.0
    %472 = vmatprep.subr.mxu0 0.0
    %473 = vmatpush1.msra.mxu0 0.0
    %474 = vmatprep.subr.mxu0 0.0
    %475 = vmatpush1.msra.mxu0 0.0
    %476 = vmatprep.subr.mxu0 0.0
    %477 = vmatpush1.msra.mxu0 0.0
    %478 = vmatprep.subr.mxu0 0.0
    %479 = vmatpush1.msra.mxu0 0.0
    %480 = vmatprep.subr.mxu0 0.0
    %481 = vmatpush1.msra.mxu0 0.0
    %482 = vmatprep.subr.mxu0 0.0
    %483 = vmatpush1.msra.mxu0 0.0
    %484 = vmatprep.subr.mxu0 0.0
    %485 = vmatpush1.msra.mxu0 0.0
    %486 = vmatprep.subr.mxu0 0.0
    %487 = vmatpush1.msra.mxu0 0.0
    %488 = vmatprep.subr.mxu0 0.0
    %489 = vmatpush1.msra.mxu0 0.0
    %490 = vmatprep.subr.mxu0 0.0
    %491 = vmatpush1.msra.mxu0 0.0
    %492 = vmatprep.subr.mxu0 0.0
    %493 = vmatpush1.msra.mxu0 0.0
    %494 = vmatprep.subr.mxu0 0.0
    %495 = vmatpush1.msra.mxu0 0.0
    %496 = vmatprep.subr.mxu0 0.0
    %497 = vmatpush1.msra.mxu0 0.0
    %498 = vmatprep.subr.mxu0 0.0
    %499 = vmatpush1.msra.mxu0 0.0
    %500 = vmatprep.subr.mxu0 0.0
    %501 = vmatpush1.msra.mxu0 0.0
    %502 = vmatprep.subr.mxu0 0.0
    %503 = vmatpush1.msra.mxu0 0.0
    %504 = vmatprep.subr.mxu0 0.0
    %505 = vmatpush1.msra.mxu0 0.0
    %506 = vmatprep.mubr.f32.mxu0 0.0
    %507 = vmatmul.mubr.f32.gmra.mrb[0].mxu0 %v440
    %v508 = vpop.f32.mrb[0].mxu0
    %v509 = vadd.f32 0.0, %v508
    %v510 = vpop.f32.mrb[0].mxu0
    %511 = vdwg.mxu0
    %512 = vmatprep.subr.mxu0 0.0
    %513 = vmatpush1.msra.mxu0 %v144
    %514 = vmatprep.subr.mxu0 0.0
    %515 = vmatpush1.msra.mxu0 %v145
    %516 = vmatprep.subr.mxu0 0.0
    %517 = vmatpush1.msra.mxu0 %v146
    %518 = vmatprep.subr.mxu0 0.0
    %519 = vmatpush1.msra.mxu0 %v147
    %520 = vmatprep.subr.mxu0 0.0
    %521 = vmatpush1.msra.mxu0 0.0
    %522 = vmatprep.subr.mxu0 0.0
    %523 = vmatpush1.msra.mxu0 0.0
    %524 = vmatprep.subr.mxu0 0.0
    %525 = vmatpush1.msra.mxu0 0.0
    %526 = vmatprep.subr.mxu0 0.0
    %527 = vmatpush1.msra.mxu0 0.0
    %528 = vmatprep.subr.mxu0 0.0
    %529 = vmatpush1.msra.mxu0 0.0
    %530 = vmatprep.subr.mxu0 0.0
    %531 = vmatpush1.msra.mxu0 0.0
    %532 = vmatprep.subr.mxu0 0.0
    %533 = vmatpush1.msra.mxu0 0.0
    %534 = vmatprep.subr.mxu0 0.0
    %535 = vmatpush1.msra.mxu0 0.0
    %536 = vmatprep.subr.mxu0 0.0
    %537 = vmatpush1.msra.mxu0 0.0
    %538 = vmatprep.subr.mxu0 0.0
    %539 = vmatpush1.msra.mxu0 0.0
    %540 = vmatprep.subr.mxu0 0.0
    %541 = vmatpush1.msra.mxu0 0.0
    %542 = vmatprep.subr.mxu0 0.0
    %543 = vmatpush1.msra.mxu0 0.0
    %544 = vmatprep.subr.mxu0 0.0
    %545 = vmatpush1.msra.mxu0 0.0
    %546 = vmatprep.subr.mxu0 0.0
    %547 = vmatpush1.msra.mxu0 0.0
    %548 = vmatprep.subr.mxu0 0.0
    %549 = vmatpush1.msra.mxu0 0.0
    %550 = vmatprep.subr.mxu0 0.0
    %551 = vmatpush1.msra.mxu0 0.0
    %552 = vmatprep.subr.mxu0 0.0
    %553 = vmatpush1.msra.mxu0 0.0
    %554 = vmatprep.subr.mxu0 0.0
    %555 = vmatpush1.msra.mxu0 0.0
    %556 = vmatprep.subr.mxu0 0.0
    %557 = vmatpush1.msra.mxu0 0.0
    %558 = vmatprep.subr.mxu0 0.0
    %559 = vmatpush1.msra.mxu0 0.0
    %560 = vmatprep.subr.mxu0 0.0
    %561 = vmatpush1.msra.mxu0 0.0
    %562 = vmatprep.subr.mxu0 0.0
    %563 = vmatpush1.msra.mxu0 0.0
    %564 = vmatprep.subr.mxu0 0.0
    %565 = vmatpush1.msra.mxu0 0.0
    %566 = vmatprep.subr.mxu0 0.0
    %567 = vmatpush1.msra.mxu0 0.0
    %568 = vmatprep.subr.mxu0 0.0
    %569 = vmatpush1.msra.mxu0 0.0
    %570 = vmatprep.subr.mxu0 0.0
    %571 = vmatpush1.msra.mxu0 0.0
    %572 = vmatprep.subr.mxu0 0.0
    %573 = vmatpush1.msra.mxu0 0.0
    %574 = vmatprep.subr.mxu0 0.0
    %575 = vmatpush1.msra.mxu0 0.0
    %576 = vmatprep.mubr.f32.mxu0 0.0
    %577 = vmatmul.mubr.f32.gmra.mrb[0].mxu0 %v440
    %v578 = vpop.f32.mrb[0].mxu0
    %v579 = vadd.f32 0.0, %v578
    %v580 = vpop.f32.mrb[0].mxu0
    %581 = vdwg.mxu0
    %582 = vmatprep.subr.mxu0 0.0
    %583 = vmatpush1.msra.mxu0 %v148
    %584 = vmatprep.subr.mxu0 0.0
    %585 = vmatpush1.msra.mxu0 %v149
    %586 = vmatprep.subr.mxu0 0.0
    %587 = vmatpush1.msra.mxu0 %v150
    %588 = vmatprep.subr.mxu0 0.0
    %589 = vmatpush1.msra.mxu0 %v151
    %590 = vmatprep.subr.mxu0 0.0
    %591 = vmatpush1.msra.mxu0 0.0
    %592 = vmatprep.subr.mxu0 0.0
    %593 = vmatpush1.msra.mxu0 0.0
    %594 = vmatprep.subr.mxu0 0.0
    %595 = vmatpush1.msra.mxu0 0.0
    %596 = vmatprep.subr.mxu0 0.0
    %597 = vmatpush1.msra.mxu0 0.0
    %598 = vmatprep.subr.mxu0 0.0
    %599 = vmatpush1.msra.mxu0 0.0
    %600 = vmatprep.subr.mxu0 0.0
    %601 = vmatpush1.msra.mxu0 0.0
    %602 = vmatprep.subr.mxu0 0.0
    %603 = vmatpush1.msra.mxu0 0.0
    %604 = vmatprep.subr.mxu0 0.0
    %605 = vmatpush1.msra.mxu0 0.0
    %606 = vmatprep.subr.mxu0 0.0
    %607 = vmatpush1.msra.mxu0 0.0
    %608 = vmatprep.subr.mxu0 0.0
    %609 = vmatpush1.msra.mxu0 0.0
    %610 = vmatprep.subr.mxu0 0.0
    %611 = vmatpush1.msra.mxu0 0.0
    %612 = vmatprep.subr.mxu0 0.0
    %613 = vmatpush1.msra.mxu0 0.0
    %614 = vmatprep.subr.mxu0 0.0
    %615 = vmatpush1.msra.mxu0 0.0
    %616 = vmatprep.subr.mxu0 0.0
    %617 = vmatpush1.msra.mxu0 0.0
    %618 = vmatprep.subr.mxu0 0.0
    %619 = vmatpush1.msra.mxu0 0.0
    %620 = vmatprep.subr.mxu0 0.0
    %621 = vmatpush1.msra.mxu0 0.0
    %622 = vmatprep.subr.mxu0 0.0
    %623 = vmatpush1.msra.mxu0 0.0
    %624 = vmatprep.subr.mxu0 0.0
    %625 = vmatpush1.msra.mxu0 0.0
    %626 = vmatprep.subr.mxu0 0.0
    %627 = vmatpush1.msra.mxu0 0.0
    %628 = vmatprep.subr.mxu0 0.0
    %629 = vmatpush1.msra.mxu0 0.0
    %630 = vmatprep.subr.mxu0 0.0
    %631 = vmatpush1.msra.mxu0 0.0
    %632 = vmatprep.subr.mxu0 0.0
    %633 = vmatpush1.msra.mxu0 0.0
    %634 = vmatprep.subr.mxu0 0.0
    %635 = vmatpush1.msra.mxu0 0.0
    %636 = vmatprep.subr.mxu0 0.0
    %637 = vmatpush1.msra.mxu0 0.0
    %638 = vmatprep.subr.mxu0 0.0
    %639 = vmatpush1.msra.mxu0 0.0
    %640 = vmatprep.subr.mxu0 0.0
    %641 = vmatpush1.msra.mxu0 0.0
    %642 = vmatprep.subr.mxu0 0.0
    %643 = vmatpush1.msra.mxu0 0.0
    %644 = vmatprep.subr.mxu0 0.0
    %645 = vmatpush1.msra.mxu0 0.0
    %646 = vmatprep.mubr.f32.mxu0 0.0
    %647 = vmatmul.mubr.f32.gmra.mrb[0].mxu0 %v440
    %v648 = vpop.f32.mrb[0].mxu0
    %v649 = vadd.f32 0.0, %v648
    %v650 = vpop.f32.mrb[0].mxu0
    %651 = vdwg.mxu0
    %652 = vmatprep.subr.mxu0 0.0
    %653 = vmatpush1.msra.mxu0 %v152
    %654 = vmatprep.subr.mxu0 0.0
    %655 = vmatpush1.msra.mxu0 %v153
    %656 = vmatprep.subr.mxu0 0.0
    %657 = vmatpush1.msra.mxu0 %v154
    %658 = vmatprep.subr.mxu0 0.0
    %659 = vmatpush1.msra.mxu0 %v155
    %660 = vmatprep.subr.mxu0 0.0
    %661 = vmatpush1.msra.mxu0 0.0
    %662 = vmatprep.subr.mxu0 0.0
    %663 = vmatpush1.msra.mxu0 0.0
    %664 = vmatprep.subr.mxu0 0.0
    %665 = vmatpush1.msra.mxu0 0.0
    %666 = vmatprep.subr.mxu0 0.0
    %667 = vmatpush1.msra.mxu0 0.0
    %668 = vmatprep.subr.mxu0 0.0
    %669 = vmatpush1.msra.mxu0 0.0
    %670 = vmatprep.subr.mxu0 0.0
    %671 = vmatpush1.msra.mxu0 0.0
    %672 = vmatprep.subr.mxu0 0.0
    %673 = vmatpush1.msra.mxu0 0.0
    %674 = vmatprep.subr.mxu0 0.0
    %675 = vmatpush1.msra.mxu0 0.0
    %676 = vmatprep.subr.mxu0 0.0
    %677 = vmatpush1.msra.mxu0 0.0
    %678 = vmatprep.subr.mxu0 0.0
    %679 = vmatpush1.msra.mxu0 0.0
    %680 = vmatprep.subr.mxu0 0.0
    %681 = vmatpush1.msra.mxu0 0.0
    %682 = vmatprep.subr.mxu0 0.0
    %683 = vmatpush1.msra.mxu0 0.0
    %684 = vmatprep.subr.mxu0 0.0
    %685 = vmatpush1.msra.mxu0 0.0
    %686 = vmatprep.subr.mxu0 0.0
    %687 = vmatpush1.msra.mxu0 0.0
    %688 = vmatprep.subr.mxu0 0.0
    %689 = vmatpush1.msra.mxu0 0.0
    %690 = vmatprep.subr.mxu0 0.0
    %691 = vmatpush1.msra.mxu0 0.0
    %692 = vmatprep.subr.mxu0 0.0
    %693 = vmatpush1.msra.mxu0 0.0
    %694 = vmatprep.subr.mxu0 0.0
    %695 = vmatpush1.msra.mxu0 0.0
    %696 = vmatprep.subr.mxu0 0.0
    %697 = vmatpush1.msra.mxu0 0.0
    %698 = vmatprep.subr.mxu0 0.0
    %699 = vmatpush1.msra.mxu0 0.0
    %700 = vmatprep.subr.mxu0 0.0
    %701 = vmatpush1.msra.mxu0 0.0
    %702 = vmatprep.subr.mxu0 0.0
    %703 = vmatpush1.msra.mxu0 0.0
    %704 = vmatprep.subr.mxu0 0.0
    %705 = vmatpush1.msra.mxu0 0.0
    %706 = vmatprep.subr.mxu0 0.0
    %707 = vmatpush1.msra.mxu0 0.0
    %708 = vmatprep.subr.mxu0 0.0
    %709 = vmatpush1.msra.mxu0 0.0
    %710 = vmatprep.subr.mxu0 0.0
    %711 = vmatpush1.msra.mxu0 0.0
    %712 = vmatprep.subr.mxu0 0.0
    %713 = vmatpush1.msra.mxu0 0.0
    %714 = vmatprep.subr.mxu0 0.0
    %715 = vmatpush1.msra.mxu0 0.0
    %716 = vmatprep.mubr.f32.mxu0 0.0
    %717 = vmatmul.mubr.f32.gmra.mrb[0].mxu0 %v440
    %v718 = vpop.f32.mrb[0].mxu0
    %v719 = vadd.f32 0.0, %v718
    %v720 = vpop.f32.mrb[0].mxu0
    %721 = vdwg.mxu0
    %v723 = vsel %vm80, %v226, 0
    %725 = vmatprep.subr.mxu0 0.0
    %726 = vmatpush1.xpose.msra.mxu0 %v157
    %727 = vmatprep.subr.mxu0 0.0
    %728 = vmatpush1.xpose.msra.mxu0 0.0
    %729 = vmatprep.subr.mxu0 0.0
    %730 = vmatpush1.xpose.msra.mxu0 0.0
    %731 = vmatprep.subr.mxu0 0.0
    %732 = vmatpush1.xpose.msra.mxu0 0.0
    %733 = vmatprep.subr.mxu0 0.0
    %734 = vmatpush1.xpose.msra.mxu0 0.0
    %735 = vmatprep.subr.mxu0 0.0
    %736 = vmatpush1.xpose.msra.mxu0 0.0
    %737 = vmatprep.subr.mxu0 0.0
    %738 = vmatpush1.xpose.msra.mxu0 0.0
    %739 = vmatprep.subr.mxu0 0.0
    %740 = vmatpush1.xpose.msra.mxu0 0.0
    %741 = vmatprep.subr.mxu0 0.0
    %742 = vmatpush1.xpose.msra.mxu0 0.0
    %743 = vmatprep.subr.mxu0 0.0
    %744 = vmatpush1.xpose.msra.mxu0 0.0
    %745 = vmatprep.subr.mxu0 0.0
    %746 = vmatpush1.xpose.msra.mxu0 0.0
    %747 = vmatprep.subr.mxu0 0.0
    %748 = vmatpush1.xpose.msra.mxu0 0.0
    %749 = vmatprep.subr.mxu0 0.0
    %750 = vmatpush1.xpose.msra.mxu0 0.0
    %751 = vmatprep.subr.mxu0 0.0
    %752 = vmatpush1.xpose.msra.mxu0 0.0
    %753 = vmatprep.subr.mxu0 0.0
    %754 = vmatpush1.xpose.msra.mxu0 0.0
    %755 = vmatprep.subr.mxu0 0.0
    %756 = vmatpush1.xpose.msra.mxu0 0.0
    %757 = vmatprep.subr.mxu0 0.0
    %758 = vmatpush1.xpose.msra.mxu0 0.0
    %759 = vmatprep.subr.mxu0 0.0
    %760 = vmatpush1.xpose.msra.mxu0 0.0
    %761 = vmatprep.subr.mxu0 0.0
    %762 = vmatpush1.xpose.msra.mxu0 0.0
    %763 = vmatprep.subr.mxu0 0.0
    %764 = vmatpush1.xpose.msra.mxu0 0.0
    %765 = vmatprep.subr.mxu0 0.0
    %766 = vmatpush1.xpose.msra.mxu0 0.0
    %767 = vmatprep.subr.mxu0 0.0
    %768 = vmatpush1.xpose.msra.mxu0 0.0
    %769 = vmatprep.subr.mxu0 0.0
    %770 = vmatpush1.xpose.msra.mxu0 0.0
    %771 = vmatprep.subr.mxu0 0.0
    %772 = vmatpush1.xpose.msra.mxu0 0.0
    %773 = vmatprep.subr.mxu0 0.0
    %774 = vmatpush1.xpose.msra.mxu0 0.0
    %775 = vmatprep.subr.mxu0 0.0
    %776 = vmatpush1.xpose.msra.mxu0 0.0
    %777 = vmatprep.subr.mxu0 0.0
    %778 = vmatpush1.xpose.msra.mxu0 0.0
    %779 = vmatprep.subr.mxu0 0.0
    %780 = vmatpush1.xpose.msra.mxu0 0.0
    %781 = vmatprep.subr.mxu0 0.0
    %782 = vmatpush1.xpose.msra.mxu0 0.0
    %783 = vmatprep.subr.mxu0 0.0
    %784 = vmatpush1.xpose.msra.mxu0 0.0
    %785 = vmatprep.subr.mxu0 0.0
    %786 = vmatpush1.xpose.msra.mxu0 0.0
    %787 = vmatprep.subr.mxu0 0.0
    %788 = vmatpush1.xpose.msra.mxu0 0.0
    %789 = vmatprep.mubr.f32.mxu0 0.0
    %790 = vmatmul.mubr.f32.gmra.mrb[0].mxu0 %v723
    %v791 = vpop.f32.mrb[0].mxu0
    %v792 = vadd.f32 0.0, %v791
    %v793 = vpop.f32.mrb[0].mxu0
    %794 = vdwg.mxu0
    %v796 = vsel %vm80, %v296, 0
    %798 = vmatprep.subr.mxu0 0.0
    %799 = vmatpush1.xpose.msra.mxu0 %v157
    %800 = vmatprep.subr.mxu0 0.0
    %801 = vmatpush1.xpose.msra.mxu0 0.0
    %802 = vmatprep.subr.mxu0 0.0
    %803 = vmatpush1.xpose.msra.mxu0 0.0
    %804 = vmatprep.subr.mxu0 0.0
    %805 = vmatpush1.xpose.msra.mxu0 0.0
    %806 = vmatprep.subr.mxu0 0.0
    %807 = vmatpush1.xpose.msra.mxu0 0.0
    %808 = vmatprep.subr.mxu0 0.0
    %809 = vmatpush1.xpose.msra.mxu0 0.0
    %810 = vmatprep.subr.mxu0 0.0
    %811 = vmatpush1.xpose.msra.mxu0 0.0
    %812 = vmatprep.subr.mxu0 0.0
    %813 = vmatpush1.xpose.msra.mxu0 0.0
    %814 = vmatprep.subr.mxu0 0.0
    %815 = vmatpush1.xpose.msra.mxu0 0.0
    %816 = vmatprep.subr.mxu0 0.0
    %817 = vmatpush1.xpose.msra.mxu0 0.0
    %818 = vmatprep.subr.mxu0 0.0
    %819 = vmatpush1.xpose.msra.mxu0 0.0
    %820 = vmatprep.subr.mxu0 0.0
    %821 = vmatpush1.xpose.msra.mxu0 0.0
    %822 = vmatprep.subr.mxu0 0.0
    %823 = vmatpush1.xpose.msra.mxu0 0.0
    %824 = vmatprep.subr.mxu0 0.0
    %825 = vmatpush1.xpose.msra.mxu0 0.0
    %826 = vmatprep.subr.mxu0 0.0
    %827 = vmatpush1.xpose.msra.mxu0 0.0
    %828 = vmatprep.subr.mxu0 0.0
    %829 = vmatpush1.xpose.msra.mxu0 0.0
    %830 = vmatprep.subr.mxu0 0.0
    %831 = vmatpush1.xpose.msra.mxu0 0.0
    %832 = vmatprep.subr.mxu0 0.0
    %833 = vmatpush1.xpose.msra.mxu0 0.0
    %834 = vmatprep.subr.mxu0 0.0
    %835 = vmatpush1.xpose.msra.mxu0 0.0
    %836 = vmatprep.subr.mxu0 0.0
    %837 = vmatpush1.xpose.msra.mxu0 0.0
    %838 = vmatprep.subr.mxu0 0.0
    %839 = vmatpush1.xpose.msra.mxu0 0.0
    %840 = vmatprep.subr.mxu0 0.0
    %841 = vmatpush1.xpose.msra.mxu0 0.0
    %842 = vmatprep.subr.mxu0 0.0
    %843 = vmatpush1.xpose.msra.mxu0 0.0
    %844 = vmatprep.subr.mxu0 0.0
    %845 = vmatpush1.xpose.msra.mxu0 0.0
    %846 = vmatprep.subr.mxu0 0.0
    %847 = vmatpush1.xpose.msra.mxu0 0.0
    %848 = vmatprep.subr.mxu0 0.0
    %849 = vmatpush1.xpose.msra.mxu0 0.0
    %850 = vmatprep.subr.mxu0 0.0
    %851 = vmatpush1.xpose.msra.mxu0 0.0
    %852 = vmatprep.subr.mxu0 0.0
    %853 = vmatpush1.xpose.msra.mxu0 0.0
    %854 = vmatprep.subr.mxu0 0.0
    %855 = vmatpush1.xpose.msra.mxu0 0.0
    %856 = vmatprep.subr.mxu0 0.0
    %857 = vmatpush1.xpose.msra.mxu0 0.0
    %858 = vmatprep.subr.mxu0 0.0
    %859 = vmatpush1.xpose.msra.mxu0 0.0
    %860 = vmatprep.subr.mxu0 0.0
    %861 = vmatpush1.xpose.msra.mxu0 0.0
    %862 = vmatprep.mubr.f32.mxu0 0.0
    %863 = vmatmul.mubr.f32.gmra.mrb[0].mxu0 %v796
    %v864 = vpop.f32.mrb[0].mxu0
    %v865 = vadd.f32 0.0, %v864
    %v866 = vpop.f32.mrb[0].mxu0
    %867 = vdwg.mxu0
    %v869 = vsel %vm80, %v366, 0
    %871 = vmatprep.subr.mxu0 0.0
    %872 = vmatpush1.xpose.msra.mxu0 %v157
    %873 = vmatprep.subr.mxu0 0.0
    %874 = vmatpush1.xpose.msra.mxu0 0.0
    %875 = vmatprep.subr.mxu0 0.0
    %876 = vmatpush1.xpose.msra.mxu0 0.0
    %877 = vmatprep.subr.mxu0 0.0
    %878 = vmatpush1.xpose.msra.mxu0 0.0
    %879 = vmatprep.subr.mxu0 0.0
    %880 = vmatpush1.xpose.msra.mxu0 0.0
    %881 = vmatprep.subr.mxu0 0.0
    %882 = vmatpush1.xpose.msra.mxu0 0.0
    %883 = vmatprep.subr.mxu0 0.0
    %884 = vmatpush1.xpose.msra.mxu0 0.0
    %885 = vmatprep.subr.mxu0 0.0
    %886 = vmatpush1.xpose.msra.mxu0 0.0
    %887 = vmatprep.subr.mxu0 0.0
    %888 = vmatpush1.xpose.msra.mxu0 0.0
    %889 = vmatprep.subr.mxu0 0.0
    %890 = vmatpush1.xpose.msra.mxu0 0.0
    %891 = vmatprep.subr.mxu0 0.0
    %892 = vmatpush1.xpose.msra.mxu0 0.0
    %893 = vmatprep.subr.mxu0 0.0
    %894 = vmatpush1.xpose.msra.mxu0 0.0
    %895 = vmatprep.subr.mxu0 0.0
    %896 = vmatpush1.xpose.msra.mxu0 0.0
    %897 = vmatprep.subr.mxu0 0.0
    %898 = vmatpush1.xpose.msra.mxu0 0.0
    %899 = vmatprep.subr.mxu0 0.0
    %900 = vmatpush1.xpose.msra.mxu0 0.0
    %901 = vmatprep.subr.mxu0 0.0
    %902 = vmatpush1.xpose.msra.mxu0 0.0
    %903 = vmatprep.subr.mxu0 0.0
    %904 = vmatpush1.xpose.msra.mxu0 0.0
    %905 = vmatprep.subr.mxu0 0.0
    %906 = vmatpush1.xpose.msra.mxu0 0.0
    %907 = vmatprep.subr.mxu0 0.0
    %908 = vmatpush1.xpose.msra.mxu0 0.0
    %909 = vmatprep.subr.mxu0 0.0
    %910 = vmatpush1.xpose.msra.mxu0 0.0
    %911 = vmatprep.subr.mxu0 0.0
    %912 = vmatpush1.xpose.msra.mxu0 0.0
    %913 = vmatprep.subr.mxu0 0.0
    %914 = vmatpush1.xpose.msra.mxu0 0.0
    %915 = vmatprep.subr.mxu0 0.0
    %916 = vmatpush1.xpose.msra.mxu0 0.0
    %917 = vmatprep.subr.mxu0 0.0
    %918 = vmatpush1.xpose.msra.mxu0 0.0
    %919 = vmatprep.subr.mxu0 0.0
    %920 = vmatpush1.xpose.msra.mxu0 0.0
    %921 = vmatprep.subr.mxu0 0.0
    %922 = vmatpush1.xpose.msra.mxu0 0.0
    %923 = vmatprep.subr.mxu0 0.0
    %924 = vmatpush1.xpose.msra.mxu0 0.0
    %925 = vmatprep.subr.mxu0 0.0
    %926 = vmatpush1.xpose.msra.mxu0 0.0
    %927 = vmatprep.subr.mxu0 0.0
    %928 = vmatpush1.xpose.msra.mxu0 0.0
    %929 = vmatprep.subr.mxu0 0.0
    %930 = vmatpush1.xpose.msra.mxu0 0.0
    %931 = vmatprep.subr.mxu0 0.0
    %932 = vmatpush1.xpose.msra.mxu0 0.0
    %933 = vmatprep.subr.mxu0 0.0
    %934 = vmatpush1.xpose.msra.mxu0 0.0
    %935 = vmatprep.mubr.f32.mxu0 0.0
    %936 = vmatmul.mubr.f32.gmra.mrb[0].mxu0 %v869
    %v937 = vpop.f32.mrb[0].mxu0
    %v938 = vadd.f32 0.0, %v937
    %v939 = vpop.f32.mrb[0].mxu0
    %940 = vdwg.mxu0
    %v942 = vsel %vm80, %v436, 0
    %944 = vmatprep.subr.mxu0 0.0
    %945 = vmatpush1.xpose.msra.mxu0 %v157
    %946 = vmatprep.subr.mxu0 0.0
    %947 = vmatpush1.xpose.msra.mxu0 0.0
    %948 = vmatprep.subr.mxu0 0.0
    %949 = vmatpush1.xpose.msra.mxu0 0.0
    %950 = vmatprep.subr.mxu0 0.0
    %951 = vmatpush1.xpose.msra.mxu0 0.0
    %952 = vmatprep.subr.mxu0 0.0
    %953 = vmatpush1.xpose.msra.mxu0 0.0
    %954 = vmatprep.subr.mxu0 0.0
    %955 = vmatpush1.xpose.msra.mxu0 0.0
    %956 = vmatprep.subr.mxu0 0.0
    %957 = vmatpush1.xpose.msra.mxu0 0.0
    %958 = vmatprep.subr.mxu0 0.0
    %959 = vmatpush1.xpose.msra.mxu0 0.0
    %960 = vmatprep.subr.mxu0 0.0
    %961 = vmatpush1.xpose.msra.mxu0 0.0
    %962 = vmatprep.subr.mxu0 0.0
    %963 = vmatpush1.xpose.msra.mxu0 0.0
    %964 = vmatprep.subr.mxu0 0.0
    %965 = vmatpush1.xpose.msra.mxu0 0.0
    %966 = vmatprep.subr.mxu0 0.0
    %967 = vmatpush1.xpose.msra.mxu0 0.0
    %968 = vmatprep.subr.mxu0 0.0
    %969 = vmatpush1.xpose.msra.mxu0 0.0
    %970 = vmatprep.subr.mxu0 0.0
    %971 = vmatpush1.xpose.msra.mxu0 0.0
    %972 = vmatprep.subr.mxu0 0.0
    %973 = vmatpush1.xpose.msra.mxu0 0.0
    %974 = vmatprep.subr.mxu0 0.0
    %975 = vmatpush1.xpose.msra.mxu0 0.0
    %976 = vmatprep.subr.mxu0 0.0
    %977 = vmatpush1.xpose.msra.mxu0 0.0
    %978 = vmatprep.subr.mxu0 0.0
    %979 = vmatpush1.xpose.msra.mxu0 0.0
    %980 = vmatprep.subr.mxu0 0.0
    %981 = vmatpush1.xpose.msra.mxu0 0.0
    %982 = vmatprep.subr.mxu0 0.0
    %983 = vmatpush1.xpose.msra.mxu0 0.0
    %984 = vmatprep.subr.mxu0 0.0
    %985 = vmatpush1.xpose.msra.mxu0 0.0
    %986 = vmatprep.subr.mxu0 0.0
    %987 = vmatpush1.xpose.msra.mxu0 0.0
    %988 = vmatprep.subr.mxu0 0.0
    %989 = vmatpush1.xpose.msra.mxu0 0.0
    %990 = vmatprep.subr.mxu0 0.0
    %991 = vmatpush1.xpose.msra.mxu0 0.0
    %992 = vmatprep.subr.mxu0 0.0
    %993 = vmatpush1.xpose.msra.mxu0 0.0
    %994 = vmatprep.subr.mxu0 0.0
    %995 = vmatpush1.xpose.msra.mxu0 0.0
    %996 = vmatprep.subr.mxu0 0.0
    %997 = vmatpush1.xpose.msra.mxu0 0.0
    %998 = vmatprep.subr.mxu0 0.0
    %999 = vmatpush1.xpose.msra.mxu0 0.0
    %1000 = vmatprep.subr.mxu0 0.0
    %1001 = vmatpush1.xpose.msra.mxu0 0.0
    %1002 = vmatprep.subr.mxu0 0.0
    %1003 = vmatpush1.xpose.msra.mxu0 0.0
    %1004 = vmatprep.subr.mxu0 0.0
    %1005 = vmatpush1.xpose.msra.mxu0 0.0
    %1006 = vmatprep.subr.mxu0 0.0
    %1007 = vmatpush1.xpose.msra.mxu0 0.0
    %1008 = vmatprep.mubr.f32.mxu0 0.0
    %1009 = vmatmul.mubr.f32.gmra.mrb[0].mxu0 %v942
    %v1010 = vpop.f32.mrb[0].mxu0
    %v1011 = vadd.f32 0.0, %v1010
    %v1012 = vpop.f32.mrb[0].mxu0
    %1013 = vdwg.mxu0
    %v1015 = vsel %vm80, %v509, 0
    %1017 = vmatprep.subr.mxu0 0.0
    %1018 = vmatpush1.xpose.msra.mxu0 %v440
    %1019 = vmatprep.subr.mxu0 0.0
    %1020 = vmatpush1.xpose.msra.mxu0 0.0
    %1021 = vmatprep.subr.mxu0 0.0
    %1022 = vmatpush1.xpose.msra.mxu0 0.0
    %1023 = vmatprep.subr.mxu0 0.0
    %1024 = vmatpush1.xpose.msra.mxu0 0.0
    %1025 = vmatprep.subr.mxu0 0.0
    %1026 = vmatpush1.xpose.msra.mxu0 0.0
    %1027 = vmatprep.subr.mxu0 0.0
    %1028 = vmatpush1.xpose.msra.mxu0 0.0
    %1029 = vmatprep.subr.mxu0 0.0
    %1030 = vmatpush1.xpose.msra.mxu0 0.0
    %1031 = vmatprep.subr.mxu0 0.0
    %1032 = vmatpush1.xpose.msra.mxu0 0.0
    %1033 = vmatprep.subr.mxu0 0.0
    %1034 = vmatpush1.xpose.msra.mxu0 0.0
    %1035 = vmatprep.subr.mxu0 0.0
    %1036 = vmatpush1.xpose.msra.mxu0 0.0
    %1037 = vmatprep.subr.mxu0 0.0
    %1038 = vmatpush1.xpose.msra.mxu0 0.0
    %1039 = vmatprep.subr.mxu0 0.0
    %1040 = vmatpush1.xpose.msra.mxu0 0.0
    %1041 = vmatprep.subr.mxu0 0.0
    %1042 = vmatpush1.xpose.msra.mxu0 0.0
    %1043 = vmatprep.subr.mxu0 0.0
    %1044 = vmatpush1.xpose.msra.mxu0 0.0
    %1045 = vmatprep.subr.mxu0 0.0
    %1046 = vmatpush1.xpose.msra.mxu0 0.0
    %1047 = vmatprep.subr.mxu0 0.0
    %1048 = vmatpush1.xpose.msra.mxu0 0.0
    %1049 = vmatprep.subr.mxu0 0.0
    %1050 = vmatpush1.xpose.msra.mxu0 0.0
    %1051 = vmatprep.subr.mxu0 0.0
    %1052 = vmatpush1.xpose.msra.mxu0 0.0
    %1053 = vmatprep.subr.mxu0 0.0
    %1054 = vmatpush1.xpose.msra.mxu0 0.0
    %1055 = vmatprep.subr.mxu0 0.0
    %1056 = vmatpush1.xpose.msra.mxu0 0.0
    %1057 = vmatprep.subr.mxu0 0.0
    %1058 = vmatpush1.xpose.msra.mxu0 0.0
    %1059 = vmatprep.subr.mxu0 0.0
    %1060 = vmatpush1.xpose.msra.mxu0 0.0
    %1061 = vmatprep.subr.mxu0 0.0
    %1062 = vmatpush1.xpose.msra.mxu0 0.0
    %1063 = vmatprep.subr.mxu0 0.0
    %1064 = vmatpush1.xpose.msra.mxu0 0.0
    %1065 = vmatprep.subr.mxu0 0.0
    %1066 = vmatpush1.xpose.msra.mxu0 0.0
    %1067 = vmatprep.subr.mxu0 0.0
    %1068 = vmatpush1.xpose.msra.mxu0 0.0
    %1069 = vmatprep.subr.mxu0 0.0
    %1070 = vmatpush1.xpose.msra.mxu0 0.0
    %1071 = vmatprep.subr.mxu0 0.0
    %1072 = vmatpush1.xpose.msra.mxu0 0.0
    %1073 = vmatprep.subr.mxu0 0.0
    %1074 = vmatpush1.xpose.msra.mxu0 0.0
    %1075 = vmatprep.subr.mxu0 0.0
    %1076 = vmatpush1.xpose.msra.mxu0 0.0
    %1077 = vmatprep.subr.mxu0 0.0
    %1078 = vmatpush1.xpose.msra.mxu0 0.0
    %1079 = vmatprep.subr.mxu0 0.0
    %1080 = vmatpush1.xpose.msra.mxu0 0.0
    %1081 = vmatprep.mubr.f32.mxu0 0.0
    %1082 = vmatmul.mubr.f32.gmra.mrb[0].mxu0 %v1015
    %v1083 = vpop.f32.mrb[0].mxu0
    %v1084 = vadd.f32 0.0, %v1083
    %v1085 = vpop.f32.mrb[0].mxu0
    %1086 = vdwg.mxu0
    %v1088 = vsel %vm80, %v579, 0
    %1090 = vmatprep.subr.mxu0 0.0
    %1091 = vmatpush1.xpose.msra.mxu0 %v440
    %1092 = vmatprep.subr.mxu0 0.0
    %1093 = vmatpush1.xpose.msra.mxu0 0.0
    %1094 = vmatprep.subr.mxu0 0.0
    %1095 = vmatpush1.xpose.msra.mxu0 0.0
    %1096 = vmatprep.subr.mxu0 0.0
    %1097 = vmatpush1.xpose.msra.mxu0 0.0
    %1098 = vmatprep.subr.mxu0 0.0
    %1099 = vmatpush1.xpose.msra.mxu0 0.0
    %1100 = vmatprep.subr.mxu0 0.0
    %1101 = vmatpush1.xpose.msra.mxu0 0.0
    %1102 = vmatprep.subr.mxu0 0.0
    %1103 = vmatpush1.xpose.msra.mxu0 0.0
    %1104 = vmatprep.subr.mxu0 0.0
    %1105 = vmatpush1.xpose.msra.mxu0 0.0
    %1106 = vmatprep.subr.mxu0 0.0
    %1107 = vmatpush1.xpose.msra.mxu0 0.0
    %1108 = vmatprep.subr.mxu0 0.0
    %1109 = vmatpush1.xpose.msra.mxu0 0.0
    %1110 = vmatprep.subr.mxu0 0.0
    %1111 = vmatpush1.xpose.msra.mxu0 0.0
    %1112 = vmatprep.subr.mxu0 0.0
    %1113 = vmatpush1.xpose.msra.mxu0 0.0
    %1114 = vmatprep.subr.mxu0 0.0
    %1115 = vmatpush1.xpose.msra.mxu0 0.0
    %1116 = vmatprep.subr.mxu0 0.0
    %1117 = vmatpush1.xpose.msra.mxu0 0.0
    %1118 = vmatprep.subr.mxu0 0.0
    %1119 = vmatpush1.xpose.msra.mxu0 0.0
    %1120 = vmatprep.subr.mxu0 0.0
    %1121 = vmatpush1.xpose.msra.mxu0 0.0
    %1122 = vmatprep.subr.mxu0 0.0
    %1123 = vmatpush1.xpose.msra.mxu0 0.0
    %1124 = vmatprep.subr.mxu0 0.0
    %1125 = vmatpush1.xpose.msra.mxu0 0.0
    %1126 = vmatprep.subr.mxu0 0.0
    %1127 = vmatpush1.xpose.msra.mxu0 0.0
    %1128 = vmatprep.subr.mxu0 0.0
    %1129 = vmatpush1.xpose.msra.mxu0 0.0
    %1130 = vmatprep.subr.mxu0 0.0
    %1131 = vmatpush1.xpose.msra.mxu0 0.0
    %1132 = vmatprep.subr.mxu0 0.0
    %1133 = vmatpush1.xpose.msra.mxu0 0.0
    %1134 = vmatprep.subr.mxu0 0.0
    %1135 = vmatpush1.xpose.msra.mxu0 0.0
    %1136 = vmatprep.subr.mxu0 0.0
    %1137 = vmatpush1.xpose.msra.mxu0 0.0
    %1138 = vmatprep.subr.mxu0 0.0
    %1139 = vmatpush1.xpose.msra.mxu0 0.0
    %1140 = vmatprep.subr.mxu0 0.0
    %1141 = vmatpush1.xpose.msra.mxu0 0.0
    %1142 = vmatprep.subr.mxu0 0.0
    %1143 = vmatpush1.xpose.msra.mxu0 0.0
    %1144 = vmatprep.subr.mxu0 0.0
    %1145 = vmatpush1.xpose.msra.mxu0 0.0
    %1146 = vmatprep.subr.mxu0 0.0
    %1147 = vmatpush1.xpose.msra.mxu0 0.0
    %1148 = vmatprep.subr.mxu0 0.0
    %1149 = vmatpush1.xpose.msra.mxu0 0.0
    %1150 = vmatprep.subr.mxu0 0.0
    %1151 = vmatpush1.xpose.msra.mxu0 0.0
    %1152 = vmatprep.subr.mxu0 0.0
    %1153 = vmatpush1.xpose.msra.mxu0 0.0
    %1154 = vmatprep.mubr.f32.mxu0 0.0
    %1155 = vmatmul.mubr.f32.gmra.mrb[0].mxu0 %v1088
    %v1156 = vpop.f32.mrb[0].mxu0
    %v1157 = vadd.f32 0.0, %v1156
    %v1158 = vpop.f32.mrb[0].mxu0
    %1159 = vdwg.mxu0
    %v1161 = vsel %vm80, %v649, 0
    %1163 = vmatprep.subr.mxu0 0.0
    %1164 = vmatpush1.xpose.msra.mxu0 %v440
    %1165 = vmatprep.subr.mxu0 0.0
    %1166 = vmatpush1.xpose.msra.mxu0 0.0
    %1167 = vmatprep.subr.mxu0 0.0
    %1168 = vmatpush1.xpose.msra.mxu0 0.0
    %1169 = vmatprep.subr.mxu0 0.0
    %1170 = vmatpush1.xpose.msra.mxu0 0.0
    %1171 = vmatprep.subr.mxu0 0.0
    %1172 = vmatpush1.xpose.msra.mxu0 0.0
    %1173 = vmatprep.subr.mxu0 0.0
    %1174 = vmatpush1.xpose.msra.mxu0 0.0
    %1175 = vmatprep.subr.mxu0 0.0
    %1176 = vmatpush1.xpose.msra.mxu0 0.0
    %1177 = vmatprep.subr.mxu0 0.0
    %1178 = vmatpush1.xpose.msra.mxu0 0.0
    %1179 = vmatprep.subr.mxu0 0.0
    %1180 = vmatpush1.xpose.msra.mxu0 0.0
    %1181 = vmatprep.subr.mxu0 0.0
    %1182 = vmatpush1.xpose.msra.mxu0 0.0
    %1183 = vmatprep.subr.mxu0 0.0
    %1184 = vmatpush1.xpose.msra.mxu0 0.0
    %1185 = vmatprep.subr.mxu0 0.0
    %1186 = vmatpush1.xpose.msra.mxu0 0.0
    %1187 = vmatprep.subr.mxu0 0.0
    %1188 = vmatpush1.xpose.msra.mxu0 0.0
    %1189 = vmatprep.subr.mxu0 0.0
    %1190 = vmatpush1.xpose.msra.mxu0 0.0
    %1191 = vmatprep.subr.mxu0 0.0
    %1192 = vmatpush1.xpose.msra.mxu0 0.0
    %1193 = vmatprep.subr.mxu0 0.0
    %1194 = vmatpush1.xpose.msra.mxu0 0.0
    %1195 = vmatprep.subr.mxu0 0.0
    %1196 = vmatpush1.xpose.msra.mxu0 0.0
    %1197 = vmatprep.subr.mxu0 0.0
    %1198 = vmatpush1.xpose.msra.mxu0 0.0
    %1199 = vmatprep.subr.mxu0 0.0
    %1200 = vmatpush1.xpose.msra.mxu0 0.0
    %1201 = vmatprep.subr.mxu0 0.0
    %1202 = vmatpush1.xpose.msra.mxu0 0.0
    %1203 = vmatprep.subr.mxu0 0.0
    %1204 = vmatpush1.xpose.msra.mxu0 0.0
    %1205 = vmatprep.subr.mxu0 0.0
    %1206 = vmatpush1.xpose.msra.mxu0 0.0
    %1207 = vmatprep.subr.mxu0 0.0
    %1208 = vmatpush1.xpose.msra.mxu0 0.0
    %1209 = vmatprep.subr.mxu0 0.0
    %1210 = vmatpush1.xpose.msra.mxu0 0.0
    %1211 = vmatprep.subr.mxu0 0.0
    %1212 = vmatpush1.xpose.msra.mxu0 0.0
    %1213 = vmatprep.subr.mxu0 0.0
    %1214 = vmatpush1.xpose.msra.mxu0 0.0
    %1215 = vmatprep.subr.mxu0 0.0
    %1216 = vmatpush1.xpose.msra.mxu0 0.0
    %1217 = vmatprep.subr.mxu0 0.0
    %1218 = vmatpush1.xpose.msra.mxu0 0.0
    %1219 = vmatprep.subr.mxu0 0.0
    %1220 = vmatpush1.xpose.msra.mxu0 0.0
    %1221 = vmatprep.subr.mxu0 0.0
    %1222 = vmatpush1.xpose.msra.mxu0 0.0
    %1223 = vmatprep.subr.mxu0 0.0
    %1224 = vmatpush1.xpose.msra.mxu0 0.0
    %1225 = vmatprep.subr.mxu0 0.0
    %1226 = vmatpush1.xpose.msra.mxu0 0.0
    %1227 = vmatprep.mubr.f32.mxu0 0.0
    %1228 = vmatmul.mubr.f32.gmra.mrb[0].mxu0 %v1161
    %v1229 = vpop.f32.mrb[0].mxu0
    %v1230 = vadd.f32 0.0, %v1229
    %v1231 = vpop.f32.mrb[0].mxu0
    %1232 = vdwg.mxu0
    %v1234 = vsel %vm80, %v719, 0
    %1236 = vmatprep.subr.mxu0 0.0
    %1237 = vmatpush1.xpose.msra.mxu0 %v440
    %1238 = vmatprep.subr.mxu0 0.0
    %1239 = vmatpush1.xpose.msra.mxu0 0.0
    %1240 = vmatprep.subr.mxu0 0.0
    %1241 = vmatpush1.xpose.msra.mxu0 0.0
    %1242 = vmatprep.subr.mxu0 0.0
    %1243 = vmatpush1.xpose.msra.mxu0 0.0
    %1244 = vmatprep.subr.mxu0 0.0
    %1245 = vmatpush1.xpose.msra.mxu0 0.0
    %1246 = vmatprep.subr.mxu0 0.0
    %1247 = vmatpush1.xpose.msra.mxu0 0.0
    %1248 = vmatprep.subr.mxu0 0.0
    %1249 = vmatpush1.xpose.msra.mxu0 0.0
    %1250 = vmatprep.subr.mxu0 0.0
    %1251 = vmatpush1.xpose.msra.mxu0 0.0
    %1252 = vmatprep.subr.mxu0 0.0
    %1253 = vmatpush1.xpose.msra.mxu0 0.0
    %1254 = vmatprep.subr.mxu0 0.0
    %1255 = vmatpush1.xpose.msra.mxu0 0.0
    %1256 = vmatprep.subr.mxu0 0.0
    %1257 = vmatpush1.xpose.msra.mxu0 0.0
    %1258 = vmatprep.subr.mxu0 0.0
    %1259 = vmatpush1.xpose.msra.mxu0 0.0
    %1260 = vmatprep.subr.mxu0 0.0
    %1261 = vmatpush1.xpose.msra.mxu0 0.0
    %1262 = vmatprep.subr.mxu0 0.0
    %1263 = vmatpush1.xpose.msra.mxu0 0.0
    %1264 = vmatprep.subr.mxu0 0.0
    %1265 = vmatpush1.xpose.msra.mxu0 0.0
    %1266 = vmatprep.subr.mxu0 0.0
    %1267 = vmatpush1.xpose.msra.mxu0 0.0
    %1268 = vmatprep.subr.mxu0 0.0
    %1269 = vmatpush1.xpose.msra.mxu0 0.0
    %1270 = vmatprep.subr.mxu0 0.0
    %1271 = vmatpush1.xpose.msra.mxu0 0.0
    %1272 = vmatprep.subr.mxu0 0.0
    %1273 = vmatpush1.xpose.msra.mxu0 0.0
    %1274 = vmatprep.subr.mxu0 0.0
    %1275 = vmatpush1.xpose.msra.mxu0 0.0
    %1276 = vmatprep.subr.mxu0 0.0
    %1277 = vmatpush1.xpose.msra.mxu0 0.0
    %1278 = vmatprep.subr.mxu0 0.0
    %1279 = vmatpush1.xpose.msra.mxu0 0.0
    %1280 = vmatprep.subr.mxu0 0.0
    %1281 = vmatpush1.xpose.msra.mxu0 0.0
    %1282 = vmatprep.subr.mxu0 0.0
    %1283 = vmatpush1.xpose.msra.mxu0 0.0
    %1284 = vmatprep.subr.mxu0 0.0
    %1285 = vmatpush1.xpose.msra.mxu0 0.0
    %1286 = vmatprep.subr.mxu0 0.0
    %1287 = vmatpush1.xpose.msra.mxu0 0.0
    %1288 = vmatprep.subr.mxu0 0.0
    %1289 = vmatpush1.xpose.msra.mxu0 0.0
    %1290 = vmatprep.subr.mxu0 0.0
    %1291 = vmatpush1.xpose.msra.mxu0 0.0
    %1292 = vmatprep.subr.mxu0 0.0
    %1293 = vmatpush1.xpose.msra.mxu0 0.0
    %1294 = vmatprep.subr.mxu0 0.0
    %1295 = vmatpush1.xpose.msra.mxu0 0.0
    %1296 = vmatprep.subr.mxu0 0.0
    %1297 = vmatpush1.xpose.msra.mxu0 0.0
    %1298 = vmatprep.subr.mxu0 0.0
    %1299 = vmatpush1.xpose.msra.mxu0 0.0
    %1300 = vmatprep.mubr.f32.mxu0 0.0
    %1301 = vmatmul.mubr.f32.gmra.mrb[0].mxu0 %v1234
    %v1302 = vpop.f32.mrb[0].mxu0
    %v1303 = vadd.f32 0.0, %v1302
    %v1304 = vpop.f32.mrb[0].mxu0
    %1305 = vdwg.mxu0
    %vm1306 = vcmask 64512
    %v1307 = vsel %vm1306, %v792, -inf
    %1308 = vmax.xlane.f32.xlu0 %v1307
    %v1309 = vpop.xlane.xlu0 %1308
    %v1310 = vsel %vm1306, %v865, -inf
    %1311 = vmax.xlane.f32.xlu0 %v1310
    %v1312 = vpop.xlane.xlu0 %1311
    %v1313 = vsel %vm1306, %v938, -inf
    %1314 = vmax.xlane.f32.xlu0 %v1313
    %v1315 = vpop.xlane.xlu0 %1314
    %v1316 = vsel %vm1306, %v1011, -inf
    %1317 = vmax.xlane.f32.xlu0 %v1316
    %v1318 = vpop.xlane.xlu0 %1317
    %v1319 = vsel %vm1306, %v1084, -inf
    %1320 = vmax.xlane.f32.xlu0 %v1319
    %v1321 = vpop.xlane.xlu0 %1320
    %v1322 = vsel %vm1306, %v1157, -inf
    %1323 = vmax.xlane.f32.xlu0 %v1322
    %v1324 = vpop.xlane.xlu0 %1323
    %v1325 = vsel %vm1306, %v1230, -inf
    %1326 = vmax.xlane.f32.xlu0 %v1325
    %v1327 = vpop.xlane.xlu0 %1326
    %v1328 = vsel %vm1306, %v1303, -inf
    %1329 = vmax.xlane.f32.xlu0 %v1328
    %v1330 = vpop.xlane.xlu0 %1329
    %v1331 = vsub.f32 %v792, %v1309
    %v1332 = vsub.f32 %v865, %v1312
    %v1333 = vsub.f32 %v938, %v1315
    %v1334 = vsub.f32 %v1011, %v1318
    %v1335 = vsub.f32 %v1084, %v1321
    %v1336 = vsub.f32 %v1157, %v1324
    %v1337 = vsub.f32 %v1230, %v1327
    %v1338 = vsub.f32 %v1303, %v1330
    %v1339 = vmul.f32 %v1331, 1.442695
    %v1340 = vpow.pop %v1339
    %v1341 = vmul.f32 %v1332, 1.442695
    %v1342 = vpow.pop %v1341
    %v1343 = vmul.f32 %v1333, 1.442695
    %v1344 = vpow.pop %v1343
    %v1345 = vmul.f32 %v1334, 1.442695
    %v1346 = vpow.pop %v1345
    %v1347 = vmul.f32 %v1335, 1.442695
    %v1348 = vpow.pop %v1347
    %v1349 = vmul.f32 %v1336, 1.442695
    %v1350 = vpow.pop %v1349
    %v1351 = vmul.f32 %v1337, 1.442695
    %v1352 = vpow.pop %v1351
    %v1353 = vmul.f32 %v1338, 1.442695
    %v1354 = vpow.pop %v1353
    %v1355 = vsel %vm1306, %v1340, 0.0
    %1356 = vadd.xlane.f32.xlu0 %v1355
    %v1357 = vpop.xlane.xlu0 %1356
    %v1358 = vsel %vm1306, %v1342, 0.0
    %1359 = vadd.xlane.f32.xlu0 %v1358
    %v1360 = vpop.xlane.xlu0 %1359
    %v1361 = vsel %vm1306, %v1344, 0.0
    %1362 = vadd.xlane.f32.xlu0 %v1361
    %v1363 = vpop.xlane.xlu0 %1362
    %v1364 = vsel %vm1306, %v1346, 0.0
    %1365 = vadd.xlane.f32.xlu0 %v1364
    %v1366 = vpop.xlane.xlu0 %1365
    %v1367 = vsel %vm1306, %v1348, 0.0
    %1368 = vadd.xlane.f32.xlu0 %v1367
    %v1369 = vpop.xlane.xlu0 %1368
    %v1370 = vsel %vm1306, %v1350, 0.0
    %1371 = vadd.xlane.f32.xlu0 %v1370
    %v1372 = vpop.xlane.xlu0 %1371
    %v1373 = vsel %vm1306, %v1352, 0.0
    %1374 = vadd.xlane.f32.xlu0 %v1373
    %v1375 = vpop.xlane.xlu0 %1374
    %v1376 = vsel %vm1306, %v1354, 0.0
    %1377 = vadd.xlane.f32.xlu0 %v1376
    %v1378 = vpop.xlane.xlu0 %1377
    %v1379 = vrcp.pop %v1357
    %v1380 = vrcp.pop %v1360
    %v1381 = vrcp.pop %v1363
    %v1382 = vrcp.pop %v1366
    %v1383 = vrcp.pop %v1369
    %v1384 = vrcp.pop %v1372
    %v1385 = vrcp.pop %v1375
    %v1386 = vrcp.pop %v1378
    %v1387 = vmul.f32 %v1340, %v1379
    %v1388 = vmul.f32 %v1342, %v1380
    %v1389 = vmul.f32 %v1344, %v1381
    %v1390 = vmul.f32 %v1346, %v1382
    %v1391 = vmul.f32 %v1348, %v1383
    %v1392 = vmul.f32 %v1350, %v1384
    %v1393 = vmul.f32 %v1352, %v1385
    %v1394 = vmul.f32 %v1354, %v1386
    %1395 = vst.msk [vmem:[#allocation8] sm:$0xff] %vm1306, %v1387
    %1396 = vst.msk [vmem:[#allocation8 + $0x8] sm:$0xff] %vm1306, %v1388
    %1397 = vst.msk [vmem:[#allocation8 + $0x10] sm:$0xff] %vm1306, %v1389
    %1398 = vst.msk [vmem:[#allocation8 + $0x18] sm:$0xff] %vm1306, %v1390
    %1399 = vst.msk [vmem:[#allocation8 + $0x20] sm:$0xff] %vm1306, %v1391
    %1400 = vst.msk [vmem:[#allocation8 + $0x28] sm:$0xff] %vm1306, %v1392
    %1401 = vst.msk [vmem:[#allocation8 + $0x30] sm:$0xff] %vm1306, %v1393
    %1402 = vst.msk [vmem:[#allocation8 + $0x38] sm:$0xff] %vm1306, %v1394
    %v1403 = vld [vmem:[#allocation5] sm:$0xff]
    %v1404 = vld [vmem:[#allocation5 + $0x8] sm:$0xff]
    %v1405 = vld [vmem:[#allocation5 + $0x10] sm:$0xff]
    %v1406 = vld [vmem:[#allocation5 + $0x18] sm:$0xff]
    %v1407 = vld [vmem:[#allocation5 + $0x20] sm:$0xff]
    %v1408 = vld [vmem:[#allocation5 + $0x28] sm:$0xff]
    %v1409 = vld [vmem:[#allocation5 + $0x30] sm:$0xff]
    %v1410 = vld [vmem:[#allocation5 + $0x38] sm:$0xff]
    %v1411 = vld [vmem:[#allocation5 + $0x40] sm:$0xff]
    %v1412 = vld [vmem:[#allocation5 + $0x48] sm:$0xff]
    %v1413 = vld [vmem:[#allocation5 + $0x50] sm:$0xff]
    %v1414 = vld [vmem:[#allocation5 + $0x58] sm:$0xff]
    %v1415 = vld [vmem:[#allocation5 + $0x60] sm:$0xff]
    %v1416 = vld [vmem:[#allocation5 + $0x68] sm:$0xff]
    %v1417 = vld [vmem:[#allocation5 + $0x70] sm:$0xff]
    %v1418 = vld [vmem:[#allocation5 + $0x78] sm:$0xff]
    %v1419 = vld [vmem:[#allocation5 + $0x80] sm:$0xff]
    %v1420 = vld [vmem:[#allocation5 + $0x88] sm:$0xff]
    %v1421 = vld [vmem:[#allocation5 + $0x90] sm:$0xff]
    %v1422 = vld [vmem:[#allocation5 + $0x98] sm:$0xff]
    %v1423 = vld [vmem:[#allocation5 + $0xa0] sm:$0xff]
    %v1424 = vld [vmem:[#allocation5 + $0xa8] sm:$0xff]
    %v1425 = vld [vmem:[#allocation5 + $0xb0] sm:$0xff]
    %v1426 = vld [vmem:[#allocation5 + $0xb8] sm:$0xff]
    %v1427 = vld [vmem:[#allocation5 + $0xc0] sm:$0xff]
    %v1428 = vld [vmem:[#allocation5 + $0xc8] sm:$0xff]
    %v1429 = vld [vmem:[#allocation5 + $0xd0] sm:$0xff]
    %v1430 = vld [vmem:[#allocation5 + $0xd8] sm:$0xff]
    %v1431 = vld [vmem:[#allocation5 + $0xe0] sm:$0xff]
    %v1432 = vld [vmem:[#allocation5 + $0xe8] sm:$0xff]
    %v1433 = vld [vmem:[#allocation5 + $0xf0] sm:$0xff]
    %v1434 = vld [vmem:[#allocation5 + $0xf8] sm:$0xff]
    %1435 = vmatprep.subr.mxu0 0.0
    %1436 = vmatpush1.msra.mxu0 %v1403
    %1437 = vmatprep.subr.mxu0 0.0
    %1438 = vmatpush1.msra.mxu0 %v1404
    %1439 = vmatprep.subr.mxu0 0.0
    %1440 = vmatpush1.msra.mxu0 %v1405
    %1441 = vmatprep.subr.mxu0 0.0
    %1442 = vmatpush1.msra.mxu0 %v1406
    %1443 = vmatprep.subr.mxu0 0.0
    %1444 = vmatpush1.msra.mxu0 0.0
    %1445 = vmatprep.subr.mxu0 0.0
    %1446 = vmatpush1.msra.mxu0 0.0
    %1447 = vmatprep.subr.mxu0 0.0
    %1448 = vmatpush1.msra.mxu0 0.0
    %1449 = vmatprep.subr.mxu0 0.0
    %1450 = vmatpush1.msra.mxu0 0.0
    %1451 = vmatprep.subr.mxu0 0.0
    %1452 = vmatpush1.msra.mxu0 0.0
    %1453 = vmatprep.subr.mxu0 0.0
    %1454 = vmatpush1.msra.mxu0 0.0
    %1455 = vmatprep.subr.mxu0 0.0
    %1456 = vmatpush1.msra.mxu0 0.0
    %1457 = vmatprep.subr.mxu0 0.0
    %1458 = vmatpush1.msra.mxu0 0.0
    %1459 = vmatprep.subr.mxu0 0.0
    %1460 = vmatpush1.msra.mxu0 0.0
    %1461 = vmatprep.subr.mxu0 0.0
    %1462 = vmatpush1.msra.mxu0 0.0
    %1463 = vmatprep.subr.mxu0 0.0
    %1464 = vmatpush1.msra.mxu0 0.0
    %1465 = vmatprep.subr.mxu0 0.0
    %1466 = vmatpush1.msra.mxu0 0.0
    %1467 = vmatprep.subr.mxu0 0.0
    %1468 = vmatpush1.msra.mxu0 0.0
    %1469 = vmatprep.subr.mxu0 0.0
    %1470 = vmatpush1.msra.mxu0 0.0
    %1471 = vmatprep.subr.mxu0 0.0
    %1472 = vmatpush1.msra.mxu0 0.0
    %1473 = vmatprep.subr.mxu0 0.0
    %1474 = vmatpush1.msra.mxu0 0.0
    %1475 = vmatprep.subr.mxu0 0.0
    %1476 = vmatpush1.msra.mxu0 0.0
    %1477 = vmatprep.subr.mxu0 0.0
    %1478 = vmatpush1.msra.mxu0 0.0
    %1479 = vmatprep.subr.mxu0 0.0
    %1480 = vmatpush1.msra.mxu0 0.0
    %1481 = vmatprep.subr.mxu0 0.0
    %1482 = vmatpush1.msra.mxu0 0.0
    %1483 = vmatprep.subr.mxu0 0.0
    %1484 = vmatpush1.msra.mxu0 0.0
    %1485 = vmatprep.subr.mxu0 0.0
    %1486 = vmatpush1.msra.mxu0 0.0
    %1487 = vmatprep.subr.mxu0 0.0
    %1488 = vmatpush1.msra.mxu0 0.0
    %1489 = vmatprep.subr.mxu0 0.0
    %1490 = vmatpush1.msra.mxu0 0.0
    %1491 = vmatprep.subr.mxu0 0.0
    %1492 = vmatpush1.msra.mxu0 0.0
    %1493 = vmatprep.subr.mxu0 0.0
    %1494 = vmatpush1.msra.mxu0 0.0
    %1495 = vmatprep.subr.mxu0 0.0
    %1496 = vmatpush1.msra.mxu0 0.0
    %1497 = vmatprep.subr.mxu0 0.0
    %1498 = vmatpush1.msra.mxu0 0.0
    %1499 = vmatprep.mubr.f32.mxu0 0.0
    %1500 = vmatmul.mubr.f32.gmra.mrb[0].mxu0 %v157
    %v1501 = vpop.f32.mrb[0].mxu0
    %v1502 = vadd.f32 0.0, %v1501
    %v1503 = vpop.f32.mrb[0].mxu0
    %1504 = vdwg.mxu0
    %1505 = vmatprep.subr.mxu0 0.0
    %1506 = vmatpush1.msra.mxu0 %v1407
    %1507 = vmatprep.subr.mxu0 0.0
    %1508 = vmatpush1.msra.mxu0 %v1408
    %1509 = vmatprep.subr.mxu0 0.0
    %1510 = vmatpush1.msra.mxu0 %v1409
    %1511 = vmatprep.subr.mxu0 0.0
    %1512 = vmatpush1.msra.mxu0 %v1410
    %1513 = vmatprep.subr.mxu0 0.0
    %1514 = vmatpush1.msra.mxu0 0.0
    %1515 = vmatprep.subr.mxu0 0.0
    %1516 = vmatpush1.msra.mxu0 0.0
    %1517 = vmatprep.subr.mxu0 0.0
    %1518 = vmatpush1.msra.mxu0 0.0
    %1519 = vmatprep.subr.mxu0 0.0
    %1520 = vmatpush1.msra.mxu0 0.0
    %1521 = vmatprep.subr.mxu0 0.0
    %1522 = vmatpush1.msra.mxu0 0.0
    %1523 = vmatprep.subr.mxu0 0.0
    %1524 = vmatpush1.msra.mxu0 0.0
    %1525 = vmatprep.subr.mxu0 0.0
    %1526 = vmatpush1.msra.mxu0 0.0
    %1527 = vmatprep.subr.mxu0 0.0
    %1528 = vmatpush1.msra.mxu0 0.0
    %1529 = vmatprep.subr.mxu0 0.0
    %1530 = vmatpush1.msra.mxu0 0.0
    %1531 = vmatprep.subr.mxu0 0.0
    %1532 = vmatpush1.msra.mxu0 0.0
    %1533 = vmatprep.subr.mxu0 0.0
    %1534 = vmatpush1.msra.mxu0 0.0
    %1535 = vmatprep.subr.mxu0 0.0
    %1536 = vmatpush1.msra.mxu0 0.0
    %1537 = vmatprep.subr.mxu0 0.0
    %1538 = vmatpush1.msra.mxu0 0.0
    %1539 = vmatprep.subr.mxu0 0.0
    %1540 = vmatpush1.msra.mxu0 0.0
    %1541 = vmatprep.subr.mxu0 0.0
    %1542 = vmatpush1.msra.mxu0 0.0
    %1543 = vmatprep.subr.mxu0 0.0
    %1544 = vmatpush1.msra.mxu0 0.0
    %1545 = vmatprep.subr.mxu0 0.0
    %1546 = vmatpush1.msra.mxu0 0.0
    %1547 = vmatprep.subr.mxu0 0.0
    %1548 = vmatpush1.msra.mxu0 0.0
    %1549 = vmatprep.subr.mxu0 0.0
    %1550 = vmatpush1.msra.mxu0 0.0
    %1551 = vmatprep.subr.mxu0 0.0
    %1552 = vmatpush1.msra.mxu0 0.0
    %1553 = vmatprep.subr.mxu0 0.0
    %1554 = vmatpush1.msra.mxu0 0.0
    %1555 = vmatprep.subr.mxu0 0.0
    %1556 = vmatpush1.msra.mxu0 0.0
    %1557 = vmatprep.subr.mxu0 0.0
    %1558 = vmatpush1.msra.mxu0 0.0
    %1559 = vmatprep.subr.mxu0 0.0
    %1560 = vmatpush1.msra.mxu0 0.0
    %1561 = vmatprep.subr.mxu0 0.0
    %1562 = vmatpush1.msra.mxu0 0.0
    %1563 = vmatprep.subr.mxu0 0.0
    %1564 = vmatpush1.msra.mxu0 0.0
    %1565 = vmatprep.subr.mxu0 0.0
    %1566 = vmatpush1.msra.mxu0 0.0
    %1567 = vmatprep.subr.mxu0 0.0
    %1568 = vmatpush1.msra.mxu0 0.0
    %1569 = vmatprep.mubr.f32.mxu0 0.0
    %1570 = vmatmul.mubr.f32.gmra.mrb[0].mxu0 %v157
    %v1571 = vpop.f32.mrb[0].mxu0
    %v1572 = vadd.f32 0.0, %v1571
    %v1573 = vpop.f32.mrb[0].mxu0
    %1574 = vdwg.mxu0
    %1575 = vmatprep.subr.mxu0 0.0
    %1576 = vmatpush1.msra.mxu0 %v1411
    %1577 = vmatprep.subr.mxu0 0.0
    %1578 = vmatpush1.msra.mxu0 %v1412
    %1579 = vmatprep.subr.mxu0 0.0
    %1580 = vmatpush1.msra.mxu0 %v1413
    %1581 = vmatprep.subr.mxu0 0.0
    %1582 = vmatpush1.msra.mxu0 %v1414
    %1583 = vmatprep.subr.mxu0 0.0
    %1584 = vmatpush1.msra.mxu0 0.0
    %1585 = vmatprep.subr.mxu0 0.0
    %1586 = vmatpush1.msra.mxu0 0.0
    %1587 = vmatprep.subr.mxu0 0.0
    %1588 = vmatpush1.msra.mxu0 0.0
    %1589 = vmatprep.subr.mxu0 0.0
    %1590 = vmatpush1.msra.mxu0 0.0
    %1591 = vmatprep.subr.mxu0 0.0
    %1592 = vmatpush1.msra.mxu0 0.0
    %1593 = vmatprep.subr.mxu0 0.0
    %1594 = vmatpush1.msra.mxu0 0.0
    %1595 = vmatprep.subr.mxu0 0.0
    %1596 = vmatpush1.msra.mxu0 0.0
    %1597 = vmatprep.subr.mxu0 0.0
    %1598 = vmatpush1.msra.mxu0 0.0
    %1599 = vmatprep.subr.mxu0 0.0
    %1600 = vmatpush1.msra.mxu0 0.0
    %1601 = vmatprep.subr.mxu0 0.0
    %1602 = vmatpush1.msra.mxu0 0.0
    %1603 = vmatprep.subr.mxu0 0.0
    %1604 = vmatpush1.msra.mxu0 0.0
    %1605 = vmatprep.subr.mxu0 0.0
    %1606 = vmatpush1.msra.mxu0 0.0
    %1607 = vmatprep.subr.mxu0 0.0
    %1608 = vmatpush1.msra.mxu0 0.0
    %1609 = vmatprep.subr.mxu0 0.0
    %1610 = vmatpush1.msra.mxu0 0.0
    %1611 = vmatprep.subr.mxu0 0.0
    %1612 = vmatpush1.msra.mxu0 0.0
    %1613 = vmatprep.subr.mxu0 0.0
    %1614 = vmatpush1.msra.mxu0 0.0
    %1615 = vmatprep.subr.mxu0 0.0
    %1616 = vmatpush1.msra.mxu0 0.0
    %1617 = vmatprep.subr.mxu0 0.0
    %1618 = vmatpush1.msra.mxu0 0.0
    %1619 = vmatprep.subr.mxu0 0.0
    %1620 = vmatpush1.msra.mxu0 0.0
    %1621 = vmatprep.subr.mxu0 0.0
    %1622 = vmatpush1.msra.mxu0 0.0
    %1623 = vmatprep.subr.mxu0 0.0
    %1624 = vmatpush1.msra.mxu0 0.0
    %1625 = vmatprep.subr.mxu0 0.0
    %1626 = vmatpush1.msra.mxu0 0.0
    %1627 = vmatprep.subr.mxu0 0.0
    %1628 = vmatpush1.msra.mxu0 0.0
    %1629 = vmatprep.subr.mxu0 0.0
    %1630 = vmatpush1.msra.mxu0 0.0
    %1631 = vmatprep.subr.mxu0 0.0
    %1632 = vmatpush1.msra.mxu0 0.0
    %1633 = vmatprep.subr.mxu0 0.0
    %1634 = vmatpush1.msra.mxu0 0.0
    %1635 = vmatprep.subr.mxu0 0.0
    %1636 = vmatpush1.msra.mxu0 0.0
    %1637 = vmatprep.subr.mxu0 0.0
    %1638 = vmatpush1.msra.mxu0 0.0
    %1639 = vmatprep.mubr.f32.mxu0 0.0
    %1640 = vmatmul.mubr.f32.gmra.mrb[0].mxu0 %v157
    %v1641 = vpop.f32.mrb[0].mxu0
    %v1642 = vadd.f32 0.0, %v1641
    %v1643 = vpop.f32.mrb[0].mxu0
    %1644 = vdwg.mxu0
    %1645 = vmatprep.subr.mxu0 0.0
    %1646 = vmatpush1.msra.mxu0 %v1415
    %1647 = vmatprep.subr.mxu0 0.0
    %1648 = vmatpush1.msra.mxu0 %v1416
    %1649 = vmatprep.subr.mxu0 0.0
    %1650 = vmatpush1.msra.mxu0 %v1417
    %1651 = vmatprep.subr.mxu0 0.0
    %1652 = vmatpush1.msra.mxu0 %v1418
    %1653 = vmatprep.subr.mxu0 0.0
    %1654 = vmatpush1.msra.mxu0 0.0
    %1655 = vmatprep.subr.mxu0 0.0
    %1656 = vmatpush1.msra.mxu0 0.0
    %1657 = vmatprep.subr.mxu0 0.0
    %1658 = vmatpush1.msra.mxu0 0.0
    %1659 = vmatprep.subr.mxu0 0.0
    %1660 = vmatpush1.msra.mxu0 0.0
    %1661 = vmatprep.subr.mxu0 0.0
    %1662 = vmatpush1.msra.mxu0 0.0
    %1663 = vmatprep.subr.mxu0 0.0
    %1664 = vmatpush1.msra.mxu0 0.0
    %1665 = vmatprep.subr.mxu0 0.0
    %1666 = vmatpush1.msra.mxu0 0.0
    %1667 = vmatprep.subr.mxu0 0.0
    %1668 = vmatpush1.msra.mxu0 0.0
    %1669 = vmatprep.subr.mxu0 0.0
    %1670 = vmatpush1.msra.mxu0 0.0
    %1671 = vmatprep.subr.mxu0 0.0
    %1672 = vmatpush1.msra.mxu0 0.0
    %1673 = vmatprep.subr.mxu0 0.0
    %1674 = vmatpush1.msra.mxu0 0.0
    %1675 = vmatprep.subr.mxu0 0.0
    %1676 = vmatpush1.msra.mxu0 0.0
    %1677 = vmatprep.subr.mxu0 0.0
    %1678 = vmatpush1.msra.mxu0 0.0
    %1679 = vmatprep.subr.mxu0 0.0
    %1680 = vmatpush1.msra.mxu0 0.0
    %1681 = vmatprep.subr.mxu0 0.0
    %1682 = vmatpush1.msra.mxu0 0.0
    %1683 = vmatprep.subr.mxu0 0.0
    %1684 = vmatpush1.msra.mxu0 0.0
    %1685 = vmatprep.subr.mxu0 0.0
    %1686 = vmatpush1.msra.mxu0 0.0
    %1687 = vmatprep.subr.mxu0 0.0
    %1688 = vmatpush1.msra.mxu0 0.0
    %1689 = vmatprep.subr.mxu0 0.0
    %1690 = vmatpush1.msra.mxu0 0.0
    %1691 = vmatprep.subr.mxu0 0.0
    %1692 = vmatpush1.msra.mxu0 0.0
    %1693 = vmatprep.subr.mxu0 0.0
    %1694 = vmatpush1.msra.mxu0 0.0
    %1695 = vmatprep.subr.mxu0 0.0
    %1696 = vmatpush1.msra.mxu0 0.0
    %1697 = vmatprep.subr.mxu0 0.0
    %1698 = vmatpush1.msra.mxu0 0.0
    %1699 = vmatprep.subr.mxu0 0.0
    %1700 = vmatpush1.msra.mxu0 0.0
    %1701 = vmatprep.subr.mxu0 0.0
    %1702 = vmatpush1.msra.mxu0 0.0
    %1703 = vmatprep.subr.mxu0 0.0
    %1704 = vmatpush1.msra.mxu0 0.0
    %1705 = vmatprep.subr.mxu0 0.0
    %1706 = vmatpush1.msra.mxu0 0.0
    %1707 = vmatprep.subr.mxu0 0.0
    %1708 = vmatpush1.msra.mxu0 0.0
    %1709 = vmatprep.mubr.f32.mxu0 0.0
    %1710 = vmatmul.mubr.f32.gmra.mrb[0].mxu0 %v157
    %v1711 = vpop.f32.mrb[0].mxu0
    %v1712 = vadd.f32 0.0, %v1711
    %v1713 = vpop.f32.mrb[0].mxu0
    %1714 = vdwg.mxu0
    %1715 = vmatprep.subr.mxu0 0.0
    %1716 = vmatpush1.msra.mxu0 %v1419
    %1717 = vmatprep.subr.mxu0 0.0
    %1718 = vmatpush1.msra.mxu0 %v1420
    %1719 = vmatprep.subr.mxu0 0.0
    %1720 = vmatpush1.msra.mxu0 %v1421
    %1721 = vmatprep.subr.mxu0 0.0
    %1722 = vmatpush1.msra.mxu0 %v1422
    %1723 = vmatprep.subr.mxu0 0.0
    %1724 = vmatpush1.msra.mxu0 0.0
    %1725 = vmatprep.subr.mxu0 0.0
    %1726 = vmatpush1.msra.mxu0 0.0
    %1727 = vmatprep.subr.mxu0 0.0
    %1728 = vmatpush1.msra.mxu0 0.0
    %1729 = vmatprep.subr.mxu0 0.0
    %1730 = vmatpush1.msra.mxu0 0.0
    %1731 = vmatprep.subr.mxu0 0.0
    %1732 = vmatpush1.msra.mxu0 0.0
    %1733 = vmatprep.subr.mxu0 0.0
    %1734 = vmatpush1.msra.mxu0 0.0
    %1735 = vmatprep.subr.mxu0 0.0
    %1736 = vmatpush1.msra.mxu0 0.0
    %1737 = vmatprep.subr.mxu0 0.0
    %1738 = vmatpush1.msra.mxu0 0.0
    %1739 = vmatprep.subr.mxu0 0.0
    %1740 = vmatpush1.msra.mxu0 0.0
    %1741 = vmatprep.subr.mxu0 0.0
    %1742 = vmatpush1.msra.mxu0 0.0
    %1743 = vmatprep.subr.mxu0 0.0
    %1744 = vmatpush1.msra.mxu0 0.0
    %1745 = vmatprep.subr.mxu0 0.0
    %1746 = vmatpush1.msra.mxu0 0.0
    %1747 = vmatprep.subr.mxu0 0.0
    %1748 = vmatpush1.msra.mxu0 0.0
    %1749 = vmatprep.subr.mxu0 0.0
    %1750 = vmatpush1.msra.mxu0 0.0
    %1751 = vmatprep.subr.mxu0 0.0
    %1752 = vmatpush1.msra.mxu0 0.0
    %1753 = vmatprep.subr.mxu0 0.0
    %1754 = vmatpush1.msra.mxu0 0.0
    %1755 = vmatprep.subr.mxu0 0.0
    %1756 = vmatpush1.msra.mxu0 0.0
    %1757 = vmatprep.subr.mxu0 0.0
    %1758 = vmatpush1.msra.mxu0 0.0
    %1759 = vmatprep.subr.mxu0 0.0
    %1760 = vmatpush1.msra.mxu0 0.0
    %1761 = vmatprep.subr.mxu0 0.0
    %1762 = vmatpush1.msra.mxu0 0.0
    %1763 = vmatprep.subr.mxu0 0.0
    %1764 = vmatpush1.msra.mxu0 0.0
    %1765 = vmatprep.subr.mxu0 0.0
    %1766 = vmatpush1.msra.mxu0 0.0
    %1767 = vmatprep.subr.mxu0 0.0
    %1768 = vmatpush1.msra.mxu0 0.0
    %1769 = vmatprep.subr.mxu0 0.0
    %1770 = vmatpush1.msra.mxu0 0.0
    %1771 = vmatprep.subr.mxu0 0.0
    %1772 = vmatpush1.msra.mxu0 0.0
    %1773 = vmatprep.subr.mxu0 0.0
    %1774 = vmatpush1.msra.mxu0 0.0
    %1775 = vmatprep.subr.mxu0 0.0
    %1776 = vmatpush1.msra.mxu0 0.0
    %1777 = vmatprep.subr.mxu0 0.0
    %1778 = vmatpush1.msra.mxu0 0.0
    %1779 = vmatprep.mubr.f32.mxu0 0.0
    %1780 = vmatmul.mubr.f32.gmra.mrb[0].mxu0 %v440
    %v1781 = vpop.f32.mrb[0].mxu0
    %v1782 = vadd.f32 0.0, %v1781
    %v1783 = vpop.f32.mrb[0].mxu0
    %1784 = vdwg.mxu0
    %1785 = vmatprep.subr.mxu0 0.0
    %1786 = vmatpush1.msra.mxu0 %v1423
    %1787 = vmatprep.subr.mxu0 0.0
    %1788 = vmatpush1.msra.mxu0 %v1424
    %1789 = vmatprep.subr.mxu0 0.0
    %1790 = vmatpush1.msra.mxu0 %v1425
    %1791 = vmatprep.subr.mxu0 0.0
    %1792 = vmatpush1.msra.mxu0 %v1426
    %1793 = vmatprep.subr.mxu0 0.0
    %1794 = vmatpush1.msra.mxu0 0.0
    %1795 = vmatprep.subr.mxu0 0.0
    %1796 = vmatpush1.msra.mxu0 0.0
    %1797 = vmatprep.subr.mxu0 0.0
    %1798 = vmatpush1.msra.mxu0 0.0
    %1799 = vmatprep.subr.mxu0 0.0
    %1800 = vmatpush1.msra.mxu0 0.0
    %1801 = vmatprep.subr.mxu0 0.0
    %1802 = vmatpush1.msra.mxu0 0.0
    %1803 = vmatprep.subr.mxu0 0.0
    %1804 = vmatpush1.msra.mxu0 0.0
    %1805 = vmatprep.subr.mxu0 0.0
    %1806 = vmatpush1.msra.mxu0 0.0
    %1807 = vmatprep.subr.mxu0 0.0
    %1808 = vmatpush1.msra.mxu0 0.0
    %1809 = vmatprep.subr.mxu0 0.0
    %1810 = vmatpush1.msra.mxu0 0.0
    %1811 = vmatprep.subr.mxu0 0.0
    %1812 = vmatpush1.msra.mxu0 0.0
    %1813 = vmatprep.subr.mxu0 0.0
    %1814 = vmatpush1.msra.mxu0 0.0
    %1815 = vmatprep.subr.mxu0 0.0
    %1816 = vmatpush1.msra.mxu0 0.0
    %1817 = vmatprep.subr.mxu0 0.0
    %1818 = vmatpush1.msra.mxu0 0.0
    %1819 = vmatprep.subr.mxu0 0.0
    %1820 = vmatpush1.msra.mxu0 0.0
    %1821 = vmatprep.subr.mxu0 0.0
    %1822 = vmatpush1.msra.mxu0 0.0
    %1823 = vmatprep.subr.mxu0 0.0
    %1824 = vmatpush1.msra.mxu0 0.0
    %1825 = vmatprep.subr.mxu0 0.0
    %1826 = vmatpush1.msra.mxu0 0.0
    %1827 = vmatprep.subr.mxu0 0.0
    %1828 = vmatpush1.msra.mxu0 0.0
    %1829 = vmatprep.subr.mxu0 0.0
    %1830 = vmatpush1.msra.mxu0 0.0
    %1831 = vmatprep.subr.mxu0 0.0
    %1832 = vmatpush1.msra.mxu0 0.0
    %1833 = vmatprep.subr.mxu0 0.0
    %1834 = vmatpush1.msra.mxu0 0.0
    %1835 = vmatprep.subr.mxu0 0.0
    %1836 = vmatpush1.msra.mxu0 0.0
    %1837 = vmatprep.subr.mxu0 0.0
    %1838 = vmatpush1.msra.mxu0 0.0
    %1839 = vmatprep.subr.mxu0 0.0
    %1840 = vmatpush1.msra.mxu0 0.0
    %1841 = vmatprep.subr.mxu0 0.0
    %1842 = vmatpush1.msra.mxu0 0.0
    %1843 = vmatprep.subr.mxu0 0.0
    %1844 = vmatpush1.msra.mxu0 0.0
    %1845 = vmatprep.subr.mxu0 0.0
    %1846 = vmatpush1.msra.mxu0 0.0
    %1847 = vmatprep.subr.mxu0 0.0
    %1848 = vmatpush1.msra.mxu0 0.0
    %1849 = vmatprep.mubr.f32.mxu0 0.0
    %1850 = vmatmul.mubr.f32.gmra.mrb[0].mxu0 %v440
    %v1851 = vpop.f32.mrb[0].mxu0
    %v1852 = vadd.f32 0.0, %v1851
    %v1853 = vpop.f32.mrb[0].mxu0
    %1854 = vdwg.mxu0
    %1855 = vmatprep.subr.mxu0 0.0
    %1856 = vmatpush1.msra.mxu0 %v1427
    %1857 = vmatprep.subr.mxu0 0.0
    %1858 = vmatpush1.msra.mxu0 %v1428
    %1859 = vmatprep.subr.mxu0 0.0
    %1860 = vmatpush1.msra.mxu0 %v1429
    %1861 = vmatprep.subr.mxu0 0.0
    %1862 = vmatpush1.msra.mxu0 %v1430
    %1863 = vmatprep.subr.mxu0 0.0
    %1864 = vmatpush1.msra.mxu0 0.0
    %1865 = vmatprep.subr.mxu0 0.0
    %1866 = vmatpush1.msra.mxu0 0.0
    %1867 = vmatprep.subr.mxu0 0.0
    %1868 = vmatpush1.msra.mxu0 0.0
    %1869 = vmatprep.subr.mxu0 0.0
    %1870 = vmatpush1.msra.mxu0 0.0
    %1871 = vmatprep.subr.mxu0 0.0
    %1872 = vmatpush1.msra.mxu0 0.0
    %1873 = vmatprep.subr.mxu0 0.0
    %1874 = vmatpush1.msra.mxu0 0.0
    %1875 = vmatprep.subr.mxu0 0.0
    %1876 = vmatpush1.msra.mxu0 0.0
    %1877 = vmatprep.subr.mxu0 0.0
    %1878 = vmatpush1.msra.mxu0 0.0
    %1879 = vmatprep.subr.mxu0 0.0
    %1880 = vmatpush1.msra.mxu0 0.0
    %1881 = vmatprep.subr.mxu0 0.0
    %1882 = vmatpush1.msra.mxu0 0.0
    %1883 = vmatprep.subr.mxu0 0.0
    %1884 = vmatpush1.msra.mxu0 0.0
    %1885 = vmatprep.subr.mxu0 0.0
    %1886 = vmatpush1.msra.mxu0 0.0
    %1887 = vmatprep.subr.mxu0 0.0
    %1888 = vmatpush1.msra.mxu0 0.0
    %1889 = vmatprep.subr.mxu0 0.0
    %1890 = vmatpush1.msra.mxu0 0.0
    %1891 = vmatprep.subr.mxu0 0.0
    %1892 = vmatpush1.msra.mxu0 0.0
    %1893 = vmatprep.subr.mxu0 0.0
    %1894 = vmatpush1.msra.mxu0 0.0
    %1895 = vmatprep.subr.mxu0 0.0
    %1896 = vmatpush1.msra.mxu0 0.0
    %1897 = vmatprep.subr.mxu0 0.0
    %1898 = vmatpush1.msra.mxu0 0.0
    %1899 = vmatprep.subr.mxu0 0.0
    %1900 = vmatpush1.msra.mxu0 0.0
    %1901 = vmatprep.subr.mxu0 0.0
    %1902 = vmatpush1.msra.mxu0 0.0
    %1903 = vmatprep.subr.mxu0 0.0
    %1904 = vmatpush1.msra.mxu0 0.0
    %1905 = vmatprep.subr.mxu0 0.0
    %1906 = vmatpush1.msra.mxu0 0.0
    %1907 = vmatprep.subr.mxu0 0.0
    %1908 = vmatpush1.msra.mxu0 0.0
    %1909 = vmatprep.subr.mxu0 0.0
    %1910 = vmatpush1.msra.mxu0 0.0
    %1911 = vmatprep.subr.mxu0 0.0
    %1912 = vmatpush1.msra.mxu0 0.0
    %1913 = vmatprep.subr.mxu0 0.0
    %1914 = vmatpush1.msra.mxu0 0.0
    %1915 = vmatprep.subr.mxu0 0.0
    %1916 = vmatpush1.msra.mxu0 0.0
    %1917 = vmatprep.subr.mxu0 0.0
    %1918 = vmatpush1.msra.mxu0 0.0
    %1919 = vmatprep.mubr.f32.mxu0 0.0
    %1920 = vmatmul.mubr.f32.gmra.mrb[0].mxu0 %v440
    %v1921 = vpop.f32.mrb[0].mxu0
    %v1922 = vadd.f32 0.0, %v1921
    %v1923 = vpop.f32.mrb[0].mxu0
    %1924 = vdwg.mxu0
    %1925 = vmatprep.subr.mxu0 0.0
    %1926 = vmatpush1.msra.mxu0 %v1431
    %1927 = vmatprep.subr.mxu0 0.0
    %1928 = vmatpush1.msra.mxu0 %v1432
    %1929 = vmatprep.subr.mxu0 0.0
    %1930 = vmatpush1.msra.mxu0 %v1433
    %1931 = vmatprep.subr.mxu0 0.0
    %1932 = vmatpush1.msra.mxu0 %v1434
    %1933 = vmatprep.subr.mxu0 0.0
    %1934 = vmatpush1.msra.mxu0 0.0
    %1935 = vmatprep.subr.mxu0 0.0
    %1936 = vmatpush1.msra.mxu0 0.0
    %1937 = vmatprep.subr.mxu0 0.0
    %1938 = vmatpush1.msra.mxu0 0.0
    %1939 = vmatprep.subr.mxu0 0.0
    %1940 = vmatpush1.msra.mxu0 0.0
    %1941 = vmatprep.subr.mxu0 0.0
    %1942 = vmatpush1.msra.mxu0 0.0
    %1943 = vmatprep.subr.mxu0 0.0
    %1944 = vmatpush1.msra.mxu0 0.0
    %1945 = vmatprep.subr.mxu0 0.0
    %1946 = vmatpush1.msra.mxu0 0.0
    %1947 = vmatprep.subr.mxu0 0.0
    %1948 = vmatpush1.msra.mxu0 0.0
    %1949 = vmatprep.subr.mxu0 0.0
    %1950 = vmatpush1.msra.mxu0 0.0
    %1951 = vmatprep.subr.mxu0 0.0
    %1952 = vmatpush1.msra.mxu0 0.0
    %1953 = vmatprep.subr.mxu0 0.0
    %1954 = vmatpush1.msra.mxu0 0.0
    %1955 = vmatprep.subr.mxu0 0.0
    %1956 = vmatpush1.msra.mxu0 0.0
    %1957 = vmatprep.subr.mxu0 0.0
    %1958 = vmatpush1.msra.mxu0 0.0
    %1959 = vmatprep.subr.mxu0 0.0
    %1960 = vmatpush1.msra.mxu0 0.0
    %1961 = vmatprep.subr.mxu0 0.0
    %1962 = vmatpush1.msra.mxu0 0.0
    %1963 = vmatprep.subr.mxu0 0.0
    %1964 = vmatpush1.msra.mxu0 0.0
    %1965 = vmatprep.subr.mxu0 0.0
    %1966 = vmatpush1.msra.mxu0 0.0
    %1967 = vmatprep.subr.mxu0 0.0
    %1968 = vmatpush1.msra.mxu0 0.0
    %1969 = vmatprep.subr.mxu0 0.0
    %1970 = vmatpush1.msra.mxu0 0.0
    %1971 = vmatprep.subr.mxu0 0.0
    %1972 = vmatpush1.msra.mxu0 0.0
    %1973 = vmatprep.subr.mxu0 0.0
    %1974 = vmatpush1.msra.mxu0 0.0
    %1975 = vmatprep.subr.mxu0 0.0
    %1976 = vmatpush1.msra.mxu0 0.0
    %1977 = vmatprep.subr.mxu0 0.0
    %1978 = vmatpush1.msra.mxu0 0.0
    %1979 = vmatprep.subr.mxu0 0.0
    %1980 = vmatpush1.msra.mxu0 0.0
    %1981 = vmatprep.subr.mxu0 0.0
    %1982 = vmatpush1.msra.mxu0 0.0
    %1983 = vmatprep.subr.mxu0 0.0
    %1984 = vmatpush1.msra.mxu0 0.0
    %1985 = vmatprep.subr.mxu0 0.0
    %1986 = vmatpush1.msra.mxu0 0.0
    %1987 = vmatprep.subr.mxu0 0.0
    %1988 = vmatpush1.msra.mxu0 0.0
    %1989 = vmatprep.mubr.f32.mxu0 0.0
    %1990 = vmatmul.mubr.f32.gmra.mrb[0].mxu0 %v440
    %v1991 = vpop.f32.mrb[0].mxu0
    %v1992 = vadd.f32 0.0, %v1991
    %v1993 = vpop.f32.mrb[0].mxu0
    %1994 = vdwg.mxu0
    %v1996 = vsel %vm1306, %v1387, 0
    %1998 = vmatprep.subr.mxu0 0.0
    %1999 = vmatpush1.msra.mxu0 %v1502
    %2000 = vmatprep.subr.mxu0 0.0
    %2001 = vmatpush1.msra.mxu0 0.0
    %2002 = vmatprep.subr.mxu0 0.0
    %2003 = vmatpush1.msra.mxu0 0.0
    %2004 = vmatprep.subr.mxu0 0.0
    %2005 = vmatpush1.msra.mxu0 0.0
    %2006 = vmatprep.subr.mxu0 0.0
    %2007 = vmatpush1.msra.mxu0 0.0
    %2008 = vmatprep.subr.mxu0 0.0
    %2009 = vmatpush1.msra.mxu0 0.0
    %2010 = vmatprep.subr.mxu0 0.0
    %2011 = vmatpush1.msra.mxu0 0.0
    %2012 = vmatprep.subr.mxu0 0.0
    %2013 = vmatpush1.msra.mxu0 0.0
    %2014 = vmatprep.subr.mxu0 0.0
    %2015 = vmatpush1.msra.mxu0 0.0
    %2016 = vmatprep.subr.mxu0 0.0
    %2017 = vmatpush1.msra.mxu0 0.0
    %2018 = vmatprep.subr.mxu0 0.0
    %2019 = vmatpush1.msra.mxu0 0.0
    %2020 = vmatprep.subr.mxu0 0.0
    %2021 = vmatpush1.msra.mxu0 0.0
    %2022 = vmatprep.subr.mxu0 0.0
    %2023 = vmatpush1.msra.mxu0 0.0
    %2024 = vmatprep.subr.mxu0 0.0
    %2025 = vmatpush1.msra.mxu0 0.0
    %2026 = vmatprep.subr.mxu0 0.0
    %2027 = vmatpush1.msra.mxu0 0.0
    %2028 = vmatprep.subr.mxu0 0.0
    %2029 = vmatpush1.msra.mxu0 0.0
    %2030 = vmatprep.subr.mxu0 0.0
    %2031 = vmatpush1.msra.mxu0 0.0
    %2032 = vmatprep.subr.mxu0 0.0
    %2033 = vmatpush1.msra.mxu0 0.0
    %2034 = vmatprep.subr.mxu0 0.0
    %2035 = vmatpush1.msra.mxu0 0.0
    %2036 = vmatprep.subr.mxu0 0.0
    %2037 = vmatpush1.msra.mxu0 0.0
    %2038 = vmatprep.subr.mxu0 0.0
    %2039 = vmatpush1.msra.mxu0 0.0
    %2040 = vmatprep.subr.mxu0 0.0
    %2041 = vmatpush1.msra.mxu0 0.0
    %2042 = vmatprep.subr.mxu0 0.0
    %2043 = vmatpush1.msra.mxu0 0.0
    %2044 = vmatprep.subr.mxu0 0.0
    %2045 = vmatpush1.msra.mxu0 0.0
    %2046 = vmatprep.subr.mxu0 0.0
    %2047 = vmatpush1.msra.mxu0 0.0
    %2048 = vmatprep.subr.mxu0 0.0
    %2049 = vmatpush1.msra.mxu0 0.0
    %2050 = vmatprep.subr.mxu0 0.0
    %2051 = vmatpush1.msra.mxu0 0.0
    %2052 = vmatprep.subr.mxu0 0.0
    %2053 = vmatpush1.msra.mxu0 0.0
    %2054 = vmatprep.subr.mxu0 0.0
    %2055 = vmatpush1.msra.mxu0 0.0
    %2056 = vmatprep.subr.mxu0 0.0
    %2057 = vmatpush1.msra.mxu0 0.0
    %2058 = vmatprep.subr.mxu0 0.0
    %2059 = vmatpush1.msra.mxu0 0.0
    %2060 = vmatprep.subr.mxu0 0.0
    %2061 = vmatpush1.msra.mxu0 0.0
    %2062 = vmatprep.mubr.f32.mxu0 0.0
    %2063 = vmatmul.mubr.f32.gmra.mrb[0].mxu0 %v1996
    %v2064 = vpop.f32.mrb[0].mxu0
    %v2065 = vadd.f32 0.0, %v2064
    %v2066 = vpop.f32.mrb[0].mxu0
    %2067 = vdwg.mxu0
    %v2069 = vsel %vm1306, %v1388, 0
    %2071 = vmatprep.subr.mxu0 0.0
    %2072 = vmatpush1.msra.mxu0 %v1572
    %2073 = vmatprep.subr.mxu0 0.0
    %2074 = vmatpush1.msra.mxu0 0.0
    %2075 = vmatprep.subr.mxu0 0.0
    %2076 = vmatpush1.msra.mxu0 0.0
    %2077 = vmatprep.subr.mxu0 0.0
    %2078 = vmatpush1.msra.mxu0 0.0
    %2079 = vmatprep.subr.mxu0 0.0
    %2080 = vmatpush1.msra.mxu0 0.0
    %2081 = vmatprep.subr.mxu0 0.0
    %2082 = vmatpush1.msra.mxu0 0.0
    %2083 = vmatprep.subr.mxu0 0.0
    %2084 = vmatpush1.msra.mxu0 0.0
    %2085 = vmatprep.subr.mxu0 0.0
    %2086 = vmatpush1.msra.mxu0 0.0
    %2087 = vmatprep.subr.mxu0 0.0
    %2088 = vmatpush1.msra.mxu0 0.0
    %2089 = vmatprep.subr.mxu0 0.0
    %2090 = vmatpush1.msra.mxu0 0.0
    %2091 = vmatprep.subr.mxu0 0.0
    %2092 = vmatpush1.msra.mxu0 0.0
    %2093 = vmatprep.subr.mxu0 0.0
    %2094 = vmatpush1.msra.mxu0 0.0
    %2095 = vmatprep.subr.mxu0 0.0
    %2096 = vmatpush1.msra.mxu0 0.0
    %2097 = vmatprep.subr.mxu0 0.0
    %2098 = vmatpush1.msra.mxu0 0.0
    %2099 = vmatprep.subr.mxu0 0.0
    %2100 = vmatpush1.msra.mxu0 0.0
    %2101 = vmatprep.subr.mxu0 0.0
    %2102 = vmatpush1.msra.mxu0 0.0
    %2103 = vmatprep.subr.mxu0 0.0
    %2104 = vmatpush1.msra.mxu0 0.0
    %2105 = vmatprep.subr.mxu0 0.0
    %2106 = vmatpush1.msra.mxu0 0.0
    %2107 = vmatprep.subr.mxu0 0.0
    %2108 = vmatpush1.msra.mxu0 0.0
    %2109 = vmatprep.subr.mxu0 0.0
    %2110 = vmatpush1.msra.mxu0 0.0
    %2111 = vmatprep.subr.mxu0 0.0
    %2112 = vmatpush1.msra.mxu0 0.0
    %2113 = vmatprep.subr.mxu0 0.0
    %2114 = vmatpush1.msra.mxu0 0.0
    %2115 = vmatprep.subr.mxu0 0.0
    %2116 = vmatpush1.msra.mxu0 0.0
    %2117 = vmatprep.subr.mxu0 0.0
    %2118 = vmatpush1.msra.mxu0 0.0
    %2119 = vmatprep.subr.mxu0 0.0
    %2120 = vmatpush1.msra.mxu0 0.0
    %2121 = vmatprep.subr.mxu0 0.0
    %2122 = vmatpush1.msra.mxu0 0.0
    %2123 = vmatprep.subr.mxu0 0.0
    %2124 = vmatpush1.msra.mxu0 0.0
    %2125 = vmatprep.subr.mxu0 0.0
    %2126 = vmatpush1.msra.mxu0 0.0
    %2127 = vmatprep.subr.mxu0 0.0
    %2128 = vmatpush1.msra.mxu0 0.0
    %2129 = vmatprep.subr.mxu0 0.0
    %2130 = vmatpush1.msra.mxu0 0.0
    %2131 = vmatprep.subr.mxu0 0.0
    %2132 = vmatpush1.msra.mxu0 0.0
    %2133 = vmatprep.subr.mxu0 0.0
    %2134 = vmatpush1.msra.mxu0 0.0
    %2135 = vmatprep.mubr.f32.mxu0 0.0
    %2136 = vmatmul.mubr.f32.gmra.mrb[0].mxu0 %v2069
    %v2137 = vpop.f32.mrb[0].mxu0
    %v2138 = vadd.f32 0.0, %v2137
    %v2139 = vpop.f32.mrb[0].mxu0
    %2140 = vdwg.mxu0
    %v2142 = vsel %vm1306, %v1389, 0
    %2144 = vmatprep.subr.mxu0 0.0
    %2145 = vmatpush1.msra.mxu0 %v1642
    %2146 = vmatprep.subr.mxu0 0.0
    %2147 = vmatpush1.msra.mxu0 0.0
    %2148 = vmatprep.subr.mxu0 0.0
    %2149 = vmatpush1.msra.mxu0 0.0
    %2150 = vmatprep.subr.mxu0 0.0
    %2151 = vmatpush1.msra.mxu0 0.0
    %2152 = vmatprep.subr.mxu0 0.0
    %2153 = vmatpush1.msra.mxu0 0.0
    %2154 = vmatprep.subr.mxu0 0.0
    %2155 = vmatpush1.msra.mxu0 0.0
    %2156 = vmatprep.subr.mxu0 0.0
    %2157 = vmatpush1.msra.mxu0 0.0
    %2158 = vmatprep.subr.mxu0 0.0
    %2159 = vmatpush1.msra.mxu0 0.0
    %2160 = vmatprep.subr.mxu0 0.0
    %2161 = vmatpush1.msra.mxu0 0.0
    %2162 = vmatprep.subr.mxu0 0.0
    %2163 = vmatpush1.msra.mxu0 0.0
    %2164 = vmatprep.subr.mxu0 0.0
    %2165 = vmatpush1.msra.mxu0 0.0
    %2166 = vmatprep.subr.mxu0 0.0
    %2167 = vmatpush1.msra.mxu0 0.0
    %2168 = vmatprep.subr.mxu0 0.0
    %2169 = vmatpush1.msra.mxu0 0.0
    %2170 = vmatprep.subr.mxu0 0.0
    %2171 = vmatpush1.msra.mxu0 0.0
    %2172 = vmatprep.subr.mxu0 0.0
    %2173 = vmatpush1.msra.mxu0 0.0
    %2174 = vmatprep.subr.mxu0 0.0
    %2175 = vmatpush1.msra.mxu0 0.0
    %2176 = vmatprep.subr.mxu0 0.0
    %2177 = vmatpush1.msra.mxu0 0.0
    %2178 = vmatprep.subr.mxu0 0.0
    %2179 = vmatpush1.msra.mxu0 0.0
    %2180 = vmatprep.subr.mxu0 0.0
    %2181 = vmatpush1.msra.mxu0 0.0
    %2182 = vmatprep.subr.mxu0 0.0
    %2183 = vmatpush1.msra.mxu0 0.0
    %2184 = vmatprep.subr.mxu0 0.0
    %2185 = vmatpush1.msra.mxu0 0.0
    %2186 = vmatprep.subr.mxu0 0.0
    %2187 = vmatpush1.msra.mxu0 0.0
    %2188 = vmatprep.subr.mxu0 0.0
    %2189 = vmatpush1.msra.mxu0 0.0
    %2190 = vmatprep.subr.mxu0 0.0
    %2191 = vmatpush1.msra.mxu0 0.0
    %2192 = vmatprep.subr.mxu0 0.0
    %2193 = vmatpush1.msra.mxu0 0.0
    %2194 = vmatprep.subr.mxu0 0.0
    %2195 = vmatpush1.msra.mxu0 0.0
    %2196 = vmatprep.subr.mxu0 0.0
    %2197 = vmatpush1.msra.mxu0 0.0
    %2198 = vmatprep.subr.mxu0 0.0
    %2199 = vmatpush1.msra.mxu0 0.0
    %2200 = vmatprep.subr.mxu0 0.0
    %2201 = vmatpush1.msra.mxu0 0.0
    %2202 = vmatprep.subr.mxu0 0.0
    %2203 = vmatpush1.msra.mxu0 0.0
    %2204 = vmatprep.subr.mxu0 0.0
    %2205 = vmatpush1.msra.mxu0 0.0
    %2206 = vmatprep.subr.mxu0 0.0
    %2207 = vmatpush1.msra.mxu0 0.0
    %2208 = vmatprep.mubr.f32.mxu0 0.0
    %2209 = vmatmul.mubr.f32.gmra.mrb[0].mxu0 %v2142
    %v2210 = vpop.f32.mrb[0].mxu0
    %v2211 = vadd.f32 0.0, %v2210
    %v2212 = vpop.f32.mrb[0].mxu0
    %2213 = vdwg.mxu0
    %v2215 = vsel %vm1306, %v1390, 0
    %2217 = vmatprep.subr.mxu0 0.0
    %2218 = vmatpush1.msra.mxu0 %v1712
    %2219 = vmatprep.subr.mxu0 0.0
    %2220 = vmatpush1.msra.mxu0 0.0
    %2221 = vmatprep.subr.mxu0 0.0
    %2222 = vmatpush1.msra.mxu0 0.0
    %2223 = vmatprep.subr.mxu0 0.0
    %2224 = vmatpush1.msra.mxu0 0.0
    %2225 = vmatprep.subr.mxu0 0.0
    %2226 = vmatpush1.msra.mxu0 0.0
    %2227 = vmatprep.subr.mxu0 0.0
    %2228 = vmatpush1.msra.mxu0 0.0
    %2229 = vmatprep.subr.mxu0 0.0
    %2230 = vmatpush1.msra.mxu0 0.0
    %2231 = vmatprep.subr.mxu0 0.0
    %2232 = vmatpush1.msra.mxu0 0.0
    %2233 = vmatprep.subr.mxu0 0.0
    %2234 = vmatpush1.msra.mxu0 0.0
    %2235 = vmatprep.subr.mxu0 0.0
    %2236 = vmatpush1.msra.mxu0 0.0
    %2237 = vmatprep.subr.mxu0 0.0
    %2238 = vmatpush1.msra.mxu0 0.0
    %2239 = vmatprep.subr.mxu0 0.0
    %2240 = vmatpush1.msra.mxu0 0.0
    %2241 = vmatprep.subr.mxu0 0.0
    %2242 = vmatpush1.msra.mxu0 0.0
    %2243 = vmatprep.subr.mxu0 0.0
    %2244 = vmatpush1.msra.mxu0 0.0
    %2245 = vmatprep.subr.mxu0 0.0
    %2246 = vmatpush1.msra.mxu0 0.0
    %2247 = vmatprep.subr.mxu0 0.0
    %2248 = vmatpush1.msra.mxu0 0.0
    %2249 = vmatprep.subr.mxu0 0.0
    %2250 = vmatpush1.msra.mxu0 0.0
    %2251 = vmatprep.subr.mxu0 0.0
    %2252 = vmatpush1.msra.mxu0 0.0
    %2253 = vmatprep.subr.mxu0 0.0
    %2254 = vmatpush1.msra.mxu0 0.0
    %2255 = vmatprep.subr.mxu0 0.0
    %2256 = vmatpush1.msra.mxu0 0.0
    %2257 = vmatprep.subr.mxu0 0.0
    %2258 = vmatpush1.msra.mxu0 0.0
    %2259 = vmatprep.subr.mxu0 0.0
    %2260 = vmatpush1.msra.mxu0 0.0
    %2261 = vmatprep.subr.mxu0 0.0
    %2262 = vmatpush1.msra.mxu0 0.0
    %2263 = vmatprep.subr.mxu0 0.0
    %2264 = vmatpush1.msra.mxu0 0.0
    %2265 = vmatprep.subr.mxu0 0.0
    %2266 = vmatpush1.msra.mxu0 0.0
    %2267 = vmatprep.subr.mxu0 0.0
    %2268 = vmatpush1.msra.mxu0 0.0
    %2269 = vmatprep.subr.mxu0 0.0
    %2270 = vmatpush1.msra.mxu0 0.0
    %2271 = vmatprep.subr.mxu0 0.0
    %2272 = vmatpush1.msra.mxu0 0.0
    %2273 = vmatprep.subr.mxu0 0.0
    %2274 = vmatpush1.msra.mxu0 0.0
    %2275 = vmatprep.subr.mxu0 0.0
    %2276 = vmatpush1.msra.mxu0 0.0
    %2277 = vmatprep.subr.mxu0 0.0
    %2278 = vmatpush1.msra.mxu0 0.0
    %2279 = vmatprep.subr.mxu0 0.0
    %2280 = vmatpush1.msra.mxu0 0.0
    %2281 = vmatprep.mubr.f32.mxu0 0.0
    %2282 = vmatmul.mubr.f32.gmra.mrb[0].mxu0 %v2215
    %v2283 = vpop.f32.mrb[0].mxu0
    %v2284 = vadd.f32 0.0, %v2283
    %v2285 = vpop.f32.mrb[0].mxu0
    %2286 = vdwg.mxu0
    %v2288 = vsel %vm1306, %v1391, 0
    %2290 = vmatprep.subr.mxu0 0.0
    %2291 = vmatpush1.msra.mxu0 %v1782
    %2292 = vmatprep.subr.mxu0 0.0
    %2293 = vmatpush1.msra.mxu0 0.0
    %2294 = vmatprep.subr.mxu0 0.0
    %2295 = vmatpush1.msra.mxu0 0.0
    %2296 = vmatprep.subr.mxu0 0.0
    %2297 = vmatpush1.msra.mxu0 0.0
    %2298 = vmatprep.subr.mxu0 0.0
    %2299 = vmatpush1.msra.mxu0 0.0
    %2300 = vmatprep.subr.mxu0 0.0
    %2301 = vmatpush1.msra.mxu0 0.0
    %2302 = vmatprep.subr.mxu0 0.0
    %2303 = vmatpush1.msra.mxu0 0.0
    %2304 = vmatprep.subr.mxu0 0.0
    %2305 = vmatpush1.msra.mxu0 0.0
    %2306 = vmatprep.subr.mxu0 0.0
    %2307 = vmatpush1.msra.mxu0 0.0
    %2308 = vmatprep.subr.mxu0 0.0
    %2309 = vmatpush1.msra.mxu0 0.0
    %2310 = vmatprep.subr.mxu0 0.0
    %2311 = vmatpush1.msra.mxu0 0.0
    %2312 = vmatprep.subr.mxu0 0.0
    %2313 = vmatpush1.msra.mxu0 0.0
    %2314 = vmatprep.subr.mxu0 0.0
    %2315 = vmatpush1.msra.mxu0 0.0
    %2316 = vmatprep.subr.mxu0 0.0
    %2317 = vmatpush1.msra.mxu0 0.0
    %2318 = vmatprep.subr.mxu0 0.0
    %2319 = vmatpush1.msra.mxu0 0.0
    %2320 = vmatprep.subr.mxu0 0.0
    %2321 = vmatpush1.msra.mxu0 0.0
    %2322 = vmatprep.subr.mxu0 0.0
    %2323 = vmatpush1.msra.mxu0 0.0
    %2324 = vmatprep.subr.mxu0 0.0
    %2325 = vmatpush1.msra.mxu0 0.0
    %2326 = vmatprep.subr.mxu0 0.0
    %2327 = vmatpush1.msra.mxu0 0.0
    %2328 = vmatprep.subr.mxu0 0.0
    %2329 = vmatpush1.msra.mxu0 0.0
    %2330 = vmatprep.subr.mxu0 0.0
    %2331 = vmatpush1.msra.mxu0 0.0
    %2332 = vmatprep.subr.mxu0 0.0
    %2333 = vmatpush1.msra.mxu0 0.0
    %2334 = vmatprep.subr.mxu0 0.0
    %2335 = vmatpush1.msra.mxu0 0.0
    %2336 = vmatprep.subr.mxu0 0.0
    %2337 = vmatpush1.msra.mxu0 0.0
    %2338 = vmatprep.subr.mxu0 0.0
    %2339 = vmatpush1.msra.mxu0 0.0
    %2340 = vmatprep.subr.mxu0 0.0
    %2341 = vmatpush1.msra.mxu0 0.0
    %2342 = vmatprep.subr.mxu0 0.0
    %2343 = vmatpush1.msra.mxu0 0.0
    %2344 = vmatprep.subr.mxu0 0.0
    %2345 = vmatpush1.msra.mxu0 0.0
    %2346 = vmatprep.subr.mxu0 0.0
    %2347 = vmatpush1.msra.mxu0 0.0
    %2348 = vmatprep.subr.mxu0 0.0
    %2349 = vmatpush1.msra.mxu0 0.0
    %2350 = vmatprep.subr.mxu0 0.0
    %2351 = vmatpush1.msra.mxu0 0.0
    %2352 = vmatprep.subr.mxu0 0.0
    %2353 = vmatpush1.msra.mxu0 0.0
    %2354 = vmatprep.mubr.f32.mxu0 0.0
    %2355 = vmatmul.mubr.f32.gmra.mrb[0].mxu0 %v2288
    %v2356 = vpop.f32.mrb[0].mxu0
    %v2357 = vadd.f32 0.0, %v2356
    %v2358 = vpop.f32.mrb[0].mxu0
    %2359 = vdwg.mxu0
    %v2361 = vsel %vm1306, %v1392, 0
    %2363 = vmatprep.subr.mxu0 0.0
    %2364 = vmatpush1.msra.mxu0 %v1852
    %2365 = vmatprep.subr.mxu0 0.0
    %2366 = vmatpush1.msra.mxu0 0.0
    %2367 = vmatprep.subr.mxu0 0.0
    %2368 = vmatpush1.msra.mxu0 0.0
    %2369 = vmatprep.subr.mxu0 0.0
    %2370 = vmatpush1.msra.mxu0 0.0
    %2371 = vmatprep.subr.mxu0 0.0
    %2372 = vmatpush1.msra.mxu0 0.0
    %2373 = vmatprep.subr.mxu0 0.0
    %2374 = vmatpush1.msra.mxu0 0.0
    %2375 = vmatprep.subr.mxu0 0.0
    %2376 = vmatpush1.msra.mxu0 0.0
    %2377 = vmatprep.subr.mxu0 0.0
    %2378 = vmatpush1.msra.mxu0 0.0
    %2379 = vmatprep.subr.mxu0 0.0
    %2380 = vmatpush1.msra.mxu0 0.0
    %2381 = vmatprep.subr.mxu0 0.0
    %2382 = vmatpush1.msra.mxu0 0.0
    %2383 = vmatprep.subr.mxu0 0.0
    %2384 = vmatpush1.msra.mxu0 0.0
    %2385 = vmatprep.subr.mxu0 0.0
    %2386 = vmatpush1.msra.mxu0 0.0
    %2387 = vmatprep.subr.mxu0 0.0
    %2388 = vmatpush1.msra.mxu0 0.0
    %2389 = vmatprep.subr.mxu0 0.0
    %2390 = vmatpush1.msra.mxu0 0.0
    %2391 = vmatprep.subr.mxu0 0.0
    %2392 = vmatpush1.msra.mxu0 0.0
    %2393 = vmatprep.subr.mxu0 0.0
    %2394 = vmatpush1.msra.mxu0 0.0
    %2395 = vmatprep.subr.mxu0 0.0
    %2396 = vmatpush1.msra.mxu0 0.0
    %2397 = vmatprep.subr.mxu0 0.0
    %2398 = vmatpush1.msra.mxu0 0.0
    %2399 = vmatprep.subr.mxu0 0.0
    %2400 = vmatpush1.msra.mxu0 0.0
    %2401 = vmatprep.subr.mxu0 0.0
    %2402 = vmatpush1.msra.mxu0 0.0
    %2403 = vmatprep.subr.mxu0 0.0
    %2404 = vmatpush1.msra.mxu0 0.0
    %2405 = vmatprep.subr.mxu0 0.0
    %2406 = vmatpush1.msra.mxu0 0.0
    %2407 = vmatprep.subr.mxu0 0.0
    %2408 = vmatpush1.msra.mxu0 0.0
    %2409 = vmatprep.subr.mxu0 0.0
    %2410 = vmatpush1.msra.mxu0 0.0
    %2411 = vmatprep.subr.mxu0 0.0
    %2412 = vmatpush1.msra.mxu0 0.0
    %2413 = vmatprep.subr.mxu0 0.0
    %2414 = vmatpush1.msra.mxu0 0.0
    %2415 = vmatprep.subr.mxu0 0.0
    %2416 = vmatpush1.msra.mxu0 0.0
    %2417 = vmatprep.subr.mxu0 0.0
    %2418 = vmatpush1.msra.mxu0 0.0
    %2419 = vmatprep.subr.mxu0 0.0
    %2420 = vmatpush1.msra.mxu0 0.0
    %2421 = vmatprep.subr.mxu0 0.0
    %2422 = vmatpush1.msra.mxu0 0.0
    %2423 = vmatprep.subr.mxu0 0.0
    %2424 = vmatpush1.msra.mxu0 0.0
    %2425 = vmatprep.subr.mxu0 0.0
    %2426 = vmatpush1.msra.mxu0 0.0
    %2427 = vmatprep.mubr.f32.mxu0 0.0
    %2428 = vmatmul.mubr.f32.gmra.mrb[0].mxu0 %v2361
    %v2429 = vpop.f32.mrb[0].mxu0
    %v2430 = vadd.f32 0.0, %v2429
    %v2431 = vpop.f32.mrb[0].mxu0
    %2432 = vdwg.mxu0
    %v2434 = vsel %vm1306, %v1393, 0
    %2436 = vmatprep.subr.mxu0 0.0
    %2437 = vmatpush1.msra.mxu0 %v1922
    %2438 = vmatprep.subr.mxu0 0.0
    %2439 = vmatpush1.msra.mxu0 0.0
    %2440 = vmatprep.subr.mxu0 0.0
    %2441 = vmatpush1.msra.mxu0 0.0
    %2442 = vmatprep.subr.mxu0 0.0
    %2443 = vmatpush1.msra.mxu0 0.0
    %2444 = vmatprep.subr.mxu0 0.0
    %2445 = vmatpush1.msra.mxu0 0.0
    %2446 = vmatprep.subr.mxu0 0.0
    %2447 = vmatpush1.msra.mxu0 0.0
    %2448 = vmatprep.subr.mxu0 0.0
    %2449 = vmatpush1.msra.mxu0 0.0
    %2450 = vmatprep.subr.mxu0 0.0
    %2451 = vmatpush1.msra.mxu0 0.0
    %2452 = vmatprep.subr.mxu0 0.0
    %2453 = vmatpush1.msra.mxu0 0.0
    %2454 = vmatprep.subr.mxu0 0.0
    %2455 = vmatpush1.msra.mxu0 0.0
    %2456 = vmatprep.subr.mxu0 0.0
    %2457 = vmatpush1.msra.mxu0 0.0
    %2458 = vmatprep.subr.mxu0 0.0
    %2459 = vmatpush1.msra.mxu0 0.0
    %2460 = vmatprep.subr.mxu0 0.0
    %2461 = vmatpush1.msra.mxu0 0.0
    %2462 = vmatprep.subr.mxu0 0.0
    %2463 = vmatpush1.msra.mxu0 0.0
    %2464 = vmatprep.subr.mxu0 0.0
    %2465 = vmatpush1.msra.mxu0 0.0
    %2466 = vmatprep.subr.mxu0 0.0
    %2467 = vmatpush1.msra.mxu0 0.0
    %2468 = vmatprep.subr.mxu0 0.0
    %2469 = vmatpush1.msra.mxu0 0.0
    %2470 = vmatprep.subr.mxu0 0.0
    %2471 = vmatpush1.msra.mxu0 0.0
    %2472 = vmatprep.subr.mxu0 0.0
    %2473 = vmatpush1.msra.mxu0 0.0
    %2474 = vmatprep.subr.mxu0 0.0
    %2475 = vmatpush1.msra.mxu0 0.0
    %2476 = vmatprep.subr.mxu0 0.0
    %2477 = vmatpush1.msra.mxu0 0.0
    %2478 = vmatprep.subr.mxu0 0.0
    %2479 = vmatpush1.msra.mxu0 0.0
    %2480 = vmatprep.subr.mxu0 0.0
    %2481 = vmatpush1.msra.mxu0 0.0
    %2482 = vmatprep.subr.mxu0 0.0
    %2483 = vmatpush1.msra.mxu0 0.0
    %2484 = vmatprep.subr.mxu0 0.0
    %2485 = vmatpush1.msra.mxu0 0.0
    %2486 = vmatprep.subr.mxu0 0.0
    %2487 = vmatpush1.msra.mxu0 0.0
    %2488 = vmatprep.subr.mxu0 0.0
    %2489 = vmatpush1.msra.mxu0 0.0
    %2490 = vmatprep.subr.mxu0 0.0
    %2491 = vmatpush1.msra.mxu0 0.0
    %2492 = vmatprep.subr.mxu0 0.0
    %2493 = vmatpush1.msra.mxu0 0.0
    %2494 = vmatprep.subr.mxu0 0.0
    %2495 = vmatpush1.msra.mxu0 0.0
    %2496 = vmatprep.subr.mxu0 0.0
    %2497 = vmatpush1.msra.mxu0 0.0
    %2498 = vmatprep.subr.mxu0 0.0
    %2499 = vmatpush1.msra.mxu0 0.0
    %2500 = vmatprep.mubr.f32.mxu0 0.0
    %2501 = vmatmul.mubr.f32.gmra.mrb[0].mxu0 %v2434
    %v2502 = vpop.f32.mrb[0].mxu0
    %v2503 = vadd.f32 0.0, %v2502
    %v2504 = vpop.f32.mrb[0].mxu0
    %2505 = vdwg.mxu0
    %v2507 = vsel %vm1306, %v1394, 0
    %2509 = vmatprep.subr.mxu0 0.0
    %2510 = vmatpush1.msra.mxu0 %v1992
    %2511 = vmatprep.subr.mxu0 0.0
    %2512 = vmatpush1.msra.mxu0 0.0
    %2513 = vmatprep.subr.mxu0 0.0
    %2514 = vmatpush1.msra.mxu0 0.0
    %2515 = vmatprep.subr.mxu0 0.0
    %2516 = vmatpush1.msra.mxu0 0.0
    %2517 = vmatprep.subr.mxu0 0.0
    %2518 = vmatpush1.msra.mxu0 0.0
    %2519 = vmatprep.subr.mxu0 0.0
    %2520 = vmatpush1.msra.mxu0 0.0
    %2521 = vmatprep.subr.mxu0 0.0
    %2522 = vmatpush1.msra.mxu0 0.0
    %2523 = vmatprep.subr.mxu0 0.0
    %2524 = vmatpush1.msra.mxu0 0.0
    %2525 = vmatprep.subr.mxu0 0.0
    %2526 = vmatpush1.msra.mxu0 0.0
    %2527 = vmatprep.subr.mxu0 0.0
    %2528 = vmatpush1.msra.mxu0 0.0
    %2529 = vmatprep.subr.mxu0 0.0
    %2530 = vmatpush1.msra.mxu0 0.0
    %2531 = vmatprep.subr.mxu0 0.0
    %2532 = vmatpush1.msra.mxu0 0.0
    %2533 = vmatprep.subr.mxu0 0.0
    %2534 = vmatpush1.msra.mxu0 0.0
    %2535 = vmatprep.subr.mxu0 0.0
    %2536 = vmatpush1.msra.mxu0 0.0
    %2537 = vmatprep.subr.mxu0 0.0
    %2538 = vmatpush1.msra.mxu0 0.0
    %2539 = vmatprep.subr.mxu0 0.0
    %2540 = vmatpush1.msra.mxu0 0.0
    %2541 = vmatprep.subr.mxu0 0.0
    %2542 = vmatpush1.msra.mxu0 0.0
    %2543 = vmatprep.subr.mxu0 0.0
    %2544 = vmatpush1.msra.mxu0 0.0
    %2545 = vmatprep.subr.mxu0 0.0
    %2546 = vmatpush1.msra.mxu0 0.0
    %2547 = vmatprep.subr.mxu0 0.0
    %2548 = vmatpush1.msra.mxu0 0.0
    %2549 = vmatprep.subr.mxu0 0.0
    %2550 = vmatpush1.msra.mxu0 0.0
    %2551 = vmatprep.subr.mxu0 0.0
    %2552 = vmatpush1.msra.mxu0 0.0
    %2553 = vmatprep.subr.mxu0 0.0
    %2554 = vmatpush1.msra.mxu0 0.0
    %2555 = vmatprep.subr.mxu0 0.0
    %2556 = vmatpush1.msra.mxu0 0.0
    %2557 = vmatprep.subr.mxu0 0.0
    %2558 = vmatpush1.msra.mxu0 0.0
    %2559 = vmatprep.subr.mxu0 0.0
    %2560 = vmatpush1.msra.mxu0 0.0
    %2561 = vmatprep.subr.mxu0 0.0
    %2562 = vmatpush1.msra.mxu0 0.0
    %2563 = vmatprep.subr.mxu0 0.0
    %2564 = vmatpush1.msra.mxu0 0.0
    %2565 = vmatprep.subr.mxu0 0.0
    %2566 = vmatpush1.msra.mxu0 0.0
    %2567 = vmatprep.subr.mxu0 0.0
    %2568 = vmatpush1.msra.mxu0 0.0
    %2569 = vmatprep.subr.mxu0 0.0
    %2570 = vmatpush1.msra.mxu0 0.0
    %2571 = vmatprep.subr.mxu0 0.0
    %2572 = vmatpush1.msra.mxu0 0.0
    %2573 = vmatprep.mubr.f32.mxu0 0.0
    %2574 = vmatmul.mubr.f32.gmra.mrb[0].mxu0 %v2507
    %v2575 = vpop.f32.mrb[0].mxu0
    %v2576 = vadd.f32 0.0, %v2575
    %v2577 = vpop.f32.mrb[0].mxu0
    %2578 = vdwg.mxu0
    %v2579 = vsel %vm80, %v2065, 0.0
    %v2580 = vsel %vm80, %v2138, 0.0
    %v2581 = vadd.f32 %v2579, %v2580
    %v2582 = vsel %vm80, %v2211, 0.0
    %v2583 = vadd.f32 %v2581, %v2582
    %v2584 = vsel %vm80, %v2284, 0.0
    %v2585 = vadd.f32 %v2583, %v2584
    %v2586 = vsel %vm80, %v2357, 0.0
    %v2587 = vsel %vm80, %v2430, 0.0
    %v2588 = vadd.f32 %v2586, %v2587
    %v2589 = vsel %vm80, %v2503, 0.0
    %v2590 = vadd.f32 %v2588, %v2589
    %v2591 = vsel %vm80, %v2576, 0.0
    %v2592 = vadd.f32 %v2590, %v2591
    %v2593 = vadd.f32 %v2585, %v76
    %v2594 = vadd.f32 %v2592, %v77
    %v2595 = vld [vmem:[%s5] sm:$0x1]
    %v2596 = vld [vmem:[%s6] sm:$0x1]
    %v2597 = vsel %vm80, %v2593, 0.0
    %2598 = vadd.xlane.f32.xlu0 %v2597
    %v2599 = vpop.xlane.xlu0 %2598
    %v2600 = vsel %vm80, %v2594, 0.0
    %2601 = vadd.xlane.f32.xlu0 %v2600
    %v2602 = vpop.xlane.xlu0 %2601
    %v2603 = vmul.f32 %v2599, %v87
    %v2604 = vmul.f32 %v2602, %v87
    %v2605 = vsub.f32 %v2593, %v2603
    %v2606 = vsub.f32 %v2594, %v2604
    %v2607 = vmul.f32 %v2605, %v2605
    %v2608 = vmul.f32 %v2606, %v2606
    %v2609 = vsel %vm80, %v2607, 0.0
    %2610 = vadd.xlane.f32.xlu0 %v2609
    %v2611 = vpop.xlane.xlu0 %2610
    %v2612 = vsel %vm80, %v2608, 0.0
    %2613 = vadd.xlane.f32.xlu0 %v2612
    %v2614 = vpop.xlane.xlu0 %2613
    %v2615 = vmul.f32 %v2611, %v87
    %v2616 = vmul.f32 %v2614, %v87
    %v2617 = vadd.f32 %v2615, 1e-06
    %v2618 = vadd.f32 %v2616, 1e-06
    %v2619 = vrsqrt.pop %v2617
    %v2620 = vrsqrt.pop %v2618
    %v2621 = vmul.f32 %v2605, %v2619
    %v2622 = vmul.f32 %v2606, %v2620
    %v2624 = vlaneseq
    %v2625 = vshrl.u32 %v2624, 7
    %v2626 = vsub.s32 0, %v2625
    %v2627 = vrot.slane %v2595, %v2626
    %v2629 = vmul.f32 %v2621, %v2627
    %v2630 = vmul.f32 %v2622, %v2627
    %v2632 = vlaneseq
    %v2633 = vshrl.u32 %v2632, 7
    %v2634 = vsub.s32 0, %v2633
    %v2635 = vrot.slane %v2596, %v2634
    %v2637 = vadd.f32 %v2629, %v2635
    %v2638 = vadd.f32 %v2630, %v2635
    %v2639 = vld [vmem:[%s7] sm:$0xff]
    %v2640 = vld [vmem:[%s7 + $0x8] sm:$0xff]
    %v2641 = vld [vmem:[%s7 + $0x10] sm:$0xff]
    %v2642 = vld [vmem:[%s7 + $0x18] sm:$0xff]
    %v2643 = vld [vmem:[%s8] sm:$0x1]
    %v2645 = vlaneseq
    %v2646 = vshrl.u32 %v2645, 7
    %v2647 = vsub.s32 0, %v2646
    %v2648 = vrot.slane %v2643, %v2647
    %v2651 = vsel %vm80, %v2637, 0
    %v2654 = vsel %vm80, %v2638, 0
    %2656 = vmatprep.subr.mxu0 0.0
    %2657 = vmatpush1.msra.mxu0 %v2639
    %2658 = vmatprep.subr.mxu0 0.0
    %2659 = vmatpush1.msra.mxu0 %v2640
    %2660 = vmatprep.subr.mxu0 0.0
    %2661 = vmatpush1.msra.mxu0 %v2641
    %2662 = vmatprep.subr.mxu0 0.0
    %2663 = vmatpush1.msra.mxu0 %v2642
    %2664 = vmatprep.subr.mxu0 0.0
    %2665 = vmatpush1.msra.mxu0 0.0
    %2666 = vmatprep.subr.mxu0 0.0
    %2667 = vmatpush1.msra.mxu0 0.0
    %2668 = vmatprep.subr.mxu0 0.0
    %2669 = vmatpush1.msra.mxu0 0.0
    %2670 = vmatprep.subr.mxu0 0.0
    %2671 = vmatpush1.msra.mxu0 0.0
    %2672 = vmatprep.subr.mxu0 0.0
    %2673 = vmatpush1.msra.mxu0 0.0
    %2674 = vmatprep.subr.mxu0 0.0
    %2675 = vmatpush1.msra.mxu0 0.0
    %2676 = vmatprep.subr.mxu0 0.0
    %2677 = vmatpush1.msra.mxu0 0.0
    %2678 = vmatprep.subr.mxu0 0.0
    %2679 = vmatpush1.msra.mxu0 0.0
    %2680 = vmatprep.subr.mxu0 0.0
    %2681 = vmatpush1.msra.mxu0 0.0
    %2682 = vmatprep.subr.mxu0 0.0
    %2683 = vmatpush1.msra.mxu0 0.0
    %2684 = vmatprep.subr.mxu0 0.0
    %2685 = vmatpush1.msra.mxu0 0.0
    %2686 = vmatprep.subr.mxu0 0.0
    %2687 = vmatpush1.msra.mxu0 0.0
    %2688 = vmatprep.subr.mxu0 0.0
    %2689 = vmatpush1.msra.mxu0 0.0
    %2690 = vmatprep.subr.mxu0 0.0
    %2691 = vmatpush1.msra.mxu0 0.0
    %2692 = vmatprep.subr.mxu0 0.0
    %2693 = vmatpush1.msra.mxu0 0.0
    %2694 = vmatprep.subr.mxu0 0.0
    %2695 = vmatpush1.msra.mxu0 0.0
    %2696 = vmatprep.subr.mxu0 0.0
    %2697 = vmatpush1.msra.mxu0 0.0
    %2698 = vmatprep.subr.mxu0 0.0
    %2699 = vmatpush1.msra.mxu0 0.0
    %2700 = vmatprep.subr.mxu0 0.0
    %2701 = vmatpush1.msra.mxu0 0.0
    %2702 = vmatprep.subr.mxu0 0.0
    %2703 = vmatpush1.msra.mxu0 0.0
    %2704 = vmatprep.subr.mxu0 0.0
    %2705 = vmatpush1.msra.mxu0 0.0
    %2706 = vmatprep.subr.mxu0 0.0
    %2707 = vmatpush1.msra.mxu0 0.0
    %2708 = vmatprep.subr.mxu0 0.0
    %2709 = vmatpush1.msra.mxu0 0.0
    %2710 = vmatprep.subr.mxu0 0.0
    %2711 = vmatpush1.msra.mxu0 0.0
    %2712 = vmatprep.subr.mxu0 0.0
    %2713 = vmatpush1.msra.mxu0 0.0
    %2714 = vmatprep.subr.mxu0 0.0
    %2715 = vmatpush1.msra.mxu0 0.0
    %2716 = vmatprep.subr.mxu0 0.0
    %2717 = vmatpush1.msra.mxu0 0.0
    %2718 = vmatprep.subr.mxu0 0.0
    %2719 = vmatpush1.msra.mxu0 0.0
    %2720 = vmatprep.mubr.f32.mxu0 0.0
    %2721 = vmatmul.mubr.f32.gmra.mrb[0].mxu0 %v2651
    %v2722 = vpop.f32.mrb[0].mxu0
    %v2723 = vadd.f32 %v2648, %v2722
    %v2724 = vpop.f32.mrb[0].mxu0
    %2725 = vmatprep.mubr.f32.mxu0 0.0
    %2726 = vmatmul.mubr.f32.gmra.mrb[0].mxu0 %v2654
    %v2727 = vpop.f32.mrb[0].mxu0
    %v2728 = vadd.f32 %v2648, %v2727
    %v2729 = vpop.f32.mrb[0].mxu0
    %2730 = vdwg.mxu0
    %v2731 = vmax.f32 %v2723, 0.0
    %v2732 = vmax.f32 %v2728, 0.0
    %v2733 = vld [vmem:[%s9] sm:$0xff]
    %v2734 = vld [vmem:[%s9 + $0x8] sm:$0xff]
    %v2735 = vld [vmem:[%s9 + $0x10] sm:$0xff]
    %v2736 = vld [vmem:[%s9 + $0x18] sm:$0xff]
    %v2737 = vld [vmem:[%s9 + $0x20] sm:$0xff]
    %v2738 = vld [vmem:[%s9 + $0x28] sm:$0xff]
    %v2739 = vld [vmem:[%s9 + $0x30] sm:$0xff]
    %v2740 = vld [vmem:[%s9 + $0x38] sm:$0xff]
    %v2741 = vld [vmem:[%s10] sm:$0x1]
    %v2743 = vlaneseq
    %v2744 = vshrl.u32 %v2743, 7
    %v2745 = vsub.s32 0, %v2744
    %v2746 = vrot.slane %v2741, %v2745
    %vm2748 = vcmask 523264
    %v2750 = vsel %vm2748, %v2731, 0
    %v2753 = vsel %vm2748, %v2732, 0
    %2755 = vmatprep.subr.mxu0 0.0
    %2756 = vmatpush1.msra.mxu0 %v2733
    %2757 = vmatprep.subr.mxu0 0.0
    %2758 = vmatpush1.msra.mxu0 %v2734
    %2759 = vmatprep.subr.mxu0 0.0
    %2760 = vmatpush1.msra.mxu0 %v2735
    %2761 = vmatprep.subr.mxu0 0.0
    %2762 = vmatpush1.msra.mxu0 %v2736
    %2763 = vmatprep.subr.mxu0 0.0
    %2764 = vmatpush1.msra.mxu0 %v2737
    %2765 = vmatprep.subr.mxu0 0.0
    %2766 = vmatpush1.msra.mxu0 %v2738
    %2767 = vmatprep.subr.mxu0 0.0
    %2768 = vmatpush1.msra.mxu0 %v2739
    %2769 = vmatprep.subr.mxu0 0.0
    %2770 = vmatpush1.msra.mxu0 %v2740
    %2771 = vmatprep.subr.mxu0 0.0
    %2772 = vmatpush1.msra.mxu0 0.0
    %2773 = vmatprep.subr.mxu0 0.0
    %2774 = vmatpush1.msra.mxu0 0.0
    %2775 = vmatprep.subr.mxu0 0.0
    %2776 = vmatpush1.msra.mxu0 0.0
    %2777 = vmatprep.subr.mxu0 0.0
    %2778 = vmatpush1.msra.mxu0 0.0
    %2779 = vmatprep.subr.mxu0 0.0
    %2780 = vmatpush1.msra.mxu0 0.0
    %2781 = vmatprep.subr.mxu0 0.0
    %2782 = vmatpush1.msra.mxu0 0.0
    %2783 = vmatprep.subr.mxu0 0.0
    %2784 = vmatpush1.msra.mxu0 0.0
    %2785 = vmatprep.subr.mxu0 0.0
    %2786 = vmatpush1.msra.mxu0 0.0
    %2787 = vmatprep.subr.mxu0 0.0
    %2788 = vmatpush1.msra.mxu0 0.0
    %2789 = vmatprep.subr.mxu0 0.0
    %2790 = vmatpush1.msra.mxu0 0.0
    %2791 = vmatprep.subr.mxu0 0.0
    %2792 = vmatpush1.msra.mxu0 0.0
    %2793 = vmatprep.subr.mxu0 0.0
    %2794 = vmatpush1.msra.mxu0 0.0
    %2795 = vmatprep.subr.mxu0 0.0
    %2796 = vmatpush1.msra.mxu0 0.0
    %2797 = vmatprep.subr.mxu0 0.0
    %2798 = vmatpush1.msra.mxu0 0.0
    %2799 = vmatprep.subr.mxu0 0.0
    %2800 = vmatpush1.msra.mxu0 0.0
    %2801 = vmatprep.subr.mxu0 0.0
    %2802 = vmatpush1.msra.mxu0 0.0
    %2803 = vmatprep.subr.mxu0 0.0
    %2804 = vmatpush1.msra.mxu0 0.0
    %2805 = vmatprep.subr.mxu0 0.0
    %2806 = vmatpush1.msra.mxu0 0.0
    %2807 = vmatprep.subr.mxu0 0.0
    %2808 = vmatpush1.msra.mxu0 0.0
    %2809 = vmatprep.subr.mxu0 0.0
    %2810 = vmatpush1.msra.mxu0 0.0
    %2811 = vmatprep.subr.mxu0 0.0
    %2812 = vmatpush1.msra.mxu0 0.0
    %2813 = vmatprep.subr.mxu0 0.0
    %2814 = vmatpush1.msra.mxu0 0.0
    %2815 = vmatprep.subr.mxu0 0.0
    %2816 = vmatpush1.msra.mxu0 0.0
    %2817 = vmatprep.subr.mxu0 0.0
    %2818 = vmatpush1.msra.mxu0 0.0
    %2819 = vmatprep.mubr.f32.mxu0 0.0
    %2820 = vmatmul.mubr.f32.gmra.mrb[0].mxu0 %v2750
    %v2821 = vpop.f32.mrb[0].mxu0
    %v2822 = vadd.f32 %v2746, %v2821
    %v2823 = vpop.f32.mrb[0].mxu0
    %2824 = vmatprep.mubr.f32.mxu0 0.0
    %2825 = vmatmul.mubr.f32.gmra.mrb[0].mxu0 %v2753
    %v2826 = vpop.f32.mrb[0].mxu0
    %v2827 = vadd.f32 %v2746, %v2826
    %v2828 = vpop.f32.mrb[0].mxu0
    %2829 = vdwg.mxu0
    %v2830 = vadd.f32 %v2822, %v2593
    %v2831 = vadd.f32 %v2827, %v2594
    %v2832 = vld [vmem:[%s11] sm:$0x1]
    %v2833 = vld [vmem:[%s12] sm:$0x1]
    %v2834 = vsel %vm80, %v2830, 0.0
    %2835 = vadd.xlane.f32.xlu0 %v2834
    %v2836 = vpop.xlane.xlu0 %2835
    %v2837 = vsel %vm80, %v2831, 0.0
    %2838 = vadd.xlane.f32.xlu0 %v2837
    %v2839 = vpop.xlane.xlu0 %2838
    %v2840 = vmul.f32 %v2836, %v87
    %v2841 = vmul.f32 %v2839, %v87
    %v2842 = vsub.f32 %v2830, %v2840
    %v2843 = vsub.f32 %v2831, %v2841
    %v2844 = vmul.f32 %v2842, %v2842
    %v2845 = vmul.f32 %v2843, %v2843
    %v2846 = vsel %vm80, %v2844, 0.0
    %2847 = vadd.xlane.f32.xlu0 %v2846
    %v2848 = vpop.xlane.xlu0 %2847
    %v2849 = vsel %vm80, %v2845, 0.0
    %2850 = vadd.xlane.f32.xlu0 %v2849
    %v2851 = vpop.xlane.xlu0 %2850
    %v2852 = vmul.f32 %v2848, %v87
    %v2853 = vmul.f32 %v2851, %v87
    %v2854 = vadd.f32 %v2852, 1e-06
    %v2855 = vadd.f32 %v2853, 1e-06
    %v2856 = vrsqrt.pop %v2854
    %v2857 = vrsqrt.pop %v2855
    %v2858 = vmul.f32 %v2842, %v2856
    %v2859 = vmul.f32 %v2843, %v2857
    %v2861 = vlaneseq
    %v2862 = vshrl.u32 %v2861, 7
    %v2863 = vsub.s32 0, %v2862
    %v2864 = vrot.slane %v2832, %v2863
    %v2866 = vmul.f32 %v2858, %v2864
    %v2867 = vmul.f32 %v2859, %v2864
    %v2869 = vlaneseq
    %v2870 = vshrl.u32 %v2869, 7
    %v2871 = vsub.s32 0, %v2870
    %v2872 = vrot.slane %v2833, %v2871
    %v2874 = vadd.f32 %v2866, %v2872
    %v2875 = vadd.f32 %v2867, %v2872
    %2876 = vst.msk [vmem:[#allocation7] sm:$0xff] %vm80, %v2874
    %2877 = vst.msk [vmem:[#allocation7 + $0x8] sm:$0xff] %vm80, %v2875
    // Predicated region
    $region62: #{tpu_custom_call.1} parent=1 // pred_check
      _
    $region63: #{tpu_custom_call.1} parent=1 // pred_check_branch
      %2879 = sbr.rel (0) target = $region65
    $region64: #{tpu_custom_call.1} parent=1 // pred_region
      %s2881 = ssub.s32 256, 256
      %2882 = vsyncadd [#allocation4], %s2881
      %s2883 = sshll.u32 [#allocation7], 4
      %s2884 = int_to_ptr.vmem [resolvable:$true] %s2883
      %2889 = dma.vmem_to_hbm [thread:$0]  %s2884, 256, %s13, [#allocation4], 128, 128, 8
    $region65: #{tpu_custom_call.1} parent=1 // pred_fallthru
      _
    // Predicated region
    $region66: #{tpu_custom_call.1} parent=1 // pred_check
      _
    $region67: #{tpu_custom_call.1} parent=1 // pred_check_branch
      %2891 = sbr.rel (0) target = $region69
    $region68: #{tpu_custom_call.1} parent=1 // pred_region
      %s2893 = ssub.s32 1024, 1024
      %2894 = vsyncadd [#allocation9], %s2893
      %s2895 = sshll.u32 [#allocation8], 4
      %s2896 = int_to_ptr.vmem [resolvable:$true] %s2895
      %2901 = dma.vmem_to_hbm [thread:$0]  %s2896, 1024, %s14, [#allocation9], 128, 128, 8
    $region69: #{tpu_custom_call.1} parent=1 // pred_fallthru
      _
    // Predicated region
    $region70: #{tpu_custom_call.1} parent=1 // pred_check
      _
    $region71: #{tpu_custom_call.1} parent=1 // pred_check_branch
      %2903 = sbr.rel (0) target = $region73
    $region72: #{tpu_custom_call.1} parent=1 // pred_region
      %2904 = dma.done [#allocation4], 256
    $region73: #{tpu_custom_call.1} parent=1 // pred_fallthru
      _
    // Predicated region
    $region74: #{tpu_custom_call.1} parent=1 // pred_check
      _
    $region75: #{tpu_custom_call.1} parent=1 // pred_check_branch
      %2906 = sbr.rel (0) target = $region77
    $region76: #{tpu_custom_call.1} parent=1 // pred_region
      %2907 = dma.done [#allocation9], 1024
    $region77: #{tpu_custom_call.1} parent=1 // pred_fallthru
      _
    %2908 = vsyncpa [#allocation3], 1
    %2909 = vsyncpa [#allocation6], 1
    %2910 = vsyncpa [#allocation4], 1
    %2911 = vsyncpa [#allocation9], 1

</llo_original>
